<compile_context>
chip_gen: v6e
topology: v6e:2x2x1
jax: 0.10.0
libtpu: 0.0.40
codegen_flags: <defaults>
</compile_context>

<pallas_src>
import jax
import jax.numpy as jnp
from jax.experimental import pallas as pl
from jax.experimental.pallas import tpu as pltpu


def _round_up(n, m):
    return ((n + m - 1) // m) * m


def _cdiv(a, b):
    return -(-a // b)


def _mlp_packed_kernel(x_ref, w1_ref, b1_ref, w2_ref, b2_ref, o_ref):
    # mask: keep only exact 1.0 entries (torch.where(x == 1, x, 0)) -- elementwise,
    # so it commutes with the lane packing done in the wrapper.
    x = x_ref[...]
    x = jnp.where(x == 1.0, x, jnp.zeros_like(x))

    # packed linear1 + ReLU  (lane-dense MXU matmul, exact f32)
    h = jnp.dot(x, w1_ref[...],
                precision=jax.lax.Precision.HIGHEST,
                preferred_element_type=jnp.float32) + b1_ref[...]
    h = jnp.maximum(h, 0.0)

    # packed linear2 + Sigmoid
    y = jnp.dot(h, w2_ref[...],
                precision=jax.lax.Precision.HIGHEST,
                preferred_element_type=jnp.float32) + b2_ref[...]
    o_ref[...] = jax.nn.sigmoid(y).astype(o_ref.dtype)


def _choose_packed_tile(packed_rows, max_tile):
    """Pick (tile_rows, steps) for the packed-row grid."""
    SUB = 8  # f32 sublane granule
    if packed_rows <= max_tile:
        # Whole problem fits comfortably in VMEM: one grid step, no per-step overhead.
        return _round_up(max(packed_rows, 1), SUB), 1
    # Multi-step: aim for an even step count (balanced across v7x's 2 TCs) and at
    # least 8 steps so the BlockSpec pipeline actually overlaps DMA with compute.
    steps = max(8, _cdiv(packed_rows, max_tile))
    if steps % 2:
        steps += 1
    tile = _round_up(_cdiv(packed_rows, steps), SUB)
    steps = _cdiv(packed_rows, tile)
    return tile, steps


def inteligent_neighborhood(x, w1, b1, w2, b2, *, pack=16, max_tile=2048):
    """x: (B, D_in); w1: (D_in, H); b1: (1, H); w2: (H, D_out); b2: (1, D_out)."""
    B, D_in = x.shape
    H = w1.shape[1]
    D_out = w2.shape[1]
    P = pack  # with D_in=16/H=32/D_out=8: packed widths 256 / 512 / 128 lanes

    # Block-diagonal expanded weights + tiled biases (built once per call; tiny).
    w1_exp = jnp.kron(jnp.eye(P, dtype=w1.dtype), w1)        # (P*D_in, P*H)
    w2_exp = jnp.kron(jnp.eye(P, dtype=w2.dtype), w2)        # (P*H,  P*D_out)
    b1_exp = jnp.tile(b1.reshape(1, H), (1, P))               # (1, P*H)
    b2_exp = jnp.tile(b2.reshape(1, D_out), (1, P))            # (1, P*D_out)

    packed_rows = _cdiv(B, P)
    tb, steps = _choose_packed_tile(packed_rows, max_tile)
    padded_rows = tb * steps
    Bp = padded_rows * P

    if Bp != B:
        # Padded rows are masked to 0, compute sigmoid(bias-only) and are sliced off.
        x = jnp.pad(x, ((0, Bp - B), (0, 0)))

    # Free row-major repack: (Bp, D_in) -> (Bp/P, P*D_in).
    xp = x.reshape(padded_rows, P * D_in)

    out_p = pl.pallas_call(
        _mlp_packed_kernel,
        out_shape=jax.ShapeDtypeStruct((padded_rows, P * D_out), jnp.float32),
        grid_spec=pltpu.PrefetchScalarGridSpec(
            num_scalar_prefetch=0,
            grid=(steps,),
            in_specs=[
                pl.BlockSpec((tb, P * D_in), lambda i: (i, 0)),      # x: tiled over packed batch
                pl.BlockSpec((P * D_in, P * H), lambda i: (0, 0)),   # W1_exp: resident
                pl.BlockSpec((1, P * H), lambda i: (0, 0)),          # b1_exp: resident
                pl.BlockSpec((P * H, P * D_out), lambda i: (0, 0)),  # W2_exp: resident
                pl.BlockSpec((1, P * D_out), lambda i: (0, 0)),      # b2_exp: resident
            ],
            out_specs=pl.BlockSpec((tb, P * D_out), lambda i: (i, 0)),
        ),
        compiler_params=pltpu.CompilerParams(
            dimension_semantics=("parallel",)),  # lets v7x shard batch tiles over 2 TCs
    )(xp, w1_exp, b1_exp, w2_exp, b2_exp)

    # Free row-major unpack: (Bp/P, P*D_out) -> (Bp, D_out), then drop padding.
    out = out_p.reshape(Bp, D_out)
    return out[:B] if Bp != B else out


def reference(x, w1, b1, w2, b2):
    x = jnp.where(x == 1.0, x, 0.0)
    h = jnp.maximum(
        jnp.dot(x, w1, precision=jax.lax.Precision.HIGHEST) + b1, 0.0)
    return jax.nn.sigmoid(
        jnp.dot(h, w2, precision=jax.lax.Precision.HIGHEST) + b2)


if __name__ == "__main__":
    # Shapes consistent with the module: input_size=16, hidden_size=32, output_size=8
    D_in, H, D_out = 16, 32, 8

    key = jax.random.PRNGKey(0)
    kx1, km1, kx2, kw1, kb1, kw2, kb2 = jax.random.split(key, 7)

    # Deterministic parameter init (torch.nn.Linear-style uniform bounds).
    bound1 = 1.0 / (D_in ** 0.5)
    bound2 = 1.0 / (H ** 0.5)
    w1 = jax.random.uniform(kw1, (D_in, H), jnp.float32, -bound1, bound1)
    b1 = jax.random.uniform(kb1, (1, H), jnp.float32, -bound1, bound1)
    w2 = jax.random.uniform(kw2, (H, D_out), jnp.float32, -bound2, bound2)
    b2 = jax.random.uniform(kb2, (1, D_out), jnp.float32, -bound2, bound2)

    # Case 1: small batch; mix of exact 1.0 entries and arbitrary floats
    # (exercises the ==1 mask), single grid step.
    B1 = 64
    ones_mask = jax.random.bernoulli(km1, 0.5, (B1, D_in))
    noise = jax.random.uniform(kx1, (B1, D_in), jnp.float32, -2.0, 2.0)
    x1 = jnp.where(ones_mask, jnp.float32(1.0), noise)
    out1 = jax.block_until_ready(inteligent_neighborhood(x1, w1, b1, w2, b2))
    ref1 = reference(x1, w1, b1, w2, b2)
    assert out1.shape == (B1, D_out)
    assert jnp.allclose(out1, ref1, atol=2e-5, rtol=1e-5), "mismatch vs reference (B=64)"

    # Case 2: batch not a multiple of the pack factor, tiny max_tile to force the
    # multi-step pipelined grid + padding path.
    B2 = 300
    x2 = jax.random.bernoulli(kx2, 0.5, (B2, D_in)).astype(jnp.float32)
    out2 = jax.block_until_ready(
        inteligent_neighborhood(x2, w1, b1, w2, b2, max_tile=2))
    ref2 = reference(x2, w1, b1, w2, b2)
    assert out2.shape == (B2, D_out)
    assert jnp.allclose(out2, ref2, atol=2e-5, rtol=1e-5), "mismatch vs reference (B=300)"

    print("KERNEL_OK")
</pallas_src>

<mosaic_0001>
module attributes {stable_mosaic.version = 11 : i64} {
  func.func @_mlp_packed_kernel(%arg0: i32, %arg1: memref<8x256xf32, #tpu.memory_space<vmem>>, %arg2: memref<256x512xf32, #tpu.memory_space<vmem>>, %arg3: memref<1x512xf32, #tpu.memory_space<vmem>>, %arg4: memref<512x128xf32, #tpu.memory_space<vmem>>, %arg5: memref<1x128xf32, #tpu.memory_space<vmem>>, %arg6: memref<8x128xf32, #tpu.memory_space<vmem>>) attributes {dimension_semantics = [#tpu.dimension_semantics<parallel>], iteration_bounds = array<i64: 1>, scalar_prefetch = 0 : i64, scratch_operands = 0 : i64, tpu.core_type = #tpu.core_type<tc>, window_params = [{transform_indices = @transform_0, window_bounds = array<i64: 8, 256>}, {pipeline_mode = #tpu.pipeline_mode<synchronous>, transform_indices = @transform_1, window_bounds = array<i64: 256, 512>}, {pipeline_mode = #tpu.pipeline_mode<synchronous>, transform_indices = @transform_2, window_bounds = array<i64: 1, 512>}, {pipeline_mode = #tpu.pipeline_mode<synchronous>, transform_indices = @transform_3, window_bounds = array<i64: 512, 128>}, {pipeline_mode = #tpu.pipeline_mode<synchronous>, transform_indices = @transform_4, window_bounds = array<i64: 1, 128>}, {transform_indices = @transform_5, window_bounds = array<i64: 8, 128>}]} {
    %c0 = arith.constant 0 : index
    %c0_0 = arith.constant 0 : index
    %0 = vector.load %arg1[%c0, %c0_0] : memref<8x256xf32, #tpu.memory_space<vmem>>, vector<8x256xf32>
    %cst = arith.constant 1.000000e+00 : f32
    %1 = vector.broadcast %cst : f32 to vector<8x256xf32>
    %2 = arith.cmpf oeq, %0, %1 : vector<8x256xf32>
    %cst_1 = arith.constant 0.000000e+00 : f32
    %3 = vector.broadcast %cst_1 : f32 to vector<8x256xf32>
    %4 = arith.select %2, %0, %3 : vector<8x256xi1>, vector<8x256xf32>
    %c0_2 = arith.constant 0 : index
    %c0_3 = arith.constant 0 : index
    %5 = vector.load %arg2[%c0_2, %c0_3] : memref<256x512xf32, #tpu.memory_space<vmem>>, vector<256x512xf32>
    %cst_4 = arith.constant dense<0.000000e+00> : vector<8x512xf32>
    %6 = tpu.matmul %4, %5, %cst_4 {dimension_numbers = #tpu.dot_dimension_numbers<[1], [0], [0], [1], [0, 0, 1, 1], [], []>, precision = #tpu.contract_precision<fp32>} : vector<8x256xf32>, vector<256x512xf32>, vector<8x512xf32> -> vector<8x512xf32>
    %c0_5 = arith.constant 0 : index
    %c0_6 = arith.constant 0 : index
    %7 = vector.load %arg3[%c0_5, %c0_6] : memref<1x512xf32, #tpu.memory_space<vmem>>, vector<1x512xf32>
    %8 = vector.broadcast %7 : vector<1x512xf32> to vector<8x512xf32>
    %9 = arith.addf %6, %8 : vector<8x512xf32>
    %cst_7 = arith.constant 0.000000e+00 : f32
    %10 = vector.broadcast %cst_7 : f32 to vector<8x512xf32>
    %11 = arith.maximumf %9, %10 : vector<8x512xf32>
    %c0_8 = arith.constant 0 : index
    %c0_9 = arith.constant 0 : index
    %12 = vector.load %arg4[%c0_8, %c0_9] : memref<512x128xf32, #tpu.memory_space<vmem>>, vector<512x128xf32>
    %cst_10 = arith.constant dense<0.000000e+00> : vector<8x128xf32>
    %13 = tpu.matmul %11, %12, %cst_10 {dimension_numbers = #tpu.dot_dimension_numbers<[1], [0], [0], [1], [0, 0, 1, 1], [], []>, precision = #tpu.contract_precision<fp32>} : vector<8x512xf32>, vector<512x128xf32>, vector<8x128xf32> -> vector<8x128xf32>
    %c0_11 = arith.constant 0 : index
    %c0_12 = arith.constant 0 : index
    %14 = vector.load %arg5[%c0_11, %c0_12] : memref<1x128xf32, #tpu.memory_space<vmem>>, vector<1x128xf32>
    %15 = vector.broadcast %14 : vector<1x128xf32> to vector<8x128xf32>
    %16 = arith.addf %13, %15 : vector<8x128xf32>
    %17 = arith.negf %16 : vector<8x128xf32>
    %18 = math.exp %17 : vector<8x128xf32>
    %cst_13 = arith.constant 1.000000e+00 : f32
    %19 = vector.broadcast %cst_13 : f32 to vector<8x128xf32>
    %20 = arith.addf %19, %18 : vector<8x128xf32>
    %21 = arith.divf %19, %20 : vector<8x128xf32>
    %c0_14 = arith.constant 0 : index
    %c0_15 = arith.constant 0 : index
    %22 = vector.load %arg6[%c0_14, %c0_15] : memref<8x128xf32, #tpu.memory_space<vmem>>, vector<8x128xf32>
    tpu.vector_store %arg6[%c0_14, %c0_15], %21 {strides = array<i32>} : memref<8x128xf32, #tpu.memory_space<vmem>>, vector<8x128xf32>,
    return
  }
  func.func @transform_0(%arg0: i32) -> (i32, i32) {
    %c0_i32 = arith.constant 0 : i32
    %c0_i32_0 = arith.constant 0 : i32
    return %arg0, %c0_i32 : i32, i32
  }
  func.func @transform_1(%arg0: i32) -> (i32, i32) {
    %c0_i32 = arith.constant 0 : i32
    %c0_i32_0 = arith.constant 0 : i32
    %c0_i32_1 = arith.constant 0 : i32
    return %c0_i32, %c0_i32_0 : i32, i32
  }
  func.func @transform_2(%arg0: i32) -> (i32, i32) {
    %c0_i32 = arith.constant 0 : i32
    %c0_i32_0 = arith.constant 0 : i32
    %c0_i32_1 = arith.constant 0 : i32
    return %c0_i32, %c0_i32_0 : i32, i32
  }
  func.func @transform_3(%arg0: i32) -> (i32, i32) {
    %c0_i32 = arith.constant 0 : i32
    %c0_i32_0 = arith.constant 0 : i32
    %c0_i32_1 = arith.constant 0 : i32
    return %c0_i32, %c0_i32_0 : i32, i32
  }
  func.func @transform_4(%arg0: i32) -> (i32, i32) {
    %c0_i32 = arith.constant 0 : i32
    %c0_i32_0 = arith.constant 0 : i32
    %c0_i32_1 = arith.constant 0 : i32
    return %c0_i32, %c0_i32_0 : i32, i32
  }
  func.func @transform_5(%arg0: i32) -> (i32, i32) {
    %c0_i32 = arith.constant 0 : i32
    %c0_i32_0 = arith.constant 0 : i32
    return %arg0, %c0_i32 : i32, i32
  }
}

</mosaic_0001>

<llo_original>
// kernel: tpu_custom_call.1
$region0: #{tpu_custom_call.1}
  #allocation0 [shape = 'u32[]', space=smem, size = 0x4, offset = 0x4, fixed_abs, tag = 'smem constant byte address 0x4 - core index']
  #allocation1 [shape = 'u32[144,128]{1,0:T(1,128)}', space=vmem, size = 0x12000, scoped, tag = 'internal scratch']
  %s0 = inlined_call_operand.hbm [shape: f32[8,256], index: 0, kind: input, shape index: {}]
  %s1 = inlined_call_operand.hbm [shape: f32[256,512], index: 1, kind: input, shape index: {}]
  %s2 = inlined_call_operand.hbm [shape: f32[1,512], index: 2, kind: input, shape index: {}]
  %s3 = inlined_call_operand.hbm [shape: f32[512,128], index: 3, kind: input, shape index: {}]
  %s4 = inlined_call_operand.vmem [shape: f32[1,128], index: 4, kind: input, shape index: {}]
  %s5 = inlined_call_operand.hbm [shape: f32[8,128], index: 5, kind: output, shape index: {}]
  %s6 = sld [smem:[#allocation0]]
  $region46: #{tpu_custom_call.1} parent=0
    _
  %s8 = ssub.s32 1, %s6
  %s9 = scalar_select 0, %s8, %s6
  $region1: #{tpu_custom_call.1} parent=0
    #allocation2 [shape = 'u8[8192]{0}', space=vmem, size = 0x2000, scoped, tag = 'input window, operand 0, single buffered']
    #allocation3 [shape = 's32[1]{0}', space=sflag, size = 0x4, scoped, tag = 'scoped memory for tpu_custom_call.1']
    #allocation4 [shape = 's32[1]{0}', space=sflag, size = 0x4, scoped, tag = 'scoped memory for tpu_custom_call.1']
    #allocation5 [shape = 'u8[524288]{0}', space=vmem, size = 0x80000, scoped, tag = 'input window, operand 1, single buffered']
    #allocation6 [shape = 's32[1]{0}', space=sflag, size = 0x4, scoped, tag = 'scoped memory for tpu_custom_call.1']
    #allocation7 [shape = 'u8[2048]{0}', space=vmem, size = 0x800, scoped, tag = 'input window, operand 2, single buffered']
    #allocation8 [shape = 'u8[262144]{0}', space=vmem, size = 0x40000, scoped, tag = 'input window, operand 3, single buffered']
    #allocation9 [shape = 's32[1]{0}', space=sflag, size = 0x4, scoped, tag = 'scoped memory for tpu_custom_call.1']
    #allocation10 [shape = 'u8[4096]{0}', space=vmem, size = 0x1000, scoped, tag = 'output window, operand 0, single buffered']
    %10 = vsyncpa [#allocation3], 0
    %11 = vsyncpa [#allocation6], 0
    %12 = vsyncpa [#allocation9], 0
    %13 = vsyncpa [#allocation4], 0
    // Predicated region
    $region2: #{tpu_custom_call.1} parent=1 // pred_check
      _
    $region3: #{tpu_custom_call.1} parent=1 // pred_check_branch
      %15 = sbr.rel (0) target = $region5
    $region4: #{tpu_custom_call.1} parent=1 // pred_region
      %s17 = ssub.s32 256, 256
      %18 = vsyncadd [#allocation3], %s17
      %s20 = sshll.u32 [#allocation2], 4
      %s21 = int_to_ptr.vmem [resolvable:$true] %s20
      %23 = dma.hbm_to_vmem [thread:$0]  %s0, 256, %s21, [#allocation3]
    $region5: #{tpu_custom_call.1} parent=1 // pred_fallthru
      _
    // Predicated region
    $region6: #{tpu_custom_call.1} parent=1 // pred_check
      _
    $region7: #{tpu_custom_call.1} parent=1 // pred_check_branch
      %25 = sbr.rel (0) target = $region9
    $region8: #{tpu_custom_call.1} parent=1 // pred_region
      %s27 = ssub.s32 16384, 16384
      %28 = vsyncadd [#allocation6], %s27
      %s29 = sshll.u32 [#allocation5], 4
      %s30 = int_to_ptr.vmem [resolvable:$true] %s29
      %35 = dma.hbm_to_vmem [thread:$0]  %s1, 16384, %s30, [#allocation6], 512, 512, 32
    $region9: #{tpu_custom_call.1} parent=1 // pred_fallthru
      _
    // Predicated region
    $region10: #{tpu_custom_call.1} parent=1 // pred_check
      _
    $region11: #{tpu_custom_call.1} parent=1 // pred_check_branch
      %37 = sbr.rel (0) target = $region13
    $region12: #{tpu_custom_call.1} parent=1 // pred_region
      %s39 = ssub.s32 64, 64
      %40 = vsyncadd [#allocation6], %s39
      %s42 = sshll.u32 [#allocation7], 4
      %s43 = int_to_ptr.vmem [resolvable:$true] %s42
      %45 = dma.hbm_to_vmem [thread:$0]  %s2, 64, %s43, [#allocation6]
    $region13: #{tpu_custom_call.1} parent=1 // pred_fallthru
      _
    // Predicated region
    $region14: #{tpu_custom_call.1} parent=1 // pred_check
      _
    $region15: #{tpu_custom_call.1} parent=1 // pred_check_branch
      %47 = sbr.rel (0) target = $region17
    $region16: #{tpu_custom_call.1} parent=1 // pred_region
      %s49 = ssub.s32 8192, 8192
      %50 = vsyncadd [#allocation9], %s49
      %s51 = sshll.u32 [#allocation8], 4
      %s52 = int_to_ptr.vmem [resolvable:$true] %s51
      %57 = dma.hbm_to_vmem [thread:$0]  %s3, 8192, %s52, [#allocation9], 128, 128, 8
    $region17: #{tpu_custom_call.1} parent=1 // pred_fallthru
      _
    // Predicated region
    $region18: #{tpu_custom_call.1} parent=1 // pred_check
      _
    $region19: #{tpu_custom_call.1} parent=1 // pred_check_branch
      %59 = sbr.rel (0) target = $region21
    $region20: #{tpu_custom_call.1} parent=1 // pred_region
      _
    $region21: #{tpu_custom_call.1} parent=1 // pred_fallthru
      _
    // Predicated region
    $region22: #{tpu_custom_call.1} parent=1 // pred_check
      _
    $region23: #{tpu_custom_call.1} parent=1 // pred_check_branch
      %61 = sbr.rel (0) target = $region25
    $region24: #{tpu_custom_call.1} parent=1 // pred_region
      %62 = dma.done [#allocation3], 256
    $region25: #{tpu_custom_call.1} parent=1 // pred_fallthru
      _
    // Predicated region
    $region26: #{tpu_custom_call.1} parent=1 // pred_check
      _
    $region27: #{tpu_custom_call.1} parent=1 // pred_check_branch
      %64 = sbr.rel (0) target = $region29
    $region28: #{tpu_custom_call.1} parent=1 // pred_region
      %65 = dma.done [#allocation6], 16384
    $region29: #{tpu_custom_call.1} parent=1 // pred_fallthru
      _
    // Predicated region
    $region30: #{tpu_custom_call.1} parent=1 // pred_check
      _
    $region31: #{tpu_custom_call.1} parent=1 // pred_check_branch
      %67 = sbr.rel (0) target = $region33
    $region32: #{tpu_custom_call.1} parent=1 // pred_region
      %68 = dma.done [#allocation6], 64
    $region33: #{tpu_custom_call.1} parent=1 // pred_fallthru
      _
    // Predicated region
    $region34: #{tpu_custom_call.1} parent=1 // pred_check
      _
    $region35: #{tpu_custom_call.1} parent=1 // pred_check_branch
      %70 = sbr.rel (0) target = $region37
    $region36: #{tpu_custom_call.1} parent=1 // pred_region
      %71 = dma.done [#allocation9], 8192
    $region37: #{tpu_custom_call.1} parent=1 // pred_fallthru
      _
    %v72 = vld [vmem:[#allocation2] sm:$0xff]
    %v73 = vld [vmem:[#allocation2 + $0x8] sm:$0xff]
    %vm74 = vcmp.eq.f32.partialorder %v72, 1.0
    %vm75 = vcmp.eq.f32.partialorder %v73, 1.0
    %v76 = vsel %vm74, %v72, 0.0
    %v77 = vsel %vm75, %v73, 0.0
    %v78 = vld [vmem:[#allocation5] sm:$0xff]
    %v79 = vld [vmem:[#allocation5 + $0x8] sm:$0xff]
    %v80 = vld [vmem:[#allocation5 + $0x10] sm:$0xff]
    %v81 = vld [vmem:[#allocation5 + $0x18] sm:$0xff]
    %v82 = vld [vmem:[#allocation5 + $0x20] sm:$0xff]
    %v83 = vld [vmem:[#allocation5 + $0x28] sm:$0xff]
    %v84 = vld [vmem:[#allocation5 + $0x30] sm:$0xff]
    %v85 = vld [vmem:[#allocation5 + $0x38] sm:$0xff]
    %v86 = vld [vmem:[#allocation5 + $0x40] sm:$0xff]
    %v87 = vld [vmem:[#allocation5 + $0x48] sm:$0xff]
    %v88 = vld [vmem:[#allocation5 + $0x50] sm:$0xff]
    %v89 = vld [vmem:[#allocation5 + $0x58] sm:$0xff]
    %v90 = vld [vmem:[#allocation5 + $0x60] sm:$0xff]
    %v91 = vld [vmem:[#allocation5 + $0x68] sm:$0xff]
    %v92 = vld [vmem:[#allocation5 + $0x70] sm:$0xff]
    %v93 = vld [vmem:[#allocation5 + $0x78] sm:$0xff]
    %v94 = vld [vmem:[#allocation5 + $0x80] sm:$0xff]
    %v95 = vld [vmem:[#allocation5 + $0x88] sm:$0xff]
    %v96 = vld [vmem:[#allocation5 + $0x90] sm:$0xff]
    %v97 = vld [vmem:[#allocation5 + $0x98] sm:$0xff]
    %v98 = vld [vmem:[#allocation5 + $0xa0] sm:$0xff]
    %v99 = vld [vmem:[#allocation5 + $0xa8] sm:$0xff]
    %v100 = vld [vmem:[#allocation5 + $0xb0] sm:$0xff]
    %v101 = vld [vmem:[#allocation5 + $0xb8] sm:$0xff]
    %v102 = vld [vmem:[#allocation5 + $0xc0] sm:$0xff]
    %v103 = vld [vmem:[#allocation5 + $0xc8] sm:$0xff]
    %v104 = vld [vmem:[#allocation5 + $0xd0] sm:$0xff]
    %v105 = vld [vmem:[#allocation5 + $0xd8] sm:$0xff]
    %v106 = vld [vmem:[#allocation5 + $0xe0] sm:$0xff]
    %v107 = vld [vmem:[#allocation5 + $0xe8] sm:$0xff]
    %v108 = vld [vmem:[#allocation5 + $0xf0] sm:$0xff]
    %v109 = vld [vmem:[#allocation5 + $0xf8] sm:$0xff]
    %v110 = vld [vmem:[#allocation5 + $0x100] sm:$0xff]
    %v111 = vld [vmem:[#allocation5 + $0x108] sm:$0xff]
    %v112 = vld [vmem:[#allocation5 + $0x110] sm:$0xff]
    %v113 = vld [vmem:[#allocation5 + $0x118] sm:$0xff]
    %v114 = vld [vmem:[#allocation5 + $0x120] sm:$0xff]
    %v115 = vld [vmem:[#allocation5 + $0x128] sm:$0xff]
    %v116 = vld [vmem:[#allocation5 + $0x130] sm:$0xff]
    %v117 = vld [vmem:[#allocation5 + $0x138] sm:$0xff]
    %v118 = vld [vmem:[#allocation5 + $0x140] sm:$0xff]
    %v119 = vld [vmem:[#allocation5 + $0x148] sm:$0xff]
    %v120 = vld [vmem:[#allocation5 + $0x150] sm:$0xff]
    %v121 = vld [vmem:[#allocation5 + $0x158] sm:$0xff]
    %v122 = vld [vmem:[#allocation5 + $0x160] sm:$0xff]
    %v123 = vld [vmem:[#allocation5 + $0x168] sm:$0xff]
    %v124 = vld [vmem:[#allocation5 + $0x170] sm:$0xff]
    %v125 = vld [vmem:[#allocation5 + $0x178] sm:$0xff]
    %v126 = vld [vmem:[#allocation5 + $0x180] sm:$0xff]
    %v127 = vld [vmem:[#allocation5 + $0x188] sm:$0xff]
    %v128 = vld [vmem:[#allocation5 + $0x190] sm:$0xff]
    %v129 = vld [vmem:[#allocation5 + $0x198] sm:$0xff]
    %v130 = vld [vmem:[#allocation5 + $0x1a0] sm:$0xff]
    %v131 = vld [vmem:[#allocation5 + $0x1a8] sm:$0xff]
    %v132 = vld [vmem:[#allocation5 + $0x1b0] sm:$0xff]
    %v133 = vld [vmem:[#allocation5 + $0x1b8] sm:$0xff]
    %v134 = vld [vmem:[#allocation5 + $0x1c0] sm:$0xff]
    %v135 = vld [vmem:[#allocation5 + $0x1c8] sm:$0xff]
    %v136 = vld [vmem:[#allocation5 + $0x1d0] sm:$0xff]
    %v137 = vld [vmem:[#allocation5 + $0x1d8] sm:$0xff]
    %v138 = vld [vmem:[#allocation5 + $0x1e0] sm:$0xff]
    %v139 = vld [vmem:[#allocation5 + $0x1e8] sm:$0xff]
    %v140 = vld [vmem:[#allocation5 + $0x1f0] sm:$0xff]
    %v141 = vld [vmem:[#allocation5 + $0x1f8] sm:$0xff]
    %v142 = vld [vmem:[#allocation5 + $0x200] sm:$0xff]
    %v143 = vld [vmem:[#allocation5 + $0x208] sm:$0xff]
    %v144 = vld [vmem:[#allocation5 + $0x210] sm:$0xff]
    %v145 = vld [vmem:[#allocation5 + $0x218] sm:$0xff]
    %v146 = vld [vmem:[#allocation5 + $0x220] sm:$0xff]
    %v147 = vld [vmem:[#allocation5 + $0x228] sm:$0xff]
    %v148 = vld [vmem:[#allocation5 + $0x230] sm:$0xff]
    %v149 = vld [vmem:[#allocation5 + $0x238] sm:$0xff]
    %v150 = vld [vmem:[#allocation5 + $0x240] sm:$0xff]
    %v151 = vld [vmem:[#allocation5 + $0x248] sm:$0xff]
    %v152 = vld [vmem:[#allocation5 + $0x250] sm:$0xff]
    %v153 = vld [vmem:[#allocation5 + $0x258] sm:$0xff]
    %v154 = vld [vmem:[#allocation5 + $0x260] sm:$0xff]
    %v155 = vld [vmem:[#allocation5 + $0x268] sm:$0xff]
    %v156 = vld [vmem:[#allocation5 + $0x270] sm:$0xff]
    %v157 = vld [vmem:[#allocation5 + $0x278] sm:$0xff]
    %v158 = vld [vmem:[#allocation5 + $0x280] sm:$0xff]
    %v159 = vld [vmem:[#allocation5 + $0x288] sm:$0xff]
    %v160 = vld [vmem:[#allocation5 + $0x290] sm:$0xff]
    %v161 = vld [vmem:[#allocation5 + $0x298] sm:$0xff]
    %v162 = vld [vmem:[#allocation5 + $0x2a0] sm:$0xff]
    %v163 = vld [vmem:[#allocation5 + $0x2a8] sm:$0xff]
    %v164 = vld [vmem:[#allocation5 + $0x2b0] sm:$0xff]
    %v165 = vld [vmem:[#allocation5 + $0x2b8] sm:$0xff]
    %v166 = vld [vmem:[#allocation5 + $0x2c0] sm:$0xff]
    %v167 = vld [vmem:[#allocation5 + $0x2c8] sm:$0xff]
    %v168 = vld [vmem:[#allocation5 + $0x2d0] sm:$0xff]
    %v169 = vld [vmem:[#allocation5 + $0x2d8] sm:$0xff]
    %v170 = vld [vmem:[#allocation5 + $0x2e0] sm:$0xff]
    %v171 = vld [vmem:[#allocation5 + $0x2e8] sm:$0xff]
    %v172 = vld [vmem:[#allocation5 + $0x2f0] sm:$0xff]
    %v173 = vld [vmem:[#allocation5 + $0x2f8] sm:$0xff]
    %v174 = vld [vmem:[#allocation5 + $0x300] sm:$0xff]
    %v175 = vld [vmem:[#allocation5 + $0x308] sm:$0xff]
    %v176 = vld [vmem:[#allocation5 + $0x310] sm:$0xff]
    %v177 = vld [vmem:[#allocation5 + $0x318] sm:$0xff]
    %v178 = vld [vmem:[#allocation5 + $0x320] sm:$0xff]
    %v179 = vld [vmem:[#allocation5 + $0x328] sm:$0xff]
    %v180 = vld [vmem:[#allocation5 + $0x330] sm:$0xff]
    %v181 = vld [vmem:[#allocation5 + $0x338] sm:$0xff]
    %v182 = vld [vmem:[#allocation5 + $0x340] sm:$0xff]
    %v183 = vld [vmem:[#allocation5 + $0x348] sm:$0xff]
    %v184 = vld [vmem:[#allocation5 + $0x350] sm:$0xff]
    %v185 = vld [vmem:[#allocation5 + $0x358] sm:$0xff]
    %v186 = vld [vmem:[#allocation5 + $0x360] sm:$0xff]
    %v187 = vld [vmem:[#allocation5 + $0x368] sm:$0xff]
    %v188 = vld [vmem:[#allocation5 + $0x370] sm:$0xff]
    %v189 = vld [vmem:[#allocation5 + $0x378] sm:$0xff]
    %v190 = vld [vmem:[#allocation5 + $0x380] sm:$0xff]
    %v191 = vld [vmem:[#allocation5 + $0x388] sm:$0xff]
    %v192 = vld [vmem:[#allocation5 + $0x390] sm:$0xff]
    %v193 = vld [vmem:[#allocation5 + $0x398] sm:$0xff]
    %v194 = vld [vmem:[#allocation5 + $0x3a0] sm:$0xff]
    %v195 = vld [vmem:[#allocation5 + $0x3a8] sm:$0xff]
    %v196 = vld [vmem:[#allocation5 + $0x3b0] sm:$0xff]
    %v197 = vld [vmem:[#allocation5 + $0x3b8] sm:$0xff]
    %v198 = vld [vmem:[#allocation5 + $0x3c0] sm:$0xff]
    %v199 = vld [vmem:[#allocation5 + $0x3c8] sm:$0xff]
    %v200 = vld [vmem:[#allocation5 + $0x3d0] sm:$0xff]
    %v201 = vld [vmem:[#allocation5 + $0x3d8] sm:$0xff]
    %v202 = vld [vmem:[#allocation5 + $0x3e0] sm:$0xff]
    %v203 = vld [vmem:[#allocation5 + $0x3e8] sm:$0xff]
    %v204 = vld [vmem:[#allocation5 + $0x3f0] sm:$0xff]
    %v205 = vld [vmem:[#allocation5 + $0x3f8] sm:$0xff]
    %v206 = vld [vmem:[#allocation7] sm:$0xf]
    %v208 = vlaneseq
    %v209 = vshrl.u32 %v208, 7
    %v210 = vsub.s32 0, %v209
    %v211 = vrot.slane %v206, %v210
    %v212 = vlaneseq
    %v213 = vshrl.u32 %v212, 7
    %v214 = vsub.s32 1, %v213
    %v215 = vrot.slane %v206, %v214
    %v216 = vlaneseq
    %v217 = vshrl.u32 %v216, 7
    %v218 = vsub.s32 2, %v217
    %v219 = vrot.slane %v206, %v218
    %v220 = vlaneseq
    %v221 = vshrl.u32 %v220, 7
    %v222 = vsub.s32 3, %v221
    %v223 = vrot.slane %v206, %v222
    %v228 = vand.u32 %v139, 4294901760
    %229 = vmatprep.subr.mxu0 %v228
    %v230 = vand.u32 %v138, 4294901760
    %231 = vmatpush1.msra.mxu0 %v230
    %v232 = vand.u32 %v135, 4294901760
    %233 = vmatprep.subr.mxu0 %v232
    %v234 = vand.u32 %v134, 4294901760
    %235 = vmatpush1.msra.mxu0 %v234
    %v236 = vand.u32 %v131, 4294901760
    %237 = vmatprep.subr.mxu0 %v236
    %v238 = vand.u32 %v130, 4294901760
    %239 = vmatpush1.msra.mxu0 %v238
    %v240 = vand.u32 %v127, 4294901760
    %241 = vmatprep.subr.mxu0 %v240
    %v242 = vand.u32 %v126, 4294901760
    %243 = vmatpush1.msra.mxu0 %v242
    %v244 = vand.u32 %v123, 4294901760
    %245 = vmatprep.subr.mxu0 %v244
    %v246 = vand.u32 %v122, 4294901760
    %247 = vmatpush1.msra.mxu0 %v246
    %v248 = vand.u32 %v119, 4294901760
    %249 = vmatprep.subr.mxu0 %v248
    %v250 = vand.u32 %v118, 4294901760
    %251 = vmatpush1.msra.mxu0 %v250
    %v252 = vand.u32 %v115, 4294901760
    %253 = vmatprep.subr.mxu0 %v252
    %v254 = vand.u32 %v114, 4294901760
    %255 = vmatpush1.msra.mxu0 %v254
    %v256 = vand.u32 %v111, 4294901760
    %257 = vmatprep.subr.mxu0 %v256
    %v258 = vand.u32 %v110, 4294901760
    %259 = vmatpush1.msra.mxu0 %v258
    %v260 = vand.u32 %v107, 4294901760
    %261 = vmatprep.subr.mxu0 %v260
    %v262 = vand.u32 %v106, 4294901760
    %263 = vmatpush1.msra.mxu0 %v262
    %v264 = vand.u32 %v103, 4294901760
    %265 = vmatprep.subr.mxu0 %v264
    %v266 = vand.u32 %v102, 4294901760
    %267 = vmatpush1.msra.mxu0 %v266
    %v268 = vand.u32 %v99, 4294901760
    %269 = vmatprep.subr.mxu0 %v268
    %v270 = vand.u32 %v98, 4294901760
    %271 = vmatpush1.msra.mxu0 %v270
    %v272 = vand.u32 %v95, 4294901760
    %273 = vmatprep.subr.mxu0 %v272
    %v274 = vand.u32 %v94, 4294901760
    %275 = vmatpush1.msra.mxu0 %v274
    %v276 = vand.u32 %v91, 4294901760
    %277 = vmatprep.subr.mxu0 %v276
    %v278 = vand.u32 %v90, 4294901760
    %279 = vmatpush1.msra.mxu0 %v278
    %v280 = vand.u32 %v87, 4294901760
    %281 = vmatprep.subr.mxu0 %v280
    %v282 = vand.u32 %v86, 4294901760
    %283 = vmatpush1.msra.mxu0 %v282
    %v284 = vand.u32 %v83, 4294901760
    %285 = vmatprep.subr.mxu0 %v284
    %v286 = vand.u32 %v82, 4294901760
    %287 = vmatpush1.msra.mxu0 %v286
    %v288 = vand.u32 %v79, 4294901760
    %289 = vmatprep.subr.mxu0 %v288
    %v290 = vand.u32 %v78, 4294901760
    %291 = vmatpush1.msra.mxu0 %v290
    %v292 = vand.u32 %v203, 4294901760
    %293 = vmatprep.subr.mxu0 %v292
    %v294 = vand.u32 %v202, 4294901760
    %295 = vmatpush2.msra.mxu0 %v294
    %v296 = vand.u32 %v199, 4294901760
    %297 = vmatprep.subr.mxu0 %v296
    %v298 = vand.u32 %v198, 4294901760
    %299 = vmatpush2.msra.mxu0 %v298
    %v300 = vand.u32 %v195, 4294901760
    %301 = vmatprep.subr.mxu0 %v300
    %v302 = vand.u32 %v194, 4294901760
    %303 = vmatpush2.msra.mxu0 %v302
    %v304 = vand.u32 %v191, 4294901760
    %305 = vmatprep.subr.mxu0 %v304
    %v306 = vand.u32 %v190, 4294901760
    %307 = vmatpush2.msra.mxu0 %v306
    %v308 = vand.u32 %v187, 4294901760
    %309 = vmatprep.subr.mxu0 %v308
    %v310 = vand.u32 %v186, 4294901760
    %311 = vmatpush2.msra.mxu0 %v310
    %v312 = vand.u32 %v183, 4294901760
    %313 = vmatprep.subr.mxu0 %v312
    %v314 = vand.u32 %v182, 4294901760
    %315 = vmatpush2.msra.mxu0 %v314
    %v316 = vand.u32 %v179, 4294901760
    %317 = vmatprep.subr.mxu0 %v316
    %v318 = vand.u32 %v178, 4294901760
    %319 = vmatpush2.msra.mxu0 %v318
    %v320 = vand.u32 %v175, 4294901760
    %321 = vmatprep.subr.mxu0 %v320
    %v322 = vand.u32 %v174, 4294901760
    %323 = vmatpush2.msra.mxu0 %v322
    %v324 = vand.u32 %v171, 4294901760
    %325 = vmatprep.subr.mxu0 %v324
    %v326 = vand.u32 %v170, 4294901760
    %327 = vmatpush2.msra.mxu0 %v326
    %v328 = vand.u32 %v167, 4294901760
    %329 = vmatprep.subr.mxu0 %v328
    %v330 = vand.u32 %v166, 4294901760
    %331 = vmatpush2.msra.mxu0 %v330
    %v332 = vand.u32 %v163, 4294901760
    %333 = vmatprep.subr.mxu0 %v332
    %v334 = vand.u32 %v162, 4294901760
    %335 = vmatpush2.msra.mxu0 %v334
    %v336 = vand.u32 %v159, 4294901760
    %337 = vmatprep.subr.mxu0 %v336
    %v338 = vand.u32 %v158, 4294901760
    %339 = vmatpush2.msra.mxu0 %v338
    %v340 = vand.u32 %v155, 4294901760
    %341 = vmatprep.subr.mxu0 %v340
    %v342 = vand.u32 %v154, 4294901760
    %343 = vmatpush2.msra.mxu0 %v342
    %v344 = vand.u32 %v151, 4294901760
    %345 = vmatprep.subr.mxu0 %v344
    %v346 = vand.u32 %v150, 4294901760
    %347 = vmatpush2.msra.mxu0 %v346
    %v348 = vand.u32 %v147, 4294901760
    %349 = vmatprep.subr.mxu0 %v348
    %v350 = vand.u32 %v146, 4294901760
    %351 = vmatpush2.msra.mxu0 %v350
    %v352 = vand.u32 %v143, 4294901760
    %353 = vmatprep.subr.mxu0 %v352
    %v354 = vand.u32 %v142, 4294901760
    %355 = vmatpush2.msra.mxu0 %v354
    %v356 = vand.u32 %v77, 4294901760
    %v357 = vsub.f32 %v77, %v356
    %v358 = vand.u32 %v357, 4294901760
    %v359 = vsub.f32 %v357, %v358
    %v360 = vand.u32 %v359, 4294901760
    %361 = vmatprep.mubr.f32.mxu0 %v360
    %v362 = vand.u32 %v76, 4294901760
    %v363 = vsub.f32 %v76, %v362
    %v364 = vand.u32 %v363, 4294901760
    %v365 = vsub.f32 %v363, %v364
    %v366 = vand.u32 %v365, 4294901760
    %367 = vmatmul.mubr.f32.gmra.mxu0 %v366
    %v368 = vpop.f32.mrf.mxu0
    %v369 = vadd.f32 %v211, %v368
    %v370 = vpop.f32.mrf.mxu0
    %v371 = vadd.f32 %v215, %v370
    %372 = vdwg.mxu0
    %v373 = vand.u32 %v139, 4294901760
    %v374 = vsub.f32 %v139, %v373
    %v375 = vand.u32 %v374, 4294901760
    %v376 = vsub.f32 %v374, %v375
    %v377 = vand.u32 %v376, 4294901760
    %378 = vmatprep.subr.mxu0 %v377
    %v379 = vand.u32 %v138, 4294901760
    %v380 = vsub.f32 %v138, %v379
    %v381 = vand.u32 %v380, 4294901760
    %v382 = vsub.f32 %v380, %v381
    %v383 = vand.u32 %v382, 4294901760
    %384 = vmatpush1.msra.mxu0 %v383
    %v385 = vand.u32 %v135, 4294901760
    %v386 = vsub.f32 %v135, %v385
    %v387 = vand.u32 %v386, 4294901760
    %v388 = vsub.f32 %v386, %v387
    %v389 = vand.u32 %v388, 4294901760
    %390 = vmatprep.subr.mxu0 %v389
    %v391 = vand.u32 %v134, 4294901760
    %v392 = vsub.f32 %v134, %v391
    %v393 = vand.u32 %v392, 4294901760
    %v394 = vsub.f32 %v392, %v393
    %v395 = vand.u32 %v394, 4294901760
    %396 = vmatpush1.msra.mxu0 %v395
    %v397 = vand.u32 %v131, 4294901760
    %v398 = vsub.f32 %v131, %v397
    %v399 = vand.u32 %v398, 4294901760
    %v400 = vsub.f32 %v398, %v399
    %v401 = vand.u32 %v400, 4294901760
    %402 = vmatprep.subr.mxu0 %v401
    %v403 = vand.u32 %v130, 4294901760
    %v404 = vsub.f32 %v130, %v403
    %v405 = vand.u32 %v404, 4294901760
    %v406 = vsub.f32 %v404, %v405
    %v407 = vand.u32 %v406, 4294901760
    %408 = vmatpush1.msra.mxu0 %v407
    %v409 = vand.u32 %v127, 4294901760
    %v410 = vsub.f32 %v127, %v409
    %v411 = vand.u32 %v410, 4294901760
    %v412 = vsub.f32 %v410, %v411
    %v413 = vand.u32 %v412, 4294901760
    %414 = vmatprep.subr.mxu0 %v413
    %v415 = vand.u32 %v126, 4294901760
    %v416 = vsub.f32 %v126, %v415
    %v417 = vand.u32 %v416, 4294901760
    %v418 = vsub.f32 %v416, %v417
    %v419 = vand.u32 %v418, 4294901760
    %420 = vmatpush1.msra.mxu0 %v419
    %v421 = vand.u32 %v123, 4294901760
    %v422 = vsub.f32 %v123, %v421
    %v423 = vand.u32 %v422, 4294901760
    %v424 = vsub.f32 %v422, %v423
    %v425 = vand.u32 %v424, 4294901760
    %426 = vmatprep.subr.mxu0 %v425
    %v427 = vand.u32 %v122, 4294901760
    %v428 = vsub.f32 %v122, %v427
    %v429 = vand.u32 %v428, 4294901760
    %v430 = vsub.f32 %v428, %v429
    %v431 = vand.u32 %v430, 4294901760
    %432 = vmatpush1.msra.mxu0 %v431
    %v433 = vand.u32 %v119, 4294901760
    %v434 = vsub.f32 %v119, %v433
    %v435 = vand.u32 %v434, 4294901760
    %v436 = vsub.f32 %v434, %v435
    %v437 = vand.u32 %v436, 4294901760
    %438 = vmatprep.subr.mxu0 %v437
    %v439 = vand.u32 %v118, 4294901760
    %v440 = vsub.f32 %v118, %v439
    %v441 = vand.u32 %v440, 4294901760
    %v442 = vsub.f32 %v440, %v441
    %v443 = vand.u32 %v442, 4294901760
    %444 = vmatpush1.msra.mxu0 %v443
    %v445 = vand.u32 %v115, 4294901760
    %v446 = vsub.f32 %v115, %v445
    %v447 = vand.u32 %v446, 4294901760
    %v448 = vsub.f32 %v446, %v447
    %v449 = vand.u32 %v448, 4294901760
    %450 = vmatprep.subr.mxu0 %v449
    %v451 = vand.u32 %v114, 4294901760
    %v452 = vsub.f32 %v114, %v451
    %v453 = vand.u32 %v452, 4294901760
    %v454 = vsub.f32 %v452, %v453
    %v455 = vand.u32 %v454, 4294901760
    %456 = vmatpush1.msra.mxu0 %v455
    %v457 = vand.u32 %v111, 4294901760
    %v458 = vsub.f32 %v111, %v457
    %v459 = vand.u32 %v458, 4294901760
    %v460 = vsub.f32 %v458, %v459
    %v461 = vand.u32 %v460, 4294901760
    %462 = vmatprep.subr.mxu0 %v461
    %v463 = vand.u32 %v110, 4294901760
    %v464 = vsub.f32 %v110, %v463
    %v465 = vand.u32 %v464, 4294901760
    %v466 = vsub.f32 %v464, %v465
    %v467 = vand.u32 %v466, 4294901760
    %468 = vmatpush1.msra.mxu0 %v467
    %v469 = vand.u32 %v107, 4294901760
    %v470 = vsub.f32 %v107, %v469
    %v471 = vand.u32 %v470, 4294901760
    %v472 = vsub.f32 %v470, %v471
    %v473 = vand.u32 %v472, 4294901760
    %474 = vmatprep.subr.mxu0 %v473
    %v475 = vand.u32 %v106, 4294901760
    %v476 = vsub.f32 %v106, %v475
    %v477 = vand.u32 %v476, 4294901760
    %v478 = vsub.f32 %v476, %v477
    %v479 = vand.u32 %v478, 4294901760
    %480 = vmatpush1.msra.mxu0 %v479
    %v481 = vand.u32 %v103, 4294901760
    %v482 = vsub.f32 %v103, %v481
    %v483 = vand.u32 %v482, 4294901760
    %v484 = vsub.f32 %v482, %v483
    %v485 = vand.u32 %v484, 4294901760
    %486 = vmatprep.subr.mxu0 %v485
    %v487 = vand.u32 %v102, 4294901760
    %v488 = vsub.f32 %v102, %v487
    %v489 = vand.u32 %v488, 4294901760
    %v490 = vsub.f32 %v488, %v489
    %v491 = vand.u32 %v490, 4294901760
    %492 = vmatpush1.msra.mxu0 %v491
    %v493 = vand.u32 %v99, 4294901760
    %v494 = vsub.f32 %v99, %v493
    %v495 = vand.u32 %v494, 4294901760
    %v496 = vsub.f32 %v494, %v495
    %v497 = vand.u32 %v496, 4294901760
    %498 = vmatprep.subr.mxu0 %v497
    %v499 = vand.u32 %v98, 4294901760
    %v500 = vsub.f32 %v98, %v499
    %v501 = vand.u32 %v500, 4294901760
    %v502 = vsub.f32 %v500, %v501
    %v503 = vand.u32 %v502, 4294901760
    %504 = vmatpush1.msra.mxu0 %v503
    %v505 = vand.u32 %v95, 4294901760
    %v506 = vsub.f32 %v95, %v505
    %v507 = vand.u32 %v506, 4294901760
    %v508 = vsub.f32 %v506, %v507
    %v509 = vand.u32 %v508, 4294901760
    %510 = vmatprep.subr.mxu0 %v509
    %v511 = vand.u32 %v94, 4294901760
    %v512 = vsub.f32 %v94, %v511
    %v513 = vand.u32 %v512, 4294901760
    %v514 = vsub.f32 %v512, %v513
    %v515 = vand.u32 %v514, 4294901760
    %516 = vmatpush1.msra.mxu0 %v515
    %v517 = vand.u32 %v91, 4294901760
    %v518 = vsub.f32 %v91, %v517
    %v519 = vand.u32 %v518, 4294901760
    %v520 = vsub.f32 %v518, %v519
    %v521 = vand.u32 %v520, 4294901760
    %522 = vmatprep.subr.mxu0 %v521
    %v523 = vand.u32 %v90, 4294901760
    %v524 = vsub.f32 %v90, %v523
    %v525 = vand.u32 %v524, 4294901760
    %v526 = vsub.f32 %v524, %v525
    %v527 = vand.u32 %v526, 4294901760
    %528 = vmatpush1.msra.mxu0 %v527
    %v529 = vand.u32 %v87, 4294901760
    %v530 = vsub.f32 %v87, %v529
    %v531 = vand.u32 %v530, 4294901760
    %v532 = vsub.f32 %v530, %v531
    %v533 = vand.u32 %v532, 4294901760
    %534 = vmatprep.subr.mxu0 %v533
    %v535 = vand.u32 %v86, 4294901760
    %v536 = vsub.f32 %v86, %v535
    %v537 = vand.u32 %v536, 4294901760
    %v538 = vsub.f32 %v536, %v537
    %v539 = vand.u32 %v538, 4294901760
    %540 = vmatpush1.msra.mxu0 %v539
    %v541 = vand.u32 %v83, 4294901760
    %v542 = vsub.f32 %v83, %v541
    %v543 = vand.u32 %v542, 4294901760
    %v544 = vsub.f32 %v542, %v543
    %v545 = vand.u32 %v544, 4294901760
    %546 = vmatprep.subr.mxu0 %v545
    %v547 = vand.u32 %v82, 4294901760
    %v548 = vsub.f32 %v82, %v547
    %v549 = vand.u32 %v548, 4294901760
    %v550 = vsub.f32 %v548, %v549
    %v551 = vand.u32 %v550, 4294901760
    %552 = vmatpush1.msra.mxu0 %v551
    %v553 = vand.u32 %v79, 4294901760
    %v554 = vsub.f32 %v79, %v553
    %v555 = vand.u32 %v554, 4294901760
    %v556 = vsub.f32 %v554, %v555
    %v557 = vand.u32 %v556, 4294901760
    %558 = vmatprep.subr.mxu0 %v557
    %v559 = vand.u32 %v78, 4294901760
    %v560 = vsub.f32 %v78, %v559
    %v561 = vand.u32 %v560, 4294901760
    %v562 = vsub.f32 %v560, %v561
    %v563 = vand.u32 %v562, 4294901760
    %564 = vmatpush1.msra.mxu0 %v563
    %v565 = vand.u32 %v203, 4294901760
    %v566 = vsub.f32 %v203, %v565
    %v567 = vand.u32 %v566, 4294901760
    %v568 = vsub.f32 %v566, %v567
    %v569 = vand.u32 %v568, 4294901760
    %570 = vmatprep.subr.mxu0 %v569
    %v571 = vand.u32 %v202, 4294901760
    %v572 = vsub.f32 %v202, %v571
    %v573 = vand.u32 %v572, 4294901760
    %v574 = vsub.f32 %v572, %v573
    %v575 = vand.u32 %v574, 4294901760
    %576 = vmatpush2.msra.mxu0 %v575
    %v577 = vand.u32 %v199, 4294901760
    %v578 = vsub.f32 %v199, %v577
    %v579 = vand.u32 %v578, 4294901760
    %v580 = vsub.f32 %v578, %v579
    %v581 = vand.u32 %v580, 4294901760
    %582 = vmatprep.subr.mxu0 %v581
    %v583 = vand.u32 %v198, 4294901760
    %v584 = vsub.f32 %v198, %v583
    %v585 = vand.u32 %v584, 4294901760
    %v586 = vsub.f32 %v584, %v585
    %v587 = vand.u32 %v586, 4294901760
    %588 = vmatpush2.msra.mxu0 %v587
    %v589 = vand.u32 %v195, 4294901760
    %v590 = vsub.f32 %v195, %v589
    %v591 = vand.u32 %v590, 4294901760
    %v592 = vsub.f32 %v590, %v591
    %v593 = vand.u32 %v592, 4294901760
    %594 = vmatprep.subr.mxu0 %v593
    %v595 = vand.u32 %v194, 4294901760
    %v596 = vsub.f32 %v194, %v595
    %v597 = vand.u32 %v596, 4294901760
    %v598 = vsub.f32 %v596, %v597
    %v599 = vand.u32 %v598, 4294901760
    %600 = vmatpush2.msra.mxu0 %v599
    %v601 = vand.u32 %v191, 4294901760
    %v602 = vsub.f32 %v191, %v601
    %v603 = vand.u32 %v602, 4294901760
    %v604 = vsub.f32 %v602, %v603
    %v605 = vand.u32 %v604, 4294901760
    %606 = vmatprep.subr.mxu0 %v605
    %v607 = vand.u32 %v190, 4294901760
    %v608 = vsub.f32 %v190, %v607
    %v609 = vand.u32 %v608, 4294901760
    %v610 = vsub.f32 %v608, %v609
    %v611 = vand.u32 %v610, 4294901760
    %612 = vmatpush2.msra.mxu0 %v611
    %v613 = vand.u32 %v187, 4294901760
    %v614 = vsub.f32 %v187, %v613
    %v615 = vand.u32 %v614, 4294901760
    %v616 = vsub.f32 %v614, %v615
    %v617 = vand.u32 %v616, 4294901760
    %618 = vmatprep.subr.mxu0 %v617
    %v619 = vand.u32 %v186, 4294901760
    %v620 = vsub.f32 %v186, %v619
    %v621 = vand.u32 %v620, 4294901760
    %v622 = vsub.f32 %v620, %v621
    %v623 = vand.u32 %v622, 4294901760
    %624 = vmatpush2.msra.mxu0 %v623
    %v625 = vand.u32 %v183, 4294901760
    %v626 = vsub.f32 %v183, %v625
    %v627 = vand.u32 %v626, 4294901760
    %v628 = vsub.f32 %v626, %v627
    %v629 = vand.u32 %v628, 4294901760
    %630 = vmatprep.subr.mxu0 %v629
    %v631 = vand.u32 %v182, 4294901760
    %v632 = vsub.f32 %v182, %v631
    %v633 = vand.u32 %v632, 4294901760
    %v634 = vsub.f32 %v632, %v633
    %v635 = vand.u32 %v634, 4294901760
    %636 = vmatpush2.msra.mxu0 %v635
    %v637 = vand.u32 %v179, 4294901760
    %v638 = vsub.f32 %v179, %v637
    %v639 = vand.u32 %v638, 4294901760
    %v640 = vsub.f32 %v638, %v639
    %v641 = vand.u32 %v640, 4294901760
    %642 = vmatprep.subr.mxu0 %v641
    %v643 = vand.u32 %v178, 4294901760
    %v644 = vsub.f32 %v178, %v643
    %v645 = vand.u32 %v644, 4294901760
    %v646 = vsub.f32 %v644, %v645
    %v647 = vand.u32 %v646, 4294901760
    %648 = vmatpush2.msra.mxu0 %v647
    %v649 = vand.u32 %v175, 4294901760
    %v650 = vsub.f32 %v175, %v649
    %v651 = vand.u32 %v650, 4294901760
    %v652 = vsub.f32 %v650, %v651
    %v653 = vand.u32 %v652, 4294901760
    %654 = vmatprep.subr.mxu0 %v653
    %v655 = vand.u32 %v174, 4294901760
    %v656 = vsub.f32 %v174, %v655
    %v657 = vand.u32 %v656, 4294901760
    %v658 = vsub.f32 %v656, %v657
    %v659 = vand.u32 %v658, 4294901760
    %660 = vmatpush2.msra.mxu0 %v659
    %v661 = vand.u32 %v171, 4294901760
    %v662 = vsub.f32 %v171, %v661
    %v663 = vand.u32 %v662, 4294901760
    %v664 = vsub.f32 %v662, %v663
    %v665 = vand.u32 %v664, 4294901760
    %666 = vmatprep.subr.mxu0 %v665
    %v667 = vand.u32 %v170, 4294901760
    %v668 = vsub.f32 %v170, %v667
    %v669 = vand.u32 %v668, 4294901760
    %v670 = vsub.f32 %v668, %v669
    %v671 = vand.u32 %v670, 4294901760
    %672 = vmatpush2.msra.mxu0 %v671
    %v673 = vand.u32 %v167, 4294901760
    %v674 = vsub.f32 %v167, %v673
    %v675 = vand.u32 %v674, 4294901760
    %v676 = vsub.f32 %v674, %v675
    %v677 = vand.u32 %v676, 4294901760
    %678 = vmatprep.subr.mxu0 %v677
    %v679 = vand.u32 %v166, 4294901760
    %v680 = vsub.f32 %v166, %v679
    %v681 = vand.u32 %v680, 4294901760
    %v682 = vsub.f32 %v680, %v681
    %v683 = vand.u32 %v682, 4294901760
    %684 = vmatpush2.msra.mxu0 %v683
    %v685 = vand.u32 %v163, 4294901760
    %v686 = vsub.f32 %v163, %v685
    %v687 = vand.u32 %v686, 4294901760
    %v688 = vsub.f32 %v686, %v687
    %v689 = vand.u32 %v688, 4294901760
    %690 = vmatprep.subr.mxu0 %v689
    %v691 = vand.u32 %v162, 4294901760
    %v692 = vsub.f32 %v162, %v691
    %v693 = vand.u32 %v692, 4294901760
    %v694 = vsub.f32 %v692, %v693
    %v695 = vand.u32 %v694, 4294901760
    %696 = vmatpush2.msra.mxu0 %v695
    %v697 = vand.u32 %v159, 4294901760
    %v698 = vsub.f32 %v159, %v697
    %v699 = vand.u32 %v698, 4294901760
    %v700 = vsub.f32 %v698, %v699
    %v701 = vand.u32 %v700, 4294901760
    %702 = vmatprep.subr.mxu0 %v701
    %v703 = vand.u32 %v158, 4294901760
    %v704 = vsub.f32 %v158, %v703
    %v705 = vand.u32 %v704, 4294901760
    %v706 = vsub.f32 %v704, %v705
    %v707 = vand.u32 %v706, 4294901760
    %708 = vmatpush2.msra.mxu0 %v707
    %v709 = vand.u32 %v155, 4294901760
    %v710 = vsub.f32 %v155, %v709
    %v711 = vand.u32 %v710, 4294901760
    %v712 = vsub.f32 %v710, %v711
    %v713 = vand.u32 %v712, 4294901760
    %714 = vmatprep.subr.mxu0 %v713
    %v715 = vand.u32 %v154, 4294901760
    %v716 = vsub.f32 %v154, %v715
    %v717 = vand.u32 %v716, 4294901760
    %v718 = vsub.f32 %v716, %v717
    %v719 = vand.u32 %v718, 4294901760
    %720 = vmatpush2.msra.mxu0 %v719
    %v721 = vand.u32 %v151, 4294901760
    %v722 = vsub.f32 %v151, %v721
    %v723 = vand.u32 %v722, 4294901760
    %v724 = vsub.f32 %v722, %v723
    %v725 = vand.u32 %v724, 4294901760
    %726 = vmatprep.subr.mxu0 %v725
    %v727 = vand.u32 %v150, 4294901760
    %v728 = vsub.f32 %v150, %v727
    %v729 = vand.u32 %v728, 4294901760
    %v730 = vsub.f32 %v728, %v729
    %v731 = vand.u32 %v730, 4294901760
    %732 = vmatpush2.msra.mxu0 %v731
    %v733 = vand.u32 %v147, 4294901760
    %v734 = vsub.f32 %v147, %v733
    %v735 = vand.u32 %v734, 4294901760
    %v736 = vsub.f32 %v734, %v735
    %v737 = vand.u32 %v736, 4294901760
    %738 = vmatprep.subr.mxu0 %v737
    %v739 = vand.u32 %v146, 4294901760
    %v740 = vsub.f32 %v146, %v739
    %v741 = vand.u32 %v740, 4294901760
    %v742 = vsub.f32 %v740, %v741
    %v743 = vand.u32 %v742, 4294901760
    %744 = vmatpush2.msra.mxu0 %v743
    %v745 = vand.u32 %v143, 4294901760
    %v746 = vsub.f32 %v143, %v745
    %v747 = vand.u32 %v746, 4294901760
    %v748 = vsub.f32 %v746, %v747
    %v749 = vand.u32 %v748, 4294901760
    %750 = vmatprep.subr.mxu0 %v749
    %v751 = vand.u32 %v142, 4294901760
    %v752 = vsub.f32 %v142, %v751
    %v753 = vand.u32 %v752, 4294901760
    %v754 = vsub.f32 %v752, %v753
    %v755 = vand.u32 %v754, 4294901760
    %756 = vmatpush2.msra.mxu0 %v755
    %v757 = vand.u32 %v77, 4294901760
    %758 = vmatprep.mubr.f32.mxu0 %v757
    %v759 = vand.u32 %v76, 4294901760
    %760 = vmatmul.mubr.f32.gmra.mxu0 %v759
    %v761 = vpop.f32.mrf.mxu0
    %v762 = vadd.f32 %v369, %v761
    %v763 = vpop.f32.mrf.mxu0
    %v764 = vadd.f32 %v371, %v763
    %765 = vdwg.mxu0
    %v766 = vand.u32 %v139, 4294901760
    %v767 = vsub.f32 %v139, %v766
    %768 = vmatprep.subr.mxu0 %v767
    %v769 = vand.u32 %v138, 4294901760
    %v770 = vsub.f32 %v138, %v769
    %771 = vmatpush1.msra.mxu0 %v770
    %v772 = vand.u32 %v135, 4294901760
    %v773 = vsub.f32 %v135, %v772
    %774 = vmatprep.subr.mxu0 %v773
    %v775 = vand.u32 %v134, 4294901760
    %v776 = vsub.f32 %v134, %v775
    %777 = vmatpush1.msra.mxu0 %v776
    %v778 = vand.u32 %v131, 4294901760
    %v779 = vsub.f32 %v131, %v778
    %780 = vmatprep.subr.mxu0 %v779
    %v781 = vand.u32 %v130, 4294901760
    %v782 = vsub.f32 %v130, %v781
    %783 = vmatpush1.msra.mxu0 %v782
    %v784 = vand.u32 %v127, 4294901760
    %v785 = vsub.f32 %v127, %v784
    %786 = vmatprep.subr.mxu0 %v785
    %v787 = vand.u32 %v126, 4294901760
    %v788 = vsub.f32 %v126, %v787
    %789 = vmatpush1.msra.mxu0 %v788
    %v790 = vand.u32 %v123, 4294901760
    %v791 = vsub.f32 %v123, %v790
    %792 = vmatprep.subr.mxu0 %v791
    %v793 = vand.u32 %v122, 4294901760
    %v794 = vsub.f32 %v122, %v793
    %795 = vmatpush1.msra.mxu0 %v794
    %v796 = vand.u32 %v119, 4294901760
    %v797 = vsub.f32 %v119, %v796
    %798 = vmatprep.subr.mxu0 %v797
    %v799 = vand.u32 %v118, 4294901760
    %v800 = vsub.f32 %v118, %v799
    %801 = vmatpush1.msra.mxu0 %v800
    %v802 = vand.u32 %v115, 4294901760
    %v803 = vsub.f32 %v115, %v802
    %804 = vmatprep.subr.mxu0 %v803
    %v805 = vand.u32 %v114, 4294901760
    %v806 = vsub.f32 %v114, %v805
    %807 = vmatpush1.msra.mxu0 %v806
    %v808 = vand.u32 %v111, 4294901760
    %v809 = vsub.f32 %v111, %v808
    %810 = vmatprep.subr.mxu0 %v809
    %v811 = vand.u32 %v110, 4294901760
    %v812 = vsub.f32 %v110, %v811
    %813 = vmatpush1.msra.mxu0 %v812
    %v814 = vand.u32 %v107, 4294901760
    %v815 = vsub.f32 %v107, %v814
    %816 = vmatprep.subr.mxu0 %v815
    %v817 = vand.u32 %v106, 4294901760
    %v818 = vsub.f32 %v106, %v817
    %819 = vmatpush1.msra.mxu0 %v818
    %v820 = vand.u32 %v103, 4294901760
    %v821 = vsub.f32 %v103, %v820
    %822 = vmatprep.subr.mxu0 %v821
    %v823 = vand.u32 %v102, 4294901760
    %v824 = vsub.f32 %v102, %v823
    %825 = vmatpush1.msra.mxu0 %v824
    %v826 = vand.u32 %v99, 4294901760
    %v827 = vsub.f32 %v99, %v826
    %828 = vmatprep.subr.mxu0 %v827
    %v829 = vand.u32 %v98, 4294901760
    %v830 = vsub.f32 %v98, %v829
    %831 = vmatpush1.msra.mxu0 %v830
    %v832 = vand.u32 %v95, 4294901760
    %v833 = vsub.f32 %v95, %v832
    %834 = vmatprep.subr.mxu0 %v833
    %v835 = vand.u32 %v94, 4294901760
    %v836 = vsub.f32 %v94, %v835
    %837 = vmatpush1.msra.mxu0 %v836
    %v838 = vand.u32 %v91, 4294901760
    %v839 = vsub.f32 %v91, %v838
    %840 = vmatprep.subr.mxu0 %v839
    %v841 = vand.u32 %v90, 4294901760
    %v842 = vsub.f32 %v90, %v841
    %843 = vmatpush1.msra.mxu0 %v842
    %v844 = vand.u32 %v87, 4294901760
    %v845 = vsub.f32 %v87, %v844
    %846 = vmatprep.subr.mxu0 %v845
    %v847 = vand.u32 %v86, 4294901760
    %v848 = vsub.f32 %v86, %v847
    %849 = vmatpush1.msra.mxu0 %v848
    %v850 = vand.u32 %v83, 4294901760
    %v851 = vsub.f32 %v83, %v850
    %852 = vmatprep.subr.mxu0 %v851
    %v853 = vand.u32 %v82, 4294901760
    %v854 = vsub.f32 %v82, %v853
    %855 = vmatpush1.msra.mxu0 %v854
    %v856 = vand.u32 %v79, 4294901760
    %v857 = vsub.f32 %v79, %v856
    %858 = vmatprep.subr.mxu0 %v857
    %v859 = vand.u32 %v78, 4294901760
    %v860 = vsub.f32 %v78, %v859
    %861 = vmatpush1.msra.mxu0 %v860
    %v862 = vand.u32 %v203, 4294901760
    %v863 = vsub.f32 %v203, %v862
    %864 = vmatprep.subr.mxu0 %v863
    %v865 = vand.u32 %v202, 4294901760
    %v866 = vsub.f32 %v202, %v865
    %867 = vmatpush2.msra.mxu0 %v866
    %v868 = vand.u32 %v199, 4294901760
    %v869 = vsub.f32 %v199, %v868
    %870 = vmatprep.subr.mxu0 %v869
    %v871 = vand.u32 %v198, 4294901760
    %v872 = vsub.f32 %v198, %v871
    %873 = vmatpush2.msra.mxu0 %v872
    %v874 = vand.u32 %v195, 4294901760
    %v875 = vsub.f32 %v195, %v874
    %876 = vmatprep.subr.mxu0 %v875
    %v877 = vand.u32 %v194, 4294901760
    %v878 = vsub.f32 %v194, %v877
    %879 = vmatpush2.msra.mxu0 %v878
    %v880 = vand.u32 %v191, 4294901760
    %v881 = vsub.f32 %v191, %v880
    %882 = vmatprep.subr.mxu0 %v881
    %v883 = vand.u32 %v190, 4294901760
    %v884 = vsub.f32 %v190, %v883
    %885 = vmatpush2.msra.mxu0 %v884
    %v886 = vand.u32 %v187, 4294901760
    %v887 = vsub.f32 %v187, %v886
    %888 = vmatprep.subr.mxu0 %v887
    %v889 = vand.u32 %v186, 4294901760
    %v890 = vsub.f32 %v186, %v889
    %891 = vmatpush2.msra.mxu0 %v890
    %v892 = vand.u32 %v183, 4294901760
    %v893 = vsub.f32 %v183, %v892
    %894 = vmatprep.subr.mxu0 %v893
    %v895 = vand.u32 %v182, 4294901760
    %v896 = vsub.f32 %v182, %v895
    %897 = vmatpush2.msra.mxu0 %v896
    %v898 = vand.u32 %v179, 4294901760
    %v899 = vsub.f32 %v179, %v898
    %900 = vmatprep.subr.mxu0 %v899
    %v901 = vand.u32 %v178, 4294901760
    %v902 = vsub.f32 %v178, %v901
    %903 = vmatpush2.msra.mxu0 %v902
    %v904 = vand.u32 %v175, 4294901760
    %v905 = vsub.f32 %v175, %v904
    %906 = vmatprep.subr.mxu0 %v905
    %v907 = vand.u32 %v174, 4294901760
    %v908 = vsub.f32 %v174, %v907
    %909 = vmatpush2.msra.mxu0 %v908
    %v910 = vand.u32 %v171, 4294901760
    %v911 = vsub.f32 %v171, %v910
    %912 = vmatprep.subr.mxu0 %v911
    %v913 = vand.u32 %v170, 4294901760
    %v914 = vsub.f32 %v170, %v913
    %915 = vmatpush2.msra.mxu0 %v914
    %v916 = vand.u32 %v167, 4294901760
    %v917 = vsub.f32 %v167, %v916
    %918 = vmatprep.subr.mxu0 %v917
    %v919 = vand.u32 %v166, 4294901760
    %v920 = vsub.f32 %v166, %v919
    %921 = vmatpush2.msra.mxu0 %v920
    %v922 = vand.u32 %v163, 4294901760
    %v923 = vsub.f32 %v163, %v922
    %924 = vmatprep.subr.mxu0 %v923
    %v925 = vand.u32 %v162, 4294901760
    %v926 = vsub.f32 %v162, %v925
    %927 = vmatpush2.msra.mxu0 %v926
    %v928 = vand.u32 %v159, 4294901760
    %v929 = vsub.f32 %v159, %v928
    %930 = vmatprep.subr.mxu0 %v929
    %v931 = vand.u32 %v158, 4294901760
    %v932 = vsub.f32 %v158, %v931
    %933 = vmatpush2.msra.mxu0 %v932
    %v934 = vand.u32 %v155, 4294901760
    %v935 = vsub.f32 %v155, %v934
    %936 = vmatprep.subr.mxu0 %v935
    %v937 = vand.u32 %v154, 4294901760
    %v938 = vsub.f32 %v154, %v937
    %939 = vmatpush2.msra.mxu0 %v938
    %v940 = vand.u32 %v151, 4294901760
    %v941 = vsub.f32 %v151, %v940
    %942 = vmatprep.subr.mxu0 %v941
    %v943 = vand.u32 %v150, 4294901760
    %v944 = vsub.f32 %v150, %v943
    %945 = vmatpush2.msra.mxu0 %v944
    %v946 = vand.u32 %v147, 4294901760
    %v947 = vsub.f32 %v147, %v946
    %948 = vmatprep.subr.mxu0 %v947
    %v949 = vand.u32 %v146, 4294901760
    %v950 = vsub.f32 %v146, %v949
    %951 = vmatpush2.msra.mxu0 %v950
    %v952 = vand.u32 %v143, 4294901760
    %v953 = vsub.f32 %v143, %v952
    %954 = vmatprep.subr.mxu0 %v953
    %v955 = vand.u32 %v142, 4294901760
    %v956 = vsub.f32 %v142, %v955
    %957 = vmatpush2.msra.mxu0 %v956
    %v958 = vand.u32 %v77, 4294901760
    %v959 = vsub.f32 %v77, %v958
    %960 = vmatprep.mubr.f32.mxu0 %v959
    %v961 = vand.u32 %v76, 4294901760
    %v962 = vsub.f32 %v76, %v961
    %963 = vmatmul.mubr.f32.gmra.mxu0 %v962
    %v964 = vpop.f32.mrf.mxu0
    %v965 = vadd.f32 %v762, %v964
    %v966 = vpop.f32.mrf.mxu0
    %v967 = vadd.f32 %v764, %v966
    %968 = vdwg.mxu0
    %v969 = vand.u32 %v139, 4294901760
    %970 = vmatprep.subr.mxu0 %v969
    %v971 = vand.u32 %v138, 4294901760
    %972 = vmatpush1.msra.mxu0 %v971
    %v973 = vand.u32 %v135, 4294901760
    %974 = vmatprep.subr.mxu0 %v973
    %v975 = vand.u32 %v134, 4294901760
    %976 = vmatpush1.msra.mxu0 %v975
    %v977 = vand.u32 %v131, 4294901760
    %978 = vmatprep.subr.mxu0 %v977
    %v979 = vand.u32 %v130, 4294901760
    %980 = vmatpush1.msra.mxu0 %v979
    %v981 = vand.u32 %v127, 4294901760
    %982 = vmatprep.subr.mxu0 %v981
    %v983 = vand.u32 %v126, 4294901760
    %984 = vmatpush1.msra.mxu0 %v983
    %v985 = vand.u32 %v123, 4294901760
    %986 = vmatprep.subr.mxu0 %v985
    %v987 = vand.u32 %v122, 4294901760
    %988 = vmatpush1.msra.mxu0 %v987
    %v989 = vand.u32 %v119, 4294901760
    %990 = vmatprep.subr.mxu0 %v989
    %v991 = vand.u32 %v118, 4294901760
    %992 = vmatpush1.msra.mxu0 %v991
    %v993 = vand.u32 %v115, 4294901760
    %994 = vmatprep.subr.mxu0 %v993
    %v995 = vand.u32 %v114, 4294901760
    %996 = vmatpush1.msra.mxu0 %v995
    %v997 = vand.u32 %v111, 4294901760
    %998 = vmatprep.subr.mxu0 %v997
    %v999 = vand.u32 %v110, 4294901760
    %1000 = vmatpush1.msra.mxu0 %v999
    %v1001 = vand.u32 %v107, 4294901760
    %1002 = vmatprep.subr.mxu0 %v1001
    %v1003 = vand.u32 %v106, 4294901760
    %1004 = vmatpush1.msra.mxu0 %v1003
    %v1005 = vand.u32 %v103, 4294901760
    %1006 = vmatprep.subr.mxu0 %v1005
    %v1007 = vand.u32 %v102, 4294901760
    %1008 = vmatpush1.msra.mxu0 %v1007
    %v1009 = vand.u32 %v99, 4294901760
    %1010 = vmatprep.subr.mxu0 %v1009
    %v1011 = vand.u32 %v98, 4294901760
    %1012 = vmatpush1.msra.mxu0 %v1011
    %v1013 = vand.u32 %v95, 4294901760
    %1014 = vmatprep.subr.mxu0 %v1013
    %v1015 = vand.u32 %v94, 4294901760
    %1016 = vmatpush1.msra.mxu0 %v1015
    %v1017 = vand.u32 %v91, 4294901760
    %1018 = vmatprep.subr.mxu0 %v1017
    %v1019 = vand.u32 %v90, 4294901760
    %1020 = vmatpush1.msra.mxu0 %v1019
    %v1021 = vand.u32 %v87, 4294901760
    %1022 = vmatprep.subr.mxu0 %v1021
    %v1023 = vand.u32 %v86, 4294901760
    %1024 = vmatpush1.msra.mxu0 %v1023
    %v1025 = vand.u32 %v83, 4294901760
    %1026 = vmatprep.subr.mxu0 %v1025
    %v1027 = vand.u32 %v82, 4294901760
    %1028 = vmatpush1.msra.mxu0 %v1027
    %v1029 = vand.u32 %v79, 4294901760
    %1030 = vmatprep.subr.mxu0 %v1029
    %v1031 = vand.u32 %v78, 4294901760
    %1032 = vmatpush1.msra.mxu0 %v1031
    %v1033 = vand.u32 %v203, 4294901760
    %1034 = vmatprep.subr.mxu0 %v1033
    %v1035 = vand.u32 %v202, 4294901760
    %1036 = vmatpush2.msra.mxu0 %v1035
    %v1037 = vand.u32 %v199, 4294901760
    %1038 = vmatprep.subr.mxu0 %v1037
    %v1039 = vand.u32 %v198, 4294901760
    %1040 = vmatpush2.msra.mxu0 %v1039
    %v1041 = vand.u32 %v195, 4294901760
    %1042 = vmatprep.subr.mxu0 %v1041
    %v1043 = vand.u32 %v194, 4294901760
    %1044 = vmatpush2.msra.mxu0 %v1043
    %v1045 = vand.u32 %v191, 4294901760
    %1046 = vmatprep.subr.mxu0 %v1045
    %v1047 = vand.u32 %v190, 4294901760
    %1048 = vmatpush2.msra.mxu0 %v1047
    %v1049 = vand.u32 %v187, 4294901760
    %1050 = vmatprep.subr.mxu0 %v1049
    %v1051 = vand.u32 %v186, 4294901760
    %1052 = vmatpush2.msra.mxu0 %v1051
    %v1053 = vand.u32 %v183, 4294901760
    %1054 = vmatprep.subr.mxu0 %v1053
    %v1055 = vand.u32 %v182, 4294901760
    %1056 = vmatpush2.msra.mxu0 %v1055
    %v1057 = vand.u32 %v179, 4294901760
    %1058 = vmatprep.subr.mxu0 %v1057
    %v1059 = vand.u32 %v178, 4294901760
    %1060 = vmatpush2.msra.mxu0 %v1059
    %v1061 = vand.u32 %v175, 4294901760
    %1062 = vmatprep.subr.mxu0 %v1061
    %v1063 = vand.u32 %v174, 4294901760
    %1064 = vmatpush2.msra.mxu0 %v1063
    %v1065 = vand.u32 %v171, 4294901760
    %1066 = vmatprep.subr.mxu0 %v1065
    %v1067 = vand.u32 %v170, 4294901760
    %1068 = vmatpush2.msra.mxu0 %v1067
    %v1069 = vand.u32 %v167, 4294901760
    %1070 = vmatprep.subr.mxu0 %v1069
    %v1071 = vand.u32 %v166, 4294901760
    %1072 = vmatpush2.msra.mxu0 %v1071
    %v1073 = vand.u32 %v163, 4294901760
    %1074 = vmatprep.subr.mxu0 %v1073
    %v1075 = vand.u32 %v162, 4294901760
    %1076 = vmatpush2.msra.mxu0 %v1075
    %v1077 = vand.u32 %v159, 4294901760
    %1078 = vmatprep.subr.mxu0 %v1077
    %v1079 = vand.u32 %v158, 4294901760
    %1080 = vmatpush2.msra.mxu0 %v1079
    %v1081 = vand.u32 %v155, 4294901760
    %1082 = vmatprep.subr.mxu0 %v1081
    %v1083 = vand.u32 %v154, 4294901760
    %1084 = vmatpush2.msra.mxu0 %v1083
    %v1085 = vand.u32 %v151, 4294901760
    %1086 = vmatprep.subr.mxu0 %v1085
    %v1087 = vand.u32 %v150, 4294901760
    %1088 = vmatpush2.msra.mxu0 %v1087
    %v1089 = vand.u32 %v147, 4294901760
    %1090 = vmatprep.subr.mxu0 %v1089
    %v1091 = vand.u32 %v146, 4294901760
    %1092 = vmatpush2.msra.mxu0 %v1091
    %v1093 = vand.u32 %v143, 4294901760
    %1094 = vmatprep.subr.mxu0 %v1093
    %v1095 = vand.u32 %v142, 4294901760
    %1096 = vmatpush2.msra.mxu0 %v1095
    %v1097 = vand.u32 %v77, 4294901760
    %v1098 = vsub.f32 %v77, %v1097
    %v1099 = vand.u32 %v1098, 4294901760
    %1100 = vmatprep.mubr.f32.mxu0 %v1099
    %v1101 = vand.u32 %v76, 4294901760
    %v1102 = vsub.f32 %v76, %v1101
    %v1103 = vand.u32 %v1102, 4294901760
    %1104 = vmatmul.mubr.f32.gmra.mxu0 %v1103
    %v1105 = vpop.f32.mrf.mxu0
    %v1106 = vadd.f32 %v965, %v1105
    %v1107 = vpop.f32.mrf.mxu0
    %v1108 = vadd.f32 %v967, %v1107
    %1109 = vdwg.mxu0
    %v1110 = vand.u32 %v139, 4294901760
    %v1111 = vsub.f32 %v139, %v1110
    %v1112 = vand.u32 %v1111, 4294901760
    %1113 = vmatprep.subr.mxu0 %v1112
    %v1114 = vand.u32 %v138, 4294901760
    %v1115 = vsub.f32 %v138, %v1114
    %v1116 = vand.u32 %v1115, 4294901760
    %1117 = vmatpush1.msra.mxu0 %v1116
    %v1118 = vand.u32 %v135, 4294901760
    %v1119 = vsub.f32 %v135, %v1118
    %v1120 = vand.u32 %v1119, 4294901760
    %1121 = vmatprep.subr.mxu0 %v1120
    %v1122 = vand.u32 %v134, 4294901760
    %v1123 = vsub.f32 %v134, %v1122
    %v1124 = vand.u32 %v1123, 4294901760
    %1125 = vmatpush1.msra.mxu0 %v1124
    %v1126 = vand.u32 %v131, 4294901760
    %v1127 = vsub.f32 %v131, %v1126
    %v1128 = vand.u32 %v1127, 4294901760
    %1129 = vmatprep.subr.mxu0 %v1128
    %v1130 = vand.u32 %v130, 4294901760
    %v1131 = vsub.f32 %v130, %v1130
    %v1132 = vand.u32 %v1131, 4294901760
    %1133 = vmatpush1.msra.mxu0 %v1132
    %v1134 = vand.u32 %v127, 4294901760
    %v1135 = vsub.f32 %v127, %v1134
    %v1136 = vand.u32 %v1135, 4294901760
    %1137 = vmatprep.subr.mxu0 %v1136
    %v1138 = vand.u32 %v126, 4294901760
    %v1139 = vsub.f32 %v126, %v1138
    %v1140 = vand.u32 %v1139, 4294901760
    %1141 = vmatpush1.msra.mxu0 %v1140
    %v1142 = vand.u32 %v123, 4294901760
    %v1143 = vsub.f32 %v123, %v1142
    %v1144 = vand.u32 %v1143, 4294901760
    %1145 = vmatprep.subr.mxu0 %v1144
    %v1146 = vand.u32 %v122, 4294901760
    %v1147 = vsub.f32 %v122, %v1146
    %v1148 = vand.u32 %v1147, 4294901760
    %1149 = vmatpush1.msra.mxu0 %v1148
    %v1150 = vand.u32 %v119, 4294901760
    %v1151 = vsub.f32 %v119, %v1150
    %v1152 = vand.u32 %v1151, 4294901760
    %1153 = vmatprep.subr.mxu0 %v1152
    %v1154 = vand.u32 %v118, 4294901760
    %v1155 = vsub.f32 %v118, %v1154
    %v1156 = vand.u32 %v1155, 4294901760
    %1157 = vmatpush1.msra.mxu0 %v1156
    %v1158 = vand.u32 %v115, 4294901760
    %v1159 = vsub.f32 %v115, %v1158
    %v1160 = vand.u32 %v1159, 4294901760
    %1161 = vmatprep.subr.mxu0 %v1160
    %v1162 = vand.u32 %v114, 4294901760
    %v1163 = vsub.f32 %v114, %v1162
    %v1164 = vand.u32 %v1163, 4294901760
    %1165 = vmatpush1.msra.mxu0 %v1164
    %v1166 = vand.u32 %v111, 4294901760
    %v1167 = vsub.f32 %v111, %v1166
    %v1168 = vand.u32 %v1167, 4294901760
    %1169 = vmatprep.subr.mxu0 %v1168
    %v1170 = vand.u32 %v110, 4294901760
    %v1171 = vsub.f32 %v110, %v1170
    %v1172 = vand.u32 %v1171, 4294901760
    %1173 = vmatpush1.msra.mxu0 %v1172
    %v1174 = vand.u32 %v107, 4294901760
    %v1175 = vsub.f32 %v107, %v1174
    %v1176 = vand.u32 %v1175, 4294901760
    %1177 = vmatprep.subr.mxu0 %v1176
    %v1178 = vand.u32 %v106, 4294901760
    %v1179 = vsub.f32 %v106, %v1178
    %v1180 = vand.u32 %v1179, 4294901760
    %1181 = vmatpush1.msra.mxu0 %v1180
    %v1182 = vand.u32 %v103, 4294901760
    %v1183 = vsub.f32 %v103, %v1182
    %v1184 = vand.u32 %v1183, 4294901760
    %1185 = vmatprep.subr.mxu0 %v1184
    %v1186 = vand.u32 %v102, 4294901760
    %v1187 = vsub.f32 %v102, %v1186
    %v1188 = vand.u32 %v1187, 4294901760
    %1189 = vmatpush1.msra.mxu0 %v1188
    %v1190 = vand.u32 %v99, 4294901760
    %v1191 = vsub.f32 %v99, %v1190
    %v1192 = vand.u32 %v1191, 4294901760
    %1193 = vmatprep.subr.mxu0 %v1192
    %v1194 = vand.u32 %v98, 4294901760
    %v1195 = vsub.f32 %v98, %v1194
    %v1196 = vand.u32 %v1195, 4294901760
    %1197 = vmatpush1.msra.mxu0 %v1196
    %v1198 = vand.u32 %v95, 4294901760
    %v1199 = vsub.f32 %v95, %v1198
    %v1200 = vand.u32 %v1199, 4294901760
    %1201 = vmatprep.subr.mxu0 %v1200
    %v1202 = vand.u32 %v94, 4294901760
    %v1203 = vsub.f32 %v94, %v1202
    %v1204 = vand.u32 %v1203, 4294901760
    %1205 = vmatpush1.msra.mxu0 %v1204
    %v1206 = vand.u32 %v91, 4294901760
    %v1207 = vsub.f32 %v91, %v1206
    %v1208 = vand.u32 %v1207, 4294901760
    %1209 = vmatprep.subr.mxu0 %v1208
    %v1210 = vand.u32 %v90, 4294901760
    %v1211 = vsub.f32 %v90, %v1210
    %v1212 = vand.u32 %v1211, 4294901760
    %1213 = vmatpush1.msra.mxu0 %v1212
    %v1214 = vand.u32 %v87, 4294901760
    %v1215 = vsub.f32 %v87, %v1214
    %v1216 = vand.u32 %v1215, 4294901760
    %1217 = vmatprep.subr.mxu0 %v1216
    %v1218 = vand.u32 %v86, 4294901760
    %v1219 = vsub.f32 %v86, %v1218
    %v1220 = vand.u32 %v1219, 4294901760
    %1221 = vmatpush1.msra.mxu0 %v1220
    %v1222 = vand.u32 %v83, 4294901760
    %v1223 = vsub.f32 %v83, %v1222
    %v1224 = vand.u32 %v1223, 4294901760
    %1225 = vmatprep.subr.mxu0 %v1224
    %v1226 = vand.u32 %v82, 4294901760
    %v1227 = vsub.f32 %v82, %v1226
    %v1228 = vand.u32 %v1227, 4294901760
    %1229 = vmatpush1.msra.mxu0 %v1228
    %v1230 = vand.u32 %v79, 4294901760
    %v1231 = vsub.f32 %v79, %v1230
    %v1232 = vand.u32 %v1231, 4294901760
    %1233 = vmatprep.subr.mxu0 %v1232
    %v1234 = vand.u32 %v78, 4294901760
    %v1235 = vsub.f32 %v78, %v1234
    %v1236 = vand.u32 %v1235, 4294901760
    %1237 = vmatpush1.msra.mxu0 %v1236
    %v1238 = vand.u32 %v203, 4294901760
    %v1239 = vsub.f32 %v203, %v1238
    %v1240 = vand.u32 %v1239, 4294901760
    %1241 = vmatprep.subr.mxu0 %v1240
    %v1242 = vand.u32 %v202, 4294901760
    %v1243 = vsub.f32 %v202, %v1242
    %v1244 = vand.u32 %v1243, 4294901760
    %1245 = vmatpush2.msra.mxu0 %v1244
    %v1246 = vand.u32 %v199, 4294901760
    %v1247 = vsub.f32 %v199, %v1246
    %v1248 = vand.u32 %v1247, 4294901760
    %1249 = vmatprep.subr.mxu0 %v1248
    %v1250 = vand.u32 %v198, 4294901760
    %v1251 = vsub.f32 %v198, %v1250
    %v1252 = vand.u32 %v1251, 4294901760
    %1253 = vmatpush2.msra.mxu0 %v1252
    %v1254 = vand.u32 %v195, 4294901760
    %v1255 = vsub.f32 %v195, %v1254
    %v1256 = vand.u32 %v1255, 4294901760
    %1257 = vmatprep.subr.mxu0 %v1256
    %v1258 = vand.u32 %v194, 4294901760
    %v1259 = vsub.f32 %v194, %v1258
    %v1260 = vand.u32 %v1259, 4294901760
    %1261 = vmatpush2.msra.mxu0 %v1260
    %v1262 = vand.u32 %v191, 4294901760
    %v1263 = vsub.f32 %v191, %v1262
    %v1264 = vand.u32 %v1263, 4294901760
    %1265 = vmatprep.subr.mxu0 %v1264
    %v1266 = vand.u32 %v190, 4294901760
    %v1267 = vsub.f32 %v190, %v1266
    %v1268 = vand.u32 %v1267, 4294901760
    %1269 = vmatpush2.msra.mxu0 %v1268
    %v1270 = vand.u32 %v187, 4294901760
    %v1271 = vsub.f32 %v187, %v1270
    %v1272 = vand.u32 %v1271, 4294901760
    %1273 = vmatprep.subr.mxu0 %v1272
    %v1274 = vand.u32 %v186, 4294901760
    %v1275 = vsub.f32 %v186, %v1274
    %v1276 = vand.u32 %v1275, 4294901760
    %1277 = vmatpush2.msra.mxu0 %v1276
    %v1278 = vand.u32 %v183, 4294901760
    %v1279 = vsub.f32 %v183, %v1278
    %v1280 = vand.u32 %v1279, 4294901760
    %1281 = vmatprep.subr.mxu0 %v1280
    %v1282 = vand.u32 %v182, 4294901760
    %v1283 = vsub.f32 %v182, %v1282
    %v1284 = vand.u32 %v1283, 4294901760
    %1285 = vmatpush2.msra.mxu0 %v1284
    %v1286 = vand.u32 %v179, 4294901760
    %v1287 = vsub.f32 %v179, %v1286
    %v1288 = vand.u32 %v1287, 4294901760
    %1289 = vmatprep.subr.mxu0 %v1288
    %v1290 = vand.u32 %v178, 4294901760
    %v1291 = vsub.f32 %v178, %v1290
    %v1292 = vand.u32 %v1291, 4294901760
    %1293 = vmatpush2.msra.mxu0 %v1292
    %v1294 = vand.u32 %v175, 4294901760
    %v1295 = vsub.f32 %v175, %v1294
    %v1296 = vand.u32 %v1295, 4294901760
    %1297 = vmatprep.subr.mxu0 %v1296
    %v1298 = vand.u32 %v174, 4294901760
    %v1299 = vsub.f32 %v174, %v1298
    %v1300 = vand.u32 %v1299, 4294901760
    %1301 = vmatpush2.msra.mxu0 %v1300
    %v1302 = vand.u32 %v171, 4294901760
    %v1303 = vsub.f32 %v171, %v1302
    %v1304 = vand.u32 %v1303, 4294901760
    %1305 = vmatprep.subr.mxu0 %v1304
    %v1306 = vand.u32 %v170, 4294901760
    %v1307 = vsub.f32 %v170, %v1306
    %v1308 = vand.u32 %v1307, 4294901760
    %1309 = vmatpush2.msra.mxu0 %v1308
    %v1310 = vand.u32 %v167, 4294901760
    %v1311 = vsub.f32 %v167, %v1310
    %v1312 = vand.u32 %v1311, 4294901760
    %1313 = vmatprep.subr.mxu0 %v1312
    %v1314 = vand.u32 %v166, 4294901760
    %v1315 = vsub.f32 %v166, %v1314
    %v1316 = vand.u32 %v1315, 4294901760
    %1317 = vmatpush2.msra.mxu0 %v1316
    %v1318 = vand.u32 %v163, 4294901760
    %v1319 = vsub.f32 %v163, %v1318
    %v1320 = vand.u32 %v1319, 4294901760
    %1321 = vmatprep.subr.mxu0 %v1320
    %v1322 = vand.u32 %v162, 4294901760
    %v1323 = vsub.f32 %v162, %v1322
    %v1324 = vand.u32 %v1323, 4294901760
    %1325 = vmatpush2.msra.mxu0 %v1324
    %v1326 = vand.u32 %v159, 4294901760
    %v1327 = vsub.f32 %v159, %v1326
    %v1328 = vand.u32 %v1327, 4294901760
    %1329 = vmatprep.subr.mxu0 %v1328
    %v1330 = vand.u32 %v158, 4294901760
    %v1331 = vsub.f32 %v158, %v1330
    %v1332 = vand.u32 %v1331, 4294901760
    %1333 = vmatpush2.msra.mxu0 %v1332
    %v1334 = vand.u32 %v155, 4294901760
    %v1335 = vsub.f32 %v155, %v1334
    %v1336 = vand.u32 %v1335, 4294901760
    %1337 = vmatprep.subr.mxu0 %v1336
    %v1338 = vand.u32 %v154, 4294901760
    %v1339 = vsub.f32 %v154, %v1338
    %v1340 = vand.u32 %v1339, 4294901760
    %1341 = vmatpush2.msra.mxu0 %v1340
    %v1342 = vand.u32 %v151, 4294901760
    %v1343 = vsub.f32 %v151, %v1342
    %v1344 = vand.u32 %v1343, 4294901760
    %1345 = vmatprep.subr.mxu0 %v1344
    %v1346 = vand.u32 %v150, 4294901760
    %v1347 = vsub.f32 %v150, %v1346
    %v1348 = vand.u32 %v1347, 4294901760
    %1349 = vmatpush2.msra.mxu0 %v1348
    %v1350 = vand.u32 %v147, 4294901760
    %v1351 = vsub.f32 %v147, %v1350
    %v1352 = vand.u32 %v1351, 4294901760
    %1353 = vmatprep.subr.mxu0 %v1352
    %v1354 = vand.u32 %v146, 4294901760
    %v1355 = vsub.f32 %v146, %v1354
    %v1356 = vand.u32 %v1355, 4294901760
    %1357 = vmatpush2.msra.mxu0 %v1356
    %v1358 = vand.u32 %v143, 4294901760
    %v1359 = vsub.f32 %v143, %v1358
    %v1360 = vand.u32 %v1359, 4294901760
    %1361 = vmatprep.subr.mxu0 %v1360
    %v1362 = vand.u32 %v142, 4294901760
    %v1363 = vsub.f32 %v142, %v1362
    %v1364 = vand.u32 %v1363, 4294901760
    %1365 = vmatpush2.msra.mxu0 %v1364
    %v1366 = vand.u32 %v77, 4294901760
    %1367 = vmatprep.mubr.f32.mxu0 %v1366
    %v1368 = vand.u32 %v76, 4294901760
    %1369 = vmatmul.mubr.f32.gmra.mxu0 %v1368
    %v1370 = vpop.f32.mrf.mxu0
    %v1371 = vadd.f32 %v1106, %v1370
    %v1372 = vpop.f32.mrf.mxu0
    %v1373 = vadd.f32 %v1108, %v1372
    %1374 = vdwg.mxu0
    %v1375 = vand.u32 %v139, 4294901760
    %1376 = vmatprep.subr.mxu0 %v1375
    %v1377 = vand.u32 %v138, 4294901760
    %1378 = vmatpush1.msra.mxu0 %v1377
    %v1379 = vand.u32 %v135, 4294901760
    %1380 = vmatprep.subr.mxu0 %v1379
    %v1381 = vand.u32 %v134, 4294901760
    %1382 = vmatpush1.msra.mxu0 %v1381
    %v1383 = vand.u32 %v131, 4294901760
    %1384 = vmatprep.subr.mxu0 %v1383
    %v1385 = vand.u32 %v130, 4294901760
    %1386 = vmatpush1.msra.mxu0 %v1385
    %v1387 = vand.u32 %v127, 4294901760
    %1388 = vmatprep.subr.mxu0 %v1387
    %v1389 = vand.u32 %v126, 4294901760
    %1390 = vmatpush1.msra.mxu0 %v1389
    %v1391 = vand.u32 %v123, 4294901760
    %1392 = vmatprep.subr.mxu0 %v1391
    %v1393 = vand.u32 %v122, 4294901760
    %1394 = vmatpush1.msra.mxu0 %v1393
    %v1395 = vand.u32 %v119, 4294901760
    %1396 = vmatprep.subr.mxu0 %v1395
    %v1397 = vand.u32 %v118, 4294901760
    %1398 = vmatpush1.msra.mxu0 %v1397
    %v1399 = vand.u32 %v115, 4294901760
    %1400 = vmatprep.subr.mxu0 %v1399
    %v1401 = vand.u32 %v114, 4294901760
    %1402 = vmatpush1.msra.mxu0 %v1401
    %v1403 = vand.u32 %v111, 4294901760
    %1404 = vmatprep.subr.mxu0 %v1403
    %v1405 = vand.u32 %v110, 4294901760
    %1406 = vmatpush1.msra.mxu0 %v1405
    %v1407 = vand.u32 %v107, 4294901760
    %1408 = vmatprep.subr.mxu0 %v1407
    %v1409 = vand.u32 %v106, 4294901760
    %1410 = vmatpush1.msra.mxu0 %v1409
    %v1411 = vand.u32 %v103, 4294901760
    %1412 = vmatprep.subr.mxu0 %v1411
    %v1413 = vand.u32 %v102, 4294901760
    %1414 = vmatpush1.msra.mxu0 %v1413
    %v1415 = vand.u32 %v99, 4294901760
    %1416 = vmatprep.subr.mxu0 %v1415
    %v1417 = vand.u32 %v98, 4294901760
    %1418 = vmatpush1.msra.mxu0 %v1417
    %v1419 = vand.u32 %v95, 4294901760
    %1420 = vmatprep.subr.mxu0 %v1419
    %v1421 = vand.u32 %v94, 4294901760
    %1422 = vmatpush1.msra.mxu0 %v1421
    %v1423 = vand.u32 %v91, 4294901760
    %1424 = vmatprep.subr.mxu0 %v1423
    %v1425 = vand.u32 %v90, 4294901760
    %1426 = vmatpush1.msra.mxu0 %v1425
    %v1427 = vand.u32 %v87, 4294901760
    %1428 = vmatprep.subr.mxu0 %v1427
    %v1429 = vand.u32 %v86, 4294901760
    %1430 = vmatpush1.msra.mxu0 %v1429
    %v1431 = vand.u32 %v83, 4294901760
    %1432 = vmatprep.subr.mxu0 %v1431
    %v1433 = vand.u32 %v82, 4294901760
    %1434 = vmatpush1.msra.mxu0 %v1433
    %v1435 = vand.u32 %v79, 4294901760
    %1436 = vmatprep.subr.mxu0 %v1435
    %v1437 = vand.u32 %v78, 4294901760
    %1438 = vmatpush1.msra.mxu0 %v1437
    %v1439 = vand.u32 %v203, 4294901760
    %1440 = vmatprep.subr.mxu0 %v1439
    %v1441 = vand.u32 %v202, 4294901760
    %1442 = vmatpush2.msra.mxu0 %v1441
    %v1443 = vand.u32 %v199, 4294901760
    %1444 = vmatprep.subr.mxu0 %v1443
    %v1445 = vand.u32 %v198, 4294901760
    %1446 = vmatpush2.msra.mxu0 %v1445
    %v1447 = vand.u32 %v195, 4294901760
    %1448 = vmatprep.subr.mxu0 %v1447
    %v1449 = vand.u32 %v194, 4294901760
    %1450 = vmatpush2.msra.mxu0 %v1449
    %v1451 = vand.u32 %v191, 4294901760
    %1452 = vmatprep.subr.mxu0 %v1451
    %v1453 = vand.u32 %v190, 4294901760
    %1454 = vmatpush2.msra.mxu0 %v1453
    %v1455 = vand.u32 %v187, 4294901760
    %1456 = vmatprep.subr.mxu0 %v1455
    %v1457 = vand.u32 %v186, 4294901760
    %1458 = vmatpush2.msra.mxu0 %v1457
    %v1459 = vand.u32 %v183, 4294901760
    %1460 = vmatprep.subr.mxu0 %v1459
    %v1461 = vand.u32 %v182, 4294901760
    %1462 = vmatpush2.msra.mxu0 %v1461
    %v1463 = vand.u32 %v179, 4294901760
    %1464 = vmatprep.subr.mxu0 %v1463
    %v1465 = vand.u32 %v178, 4294901760
    %1466 = vmatpush2.msra.mxu0 %v1465
    %v1467 = vand.u32 %v175, 4294901760
    %1468 = vmatprep.subr.mxu0 %v1467
    %v1469 = vand.u32 %v174, 4294901760
    %1470 = vmatpush2.msra.mxu0 %v1469
    %v1471 = vand.u32 %v171, 4294901760
    %1472 = vmatprep.subr.mxu0 %v1471
    %v1473 = vand.u32 %v170, 4294901760
    %1474 = vmatpush2.msra.mxu0 %v1473
    %v1475 = vand.u32 %v167, 4294901760
    %1476 = vmatprep.subr.mxu0 %v1475
    %v1477 = vand.u32 %v166, 4294901760
    %1478 = vmatpush2.msra.mxu0 %v1477
    %v1479 = vand.u32 %v163, 4294901760
    %1480 = vmatprep.subr.mxu0 %v1479
    %v1481 = vand.u32 %v162, 4294901760
    %1482 = vmatpush2.msra.mxu0 %v1481
    %v1483 = vand.u32 %v159, 4294901760
    %1484 = vmatprep.subr.mxu0 %v1483
    %v1485 = vand.u32 %v158, 4294901760
    %1486 = vmatpush2.msra.mxu0 %v1485
    %v1487 = vand.u32 %v155, 4294901760
    %1488 = vmatprep.subr.mxu0 %v1487
    %v1489 = vand.u32 %v154, 4294901760
    %1490 = vmatpush2.msra.mxu0 %v1489
    %v1491 = vand.u32 %v151, 4294901760
    %1492 = vmatprep.subr.mxu0 %v1491
    %v1493 = vand.u32 %v150, 4294901760
    %1494 = vmatpush2.msra.mxu0 %v1493
    %v1495 = vand.u32 %v147, 4294901760
    %1496 = vmatprep.subr.mxu0 %v1495
    %v1497 = vand.u32 %v146, 4294901760
    %1498 = vmatpush2.msra.mxu0 %v1497
    %v1499 = vand.u32 %v143, 4294901760
    %1500 = vmatprep.subr.mxu0 %v1499
    %v1501 = vand.u32 %v142, 4294901760
    %1502 = vmatpush2.msra.mxu0 %v1501
    %v1503 = vand.u32 %v77, 4294901760
    %1504 = vmatprep.mubr.f32.mxu0 %v1503
    %v1505 = vand.u32 %v76, 4294901760
    %1506 = vmatmul.mubr.f32.gmra.mxu0 %v1505
    %v1507 = vpop.f32.mrf.mxu0
    %v1508 = vadd.f32 %v1371, %v1507
    %v1509 = vpop.f32.mrf.mxu0
    %v1510 = vadd.f32 %v1373, %v1509
    %1511 = vdwg.mxu0
    %v1512 = vand.u32 %v141, 4294901760
    %1513 = vmatprep.subr.mxu0 %v1512
    %v1514 = vand.u32 %v140, 4294901760
    %1515 = vmatpush1.msra.mxu0 %v1514
    %v1516 = vand.u32 %v137, 4294901760
    %1517 = vmatprep.subr.mxu0 %v1516
    %v1518 = vand.u32 %v136, 4294901760
    %1519 = vmatpush1.msra.mxu0 %v1518
    %v1520 = vand.u32 %v133, 4294901760
    %1521 = vmatprep.subr.mxu0 %v1520
    %v1522 = vand.u32 %v132, 4294901760
    %1523 = vmatpush1.msra.mxu0 %v1522
    %v1524 = vand.u32 %v129, 4294901760
    %1525 = vmatprep.subr.mxu0 %v1524
    %v1526 = vand.u32 %v128, 4294901760
    %1527 = vmatpush1.msra.mxu0 %v1526
    %v1528 = vand.u32 %v125, 4294901760
    %1529 = vmatprep.subr.mxu0 %v1528
    %v1530 = vand.u32 %v124, 4294901760
    %1531 = vmatpush1.msra.mxu0 %v1530
    %v1532 = vand.u32 %v121, 4294901760
    %1533 = vmatprep.subr.mxu0 %v1532
    %v1534 = vand.u32 %v120, 4294901760
    %1535 = vmatpush1.msra.mxu0 %v1534
    %v1536 = vand.u32 %v117, 4294901760
    %1537 = vmatprep.subr.mxu0 %v1536
    %v1538 = vand.u32 %v116, 4294901760
    %1539 = vmatpush1.msra.mxu0 %v1538
    %v1540 = vand.u32 %v113, 4294901760
    %1541 = vmatprep.subr.mxu0 %v1540
    %v1542 = vand.u32 %v112, 4294901760
    %1543 = vmatpush1.msra.mxu0 %v1542
    %v1544 = vand.u32 %v109, 4294901760
    %1545 = vmatprep.subr.mxu0 %v1544
    %v1546 = vand.u32 %v108, 4294901760
    %1547 = vmatpush1.msra.mxu0 %v1546
    %v1548 = vand.u32 %v105, 4294901760
    %1549 = vmatprep.subr.mxu0 %v1548
    %v1550 = vand.u32 %v104, 4294901760
    %1551 = vmatpush1.msra.mxu0 %v1550
    %v1552 = vand.u32 %v101, 4294901760
    %1553 = vmatprep.subr.mxu0 %v1552
    %v1554 = vand.u32 %v100, 4294901760
    %1555 = vmatpush1.msra.mxu0 %v1554
    %v1556 = vand.u32 %v97, 4294901760
    %1557 = vmatprep.subr.mxu0 %v1556
    %v1558 = vand.u32 %v96, 4294901760
    %1559 = vmatpush1.msra.mxu0 %v1558
    %v1560 = vand.u32 %v93, 4294901760
    %1561 = vmatprep.subr.mxu0 %v1560
    %v1562 = vand.u32 %v92, 4294901760
    %1563 = vmatpush1.msra.mxu0 %v1562
    %v1564 = vand.u32 %v89, 4294901760
    %1565 = vmatprep.subr.mxu0 %v1564
    %v1566 = vand.u32 %v88, 4294901760
    %1567 = vmatpush1.msra.mxu0 %v1566
    %v1568 = vand.u32 %v85, 4294901760
    %1569 = vmatprep.subr.mxu0 %v1568
    %v1570 = vand.u32 %v84, 4294901760
    %1571 = vmatpush1.msra.mxu0 %v1570
    %v1572 = vand.u32 %v81, 4294901760
    %1573 = vmatprep.subr.mxu0 %v1572
    %v1574 = vand.u32 %v80, 4294901760
    %1575 = vmatpush1.msra.mxu0 %v1574
    %v1576 = vand.u32 %v205, 4294901760
    %1577 = vmatprep.subr.mxu0 %v1576
    %v1578 = vand.u32 %v204, 4294901760
    %1579 = vmatpush2.msra.mxu0 %v1578
    %v1580 = vand.u32 %v201, 4294901760
    %1581 = vmatprep.subr.mxu0 %v1580
    %v1582 = vand.u32 %v200, 4294901760
    %1583 = vmatpush2.msra.mxu0 %v1582
    %v1584 = vand.u32 %v197, 4294901760
    %1585 = vmatprep.subr.mxu0 %v1584
    %v1586 = vand.u32 %v196, 4294901760
    %1587 = vmatpush2.msra.mxu0 %v1586
    %v1588 = vand.u32 %v193, 4294901760
    %1589 = vmatprep.subr.mxu0 %v1588
    %v1590 = vand.u32 %v192, 4294901760
    %1591 = vmatpush2.msra.mxu0 %v1590
    %v1592 = vand.u32 %v189, 4294901760
    %1593 = vmatprep.subr.mxu0 %v1592
    %v1594 = vand.u32 %v188, 4294901760
    %1595 = vmatpush2.msra.mxu0 %v1594
    %v1596 = vand.u32 %v185, 4294901760
    %1597 = vmatprep.subr.mxu0 %v1596
    %v1598 = vand.u32 %v184, 4294901760
    %1599 = vmatpush2.msra.mxu0 %v1598
    %v1600 = vand.u32 %v181, 4294901760
    %1601 = vmatprep.subr.mxu0 %v1600
    %v1602 = vand.u32 %v180, 4294901760
    %1603 = vmatpush2.msra.mxu0 %v1602
    %v1604 = vand.u32 %v177, 4294901760
    %1605 = vmatprep.subr.mxu0 %v1604
    %v1606 = vand.u32 %v176, 4294901760
    %1607 = vmatpush2.msra.mxu0 %v1606
    %v1608 = vand.u32 %v173, 4294901760
    %1609 = vmatprep.subr.mxu0 %v1608
    %v1610 = vand.u32 %v172, 4294901760
    %1611 = vmatpush2.msra.mxu0 %v1610
    %v1612 = vand.u32 %v169, 4294901760
    %1613 = vmatprep.subr.mxu0 %v1612
    %v1614 = vand.u32 %v168, 4294901760
    %1615 = vmatpush2.msra.mxu0 %v1614
    %v1616 = vand.u32 %v165, 4294901760
    %1617 = vmatprep.subr.mxu0 %v1616
    %v1618 = vand.u32 %v164, 4294901760
    %1619 = vmatpush2.msra.mxu0 %v1618
    %v1620 = vand.u32 %v161, 4294901760
    %1621 = vmatprep.subr.mxu0 %v1620
    %v1622 = vand.u32 %v160, 4294901760
    %1623 = vmatpush2.msra.mxu0 %v1622
    %v1624 = vand.u32 %v157, 4294901760
    %1625 = vmatprep.subr.mxu0 %v1624
    %v1626 = vand.u32 %v156, 4294901760
    %1627 = vmatpush2.msra.mxu0 %v1626
    %v1628 = vand.u32 %v153, 4294901760
    %1629 = vmatprep.subr.mxu0 %v1628
    %v1630 = vand.u32 %v152, 4294901760
    %1631 = vmatpush2.msra.mxu0 %v1630
    %v1632 = vand.u32 %v149, 4294901760
    %1633 = vmatprep.subr.mxu0 %v1632
    %v1634 = vand.u32 %v148, 4294901760
    %1635 = vmatpush2.msra.mxu0 %v1634
    %v1636 = vand.u32 %v145, 4294901760
    %1637 = vmatprep.subr.mxu0 %v1636
    %v1638 = vand.u32 %v144, 4294901760
    %1639 = vmatpush2.msra.mxu0 %v1638
    %v1640 = vand.u32 %v77, 4294901760
    %v1641 = vsub.f32 %v77, %v1640
    %v1642 = vand.u32 %v1641, 4294901760
    %v1643 = vsub.f32 %v1641, %v1642
    %v1644 = vand.u32 %v1643, 4294901760
    %1645 = vmatprep.mubr.f32.mxu0 %v1644
    %v1646 = vand.u32 %v76, 4294901760
    %v1647 = vsub.f32 %v76, %v1646
    %v1648 = vand.u32 %v1647, 4294901760
    %v1649 = vsub.f32 %v1647, %v1648
    %v1650 = vand.u32 %v1649, 4294901760
    %1651 = vmatmul.mubr.f32.gmra.mxu0 %v1650
    %v1652 = vpop.f32.mrf.mxu0
    %v1653 = vadd.f32 %v219, %v1652
    %v1654 = vpop.f32.mrf.mxu0
    %v1655 = vadd.f32 %v223, %v1654
    %1656 = vdwg.mxu0
    %v1657 = vand.u32 %v141, 4294901760
    %v1658 = vsub.f32 %v141, %v1657
    %v1659 = vand.u32 %v1658, 4294901760
    %v1660 = vsub.f32 %v1658, %v1659
    %v1661 = vand.u32 %v1660, 4294901760
    %1662 = vmatprep.subr.mxu0 %v1661
    %v1663 = vand.u32 %v140, 4294901760
    %v1664 = vsub.f32 %v140, %v1663
    %v1665 = vand.u32 %v1664, 4294901760
    %v1666 = vsub.f32 %v1664, %v1665
    %v1667 = vand.u32 %v1666, 4294901760
    %1668 = vmatpush1.msra.mxu0 %v1667
    %v1669 = vand.u32 %v137, 4294901760
    %v1670 = vsub.f32 %v137, %v1669
    %v1671 = vand.u32 %v1670, 4294901760
    %v1672 = vsub.f32 %v1670, %v1671
    %v1673 = vand.u32 %v1672, 4294901760
    %1674 = vmatprep.subr.mxu0 %v1673
    %v1675 = vand.u32 %v136, 4294901760
    %v1676 = vsub.f32 %v136, %v1675
    %v1677 = vand.u32 %v1676, 4294901760
    %v1678 = vsub.f32 %v1676, %v1677
    %v1679 = vand.u32 %v1678, 4294901760
    %1680 = vmatpush1.msra.mxu0 %v1679
    %v1681 = vand.u32 %v133, 4294901760
    %v1682 = vsub.f32 %v133, %v1681
    %v1683 = vand.u32 %v1682, 4294901760
    %v1684 = vsub.f32 %v1682, %v1683
    %v1685 = vand.u32 %v1684, 4294901760
    %1686 = vmatprep.subr.mxu0 %v1685
    %v1687 = vand.u32 %v132, 4294901760
    %v1688 = vsub.f32 %v132, %v1687
    %v1689 = vand.u32 %v1688, 4294901760
    %v1690 = vsub.f32 %v1688, %v1689
    %v1691 = vand.u32 %v1690, 4294901760
    %1692 = vmatpush1.msra.mxu0 %v1691
    %v1693 = vand.u32 %v129, 4294901760
    %v1694 = vsub.f32 %v129, %v1693
    %v1695 = vand.u32 %v1694, 4294901760
    %v1696 = vsub.f32 %v1694, %v1695
    %v1697 = vand.u32 %v1696, 4294901760
    %1698 = vmatprep.subr.mxu0 %v1697
    %v1699 = vand.u32 %v128, 4294901760
    %v1700 = vsub.f32 %v128, %v1699
    %v1701 = vand.u32 %v1700, 4294901760
    %v1702 = vsub.f32 %v1700, %v1701
    %v1703 = vand.u32 %v1702, 4294901760
    %1704 = vmatpush1.msra.mxu0 %v1703
    %v1705 = vand.u32 %v125, 4294901760
    %v1706 = vsub.f32 %v125, %v1705
    %v1707 = vand.u32 %v1706, 4294901760
    %v1708 = vsub.f32 %v1706, %v1707
    %v1709 = vand.u32 %v1708, 4294901760
    %1710 = vmatprep.subr.mxu0 %v1709
    %v1711 = vand.u32 %v124, 4294901760
    %v1712 = vsub.f32 %v124, %v1711
    %v1713 = vand.u32 %v1712, 4294901760
    %v1714 = vsub.f32 %v1712, %v1713
    %v1715 = vand.u32 %v1714, 4294901760
    %1716 = vmatpush1.msra.mxu0 %v1715
    %v1717 = vand.u32 %v121, 4294901760
    %v1718 = vsub.f32 %v121, %v1717
    %v1719 = vand.u32 %v1718, 4294901760
    %v1720 = vsub.f32 %v1718, %v1719
    %v1721 = vand.u32 %v1720, 4294901760
    %1722 = vmatprep.subr.mxu0 %v1721
    %v1723 = vand.u32 %v120, 4294901760
    %v1724 = vsub.f32 %v120, %v1723
    %v1725 = vand.u32 %v1724, 4294901760
    %v1726 = vsub.f32 %v1724, %v1725
    %v1727 = vand.u32 %v1726, 4294901760
    %1728 = vmatpush1.msra.mxu0 %v1727
    %v1729 = vand.u32 %v117, 4294901760
    %v1730 = vsub.f32 %v117, %v1729
    %v1731 = vand.u32 %v1730, 4294901760
    %v1732 = vsub.f32 %v1730, %v1731
    %v1733 = vand.u32 %v1732, 4294901760
    %1734 = vmatprep.subr.mxu0 %v1733
    %v1735 = vand.u32 %v116, 4294901760
    %v1736 = vsub.f32 %v116, %v1735
    %v1737 = vand.u32 %v1736, 4294901760
    %v1738 = vsub.f32 %v1736, %v1737
    %v1739 = vand.u32 %v1738, 4294901760
    %1740 = vmatpush1.msra.mxu0 %v1739
    %v1741 = vand.u32 %v113, 4294901760
    %v1742 = vsub.f32 %v113, %v1741
    %v1743 = vand.u32 %v1742, 4294901760
    %v1744 = vsub.f32 %v1742, %v1743
    %v1745 = vand.u32 %v1744, 4294901760
    %1746 = vmatprep.subr.mxu0 %v1745
    %v1747 = vand.u32 %v112, 4294901760
    %v1748 = vsub.f32 %v112, %v1747
    %v1749 = vand.u32 %v1748, 4294901760
    %v1750 = vsub.f32 %v1748, %v1749
    %v1751 = vand.u32 %v1750, 4294901760
    %1752 = vmatpush1.msra.mxu0 %v1751
    %v1753 = vand.u32 %v109, 4294901760
    %v1754 = vsub.f32 %v109, %v1753
    %v1755 = vand.u32 %v1754, 4294901760
    %v1756 = vsub.f32 %v1754, %v1755
    %v1757 = vand.u32 %v1756, 4294901760
    %1758 = vmatprep.subr.mxu0 %v1757
    %v1759 = vand.u32 %v108, 4294901760
    %v1760 = vsub.f32 %v108, %v1759
    %v1761 = vand.u32 %v1760, 4294901760
    %v1762 = vsub.f32 %v1760, %v1761
    %v1763 = vand.u32 %v1762, 4294901760
    %1764 = vmatpush1.msra.mxu0 %v1763
    %v1765 = vand.u32 %v105, 4294901760
    %v1766 = vsub.f32 %v105, %v1765
    %v1767 = vand.u32 %v1766, 4294901760
    %v1768 = vsub.f32 %v1766, %v1767
    %v1769 = vand.u32 %v1768, 4294901760
    %1770 = vmatprep.subr.mxu0 %v1769
    %v1771 = vand.u32 %v104, 4294901760
    %v1772 = vsub.f32 %v104, %v1771
    %v1773 = vand.u32 %v1772, 4294901760
    %v1774 = vsub.f32 %v1772, %v1773
    %v1775 = vand.u32 %v1774, 4294901760
    %1776 = vmatpush1.msra.mxu0 %v1775
    %v1777 = vand.u32 %v101, 4294901760
    %v1778 = vsub.f32 %v101, %v1777
    %v1779 = vand.u32 %v1778, 4294901760
    %v1780 = vsub.f32 %v1778, %v1779
    %v1781 = vand.u32 %v1780, 4294901760
    %1782 = vmatprep.subr.mxu0 %v1781
    %v1783 = vand.u32 %v100, 4294901760
    %v1784 = vsub.f32 %v100, %v1783
    %v1785 = vand.u32 %v1784, 4294901760
    %v1786 = vsub.f32 %v1784, %v1785
    %v1787 = vand.u32 %v1786, 4294901760
    %1788 = vmatpush1.msra.mxu0 %v1787
    %v1789 = vand.u32 %v97, 4294901760
    %v1790 = vsub.f32 %v97, %v1789
    %v1791 = vand.u32 %v1790, 4294901760
    %v1792 = vsub.f32 %v1790, %v1791
    %v1793 = vand.u32 %v1792, 4294901760
    %1794 = vmatprep.subr.mxu0 %v1793
    %v1795 = vand.u32 %v96, 4294901760
    %v1796 = vsub.f32 %v96, %v1795
    %v1797 = vand.u32 %v1796, 4294901760
    %v1798 = vsub.f32 %v1796, %v1797
    %v1799 = vand.u32 %v1798, 4294901760
    %1800 = vmatpush1.msra.mxu0 %v1799
    %v1801 = vand.u32 %v93, 4294901760
    %v1802 = vsub.f32 %v93, %v1801
    %v1803 = vand.u32 %v1802, 4294901760
    %v1804 = vsub.f32 %v1802, %v1803
    %v1805 = vand.u32 %v1804, 4294901760
    %1806 = vmatprep.subr.mxu0 %v1805
    %v1807 = vand.u32 %v92, 4294901760
    %v1808 = vsub.f32 %v92, %v1807
    %v1809 = vand.u32 %v1808, 4294901760
    %v1810 = vsub.f32 %v1808, %v1809
    %v1811 = vand.u32 %v1810, 4294901760
    %1812 = vmatpush1.msra.mxu0 %v1811
    %v1813 = vand.u32 %v89, 4294901760
    %v1814 = vsub.f32 %v89, %v1813
    %v1815 = vand.u32 %v1814, 4294901760
    %v1816 = vsub.f32 %v1814, %v1815
    %v1817 = vand.u32 %v1816, 4294901760
    %1818 = vmatprep.subr.mxu0 %v1817
    %v1819 = vand.u32 %v88, 4294901760
    %v1820 = vsub.f32 %v88, %v1819
    %v1821 = vand.u32 %v1820, 4294901760
    %v1822 = vsub.f32 %v1820, %v1821
    %v1823 = vand.u32 %v1822, 4294901760
    %1824 = vmatpush1.msra.mxu0 %v1823
    %v1825 = vand.u32 %v85, 4294901760
    %v1826 = vsub.f32 %v85, %v1825
    %v1827 = vand.u32 %v1826, 4294901760
    %v1828 = vsub.f32 %v1826, %v1827
    %v1829 = vand.u32 %v1828, 4294901760
    %1830 = vmatprep.subr.mxu0 %v1829
    %v1831 = vand.u32 %v84, 4294901760
    %v1832 = vsub.f32 %v84, %v1831
    %v1833 = vand.u32 %v1832, 4294901760
    %v1834 = vsub.f32 %v1832, %v1833
    %v1835 = vand.u32 %v1834, 4294901760
    %1836 = vmatpush1.msra.mxu0 %v1835
    %v1837 = vand.u32 %v81, 4294901760
    %v1838 = vsub.f32 %v81, %v1837
    %v1839 = vand.u32 %v1838, 4294901760
    %v1840 = vsub.f32 %v1838, %v1839
    %v1841 = vand.u32 %v1840, 4294901760
    %1842 = vmatprep.subr.mxu0 %v1841
    %v1843 = vand.u32 %v80, 4294901760
    %v1844 = vsub.f32 %v80, %v1843
    %v1845 = vand.u32 %v1844, 4294901760
    %v1846 = vsub.f32 %v1844, %v1845
    %v1847 = vand.u32 %v1846, 4294901760
    %1848 = vmatpush1.msra.mxu0 %v1847
    %v1849 = vand.u32 %v205, 4294901760
    %v1850 = vsub.f32 %v205, %v1849
    %v1851 = vand.u32 %v1850, 4294901760
    %v1852 = vsub.f32 %v1850, %v1851
    %v1853 = vand.u32 %v1852, 4294901760
    %1854 = vmatprep.subr.mxu0 %v1853
    %v1855 = vand.u32 %v204, 4294901760
    %v1856 = vsub.f32 %v204, %v1855
    %v1857 = vand.u32 %v1856, 4294901760
    %v1858 = vsub.f32 %v1856, %v1857
    %v1859 = vand.u32 %v1858, 4294901760
    %1860 = vmatpush2.msra.mxu0 %v1859
    %v1861 = vand.u32 %v201, 4294901760
    %v1862 = vsub.f32 %v201, %v1861
    %v1863 = vand.u32 %v1862, 4294901760
    %v1864 = vsub.f32 %v1862, %v1863
    %v1865 = vand.u32 %v1864, 4294901760
    %1866 = vmatprep.subr.mxu0 %v1865
    %v1867 = vand.u32 %v200, 4294901760
    %v1868 = vsub.f32 %v200, %v1867
    %v1869 = vand.u32 %v1868, 4294901760
    %v1870 = vsub.f32 %v1868, %v1869
    %v1871 = vand.u32 %v1870, 4294901760
    %1872 = vmatpush2.msra.mxu0 %v1871
    %v1873 = vand.u32 %v197, 4294901760
    %v1874 = vsub.f32 %v197, %v1873
    %v1875 = vand.u32 %v1874, 4294901760
    %v1876 = vsub.f32 %v1874, %v1875
    %v1877 = vand.u32 %v1876, 4294901760
    %1878 = vmatprep.subr.mxu0 %v1877
    %v1879 = vand.u32 %v196, 4294901760
    %v1880 = vsub.f32 %v196, %v1879
    %v1881 = vand.u32 %v1880, 4294901760
    %v1882 = vsub.f32 %v1880, %v1881
    %v1883 = vand.u32 %v1882, 4294901760
    %1884 = vmatpush2.msra.mxu0 %v1883
    %v1885 = vand.u32 %v193, 4294901760
    %v1886 = vsub.f32 %v193, %v1885
    %v1887 = vand.u32 %v1886, 4294901760
    %v1888 = vsub.f32 %v1886, %v1887
    %v1889 = vand.u32 %v1888, 4294901760
    %1890 = vmatprep.subr.mxu0 %v1889
    %v1891 = vand.u32 %v192, 4294901760
    %v1892 = vsub.f32 %v192, %v1891
    %v1893 = vand.u32 %v1892, 4294901760
    %v1894 = vsub.f32 %v1892, %v1893
    %v1895 = vand.u32 %v1894, 4294901760
    %1896 = vmatpush2.msra.mxu0 %v1895
    %v1897 = vand.u32 %v189, 4294901760
    %v1898 = vsub.f32 %v189, %v1897
    %v1899 = vand.u32 %v1898, 4294901760
    %v1900 = vsub.f32 %v1898, %v1899
    %v1901 = vand.u32 %v1900, 4294901760
    %1902 = vmatprep.subr.mxu0 %v1901
    %v1903 = vand.u32 %v188, 4294901760
    %v1904 = vsub.f32 %v188, %v1903
    %v1905 = vand.u32 %v1904, 4294901760
    %v1906 = vsub.f32 %v1904, %v1905
    %v1907 = vand.u32 %v1906, 4294901760
    %1908 = vmatpush2.msra.mxu0 %v1907
    %v1909 = vand.u32 %v185, 4294901760
    %v1910 = vsub.f32 %v185, %v1909
    %v1911 = vand.u32 %v1910, 4294901760
    %v1912 = vsub.f32 %v1910, %v1911
    %v1913 = vand.u32 %v1912, 4294901760
    %1914 = vmatprep.subr.mxu0 %v1913
    %v1915 = vand.u32 %v184, 4294901760
    %v1916 = vsub.f32 %v184, %v1915
    %v1917 = vand.u32 %v1916, 4294901760
    %v1918 = vsub.f32 %v1916, %v1917
    %v1919 = vand.u32 %v1918, 4294901760
    %1920 = vmatpush2.msra.mxu0 %v1919
    %v1921 = vand.u32 %v181, 4294901760
    %v1922 = vsub.f32 %v181, %v1921
    %v1923 = vand.u32 %v1922, 4294901760
    %v1924 = vsub.f32 %v1922, %v1923
    %v1925 = vand.u32 %v1924, 4294901760
    %1926 = vmatprep.subr.mxu0 %v1925
    %v1927 = vand.u32 %v180, 4294901760
    %v1928 = vsub.f32 %v180, %v1927
    %v1929 = vand.u32 %v1928, 4294901760
    %v1930 = vsub.f32 %v1928, %v1929
    %v1931 = vand.u32 %v1930, 4294901760
    %1932 = vmatpush2.msra.mxu0 %v1931
    %v1933 = vand.u32 %v177, 4294901760
    %v1934 = vsub.f32 %v177, %v1933
    %v1935 = vand.u32 %v1934, 4294901760
    %v1936 = vsub.f32 %v1934, %v1935
    %v1937 = vand.u32 %v1936, 4294901760
    %1938 = vmatprep.subr.mxu0 %v1937
    %v1939 = vand.u32 %v176, 4294901760
    %v1940 = vsub.f32 %v176, %v1939
    %v1941 = vand.u32 %v1940, 4294901760
    %v1942 = vsub.f32 %v1940, %v1941
    %v1943 = vand.u32 %v1942, 4294901760
    %1944 = vmatpush2.msra.mxu0 %v1943
    %v1945 = vand.u32 %v173, 4294901760
    %v1946 = vsub.f32 %v173, %v1945
    %v1947 = vand.u32 %v1946, 4294901760
    %v1948 = vsub.f32 %v1946, %v1947
    %v1949 = vand.u32 %v1948, 4294901760
    %1950 = vmatprep.subr.mxu0 %v1949
    %v1951 = vand.u32 %v172, 4294901760
    %v1952 = vsub.f32 %v172, %v1951
    %v1953 = vand.u32 %v1952, 4294901760
    %v1954 = vsub.f32 %v1952, %v1953
    %v1955 = vand.u32 %v1954, 4294901760
    %1956 = vmatpush2.msra.mxu0 %v1955
    %v1957 = vand.u32 %v169, 4294901760
    %v1958 = vsub.f32 %v169, %v1957
    %v1959 = vand.u32 %v1958, 4294901760
    %v1960 = vsub.f32 %v1958, %v1959
    %v1961 = vand.u32 %v1960, 4294901760
    %1962 = vmatprep.subr.mxu0 %v1961
    %v1963 = vand.u32 %v168, 4294901760
    %v1964 = vsub.f32 %v168, %v1963
    %v1965 = vand.u32 %v1964, 4294901760
    %v1966 = vsub.f32 %v1964, %v1965
    %v1967 = vand.u32 %v1966, 4294901760
    %1968 = vmatpush2.msra.mxu0 %v1967
    %v1969 = vand.u32 %v165, 4294901760
    %v1970 = vsub.f32 %v165, %v1969
    %v1971 = vand.u32 %v1970, 4294901760
    %v1972 = vsub.f32 %v1970, %v1971
    %v1973 = vand.u32 %v1972, 4294901760
    %1974 = vmatprep.subr.mxu0 %v1973
    %v1975 = vand.u32 %v164, 4294901760
    %v1976 = vsub.f32 %v164, %v1975
    %v1977 = vand.u32 %v1976, 4294901760
    %v1978 = vsub.f32 %v1976, %v1977
    %v1979 = vand.u32 %v1978, 4294901760
    %1980 = vmatpush2.msra.mxu0 %v1979
    %v1981 = vand.u32 %v161, 4294901760
    %v1982 = vsub.f32 %v161, %v1981
    %v1983 = vand.u32 %v1982, 4294901760
    %v1984 = vsub.f32 %v1982, %v1983
    %v1985 = vand.u32 %v1984, 4294901760
    %1986 = vmatprep.subr.mxu0 %v1985
    %v1987 = vand.u32 %v160, 4294901760
    %v1988 = vsub.f32 %v160, %v1987
    %v1989 = vand.u32 %v1988, 4294901760
    %v1990 = vsub.f32 %v1988, %v1989
    %v1991 = vand.u32 %v1990, 4294901760
    %1992 = vmatpush2.msra.mxu0 %v1991
    %v1993 = vand.u32 %v157, 4294901760
    %v1994 = vsub.f32 %v157, %v1993
    %v1995 = vand.u32 %v1994, 4294901760
    %v1996 = vsub.f32 %v1994, %v1995
    %v1997 = vand.u32 %v1996, 4294901760
    %1998 = vmatprep.subr.mxu0 %v1997
    %v1999 = vand.u32 %v156, 4294901760
    %v2000 = vsub.f32 %v156, %v1999
    %v2001 = vand.u32 %v2000, 4294901760
    %v2002 = vsub.f32 %v2000, %v2001
    %v2003 = vand.u32 %v2002, 4294901760
    %2004 = vmatpush2.msra.mxu0 %v2003
    %v2005 = vand.u32 %v153, 4294901760
    %v2006 = vsub.f32 %v153, %v2005
    %v2007 = vand.u32 %v2006, 4294901760
    %v2008 = vsub.f32 %v2006, %v2007
    %v2009 = vand.u32 %v2008, 4294901760
    %2010 = vmatprep.subr.mxu0 %v2009
    %v2011 = vand.u32 %v152, 4294901760
    %v2012 = vsub.f32 %v152, %v2011
    %v2013 = vand.u32 %v2012, 4294901760
    %v2014 = vsub.f32 %v2012, %v2013
    %v2015 = vand.u32 %v2014, 4294901760
    %2016 = vmatpush2.msra.mxu0 %v2015
    %v2017 = vand.u32 %v149, 4294901760
    %v2018 = vsub.f32 %v149, %v2017
    %v2019 = vand.u32 %v2018, 4294901760
    %v2020 = vsub.f32 %v2018, %v2019
    %v2021 = vand.u32 %v2020, 4294901760
    %2022 = vmatprep.subr.mxu0 %v2021
    %v2023 = vand.u32 %v148, 4294901760
    %v2024 = vsub.f32 %v148, %v2023
    %v2025 = vand.u32 %v2024, 4294901760
    %v2026 = vsub.f32 %v2024, %v2025
    %v2027 = vand.u32 %v2026, 4294901760
    %2028 = vmatpush2.msra.mxu0 %v2027
    %v2029 = vand.u32 %v145, 4294901760
    %v2030 = vsub.f32 %v145, %v2029
    %v2031 = vand.u32 %v2030, 4294901760
    %v2032 = vsub.f32 %v2030, %v2031
    %v2033 = vand.u32 %v2032, 4294901760
    %2034 = vmatprep.subr.mxu0 %v2033
    %v2035 = vand.u32 %v144, 4294901760
    %v2036 = vsub.f32 %v144, %v2035
    %v2037 = vand.u32 %v2036, 4294901760
    %v2038 = vsub.f32 %v2036, %v2037
    %v2039 = vand.u32 %v2038, 4294901760
    %2040 = vmatpush2.msra.mxu0 %v2039
    %v2041 = vand.u32 %v77, 4294901760
    %2042 = vmatprep.mubr.f32.mxu0 %v2041
    %v2043 = vand.u32 %v76, 4294901760
    %2044 = vmatmul.mubr.f32.gmra.mxu0 %v2043
    %v2045 = vpop.f32.mrf.mxu0
    %v2046 = vadd.f32 %v1653, %v2045
    %v2047 = vpop.f32.mrf.mxu0
    %v2048 = vadd.f32 %v1655, %v2047
    %2049 = vdwg.mxu0
    %v2050 = vand.u32 %v141, 4294901760
    %v2051 = vsub.f32 %v141, %v2050
    %2052 = vmatprep.subr.mxu0 %v2051
    %v2053 = vand.u32 %v140, 4294901760
    %v2054 = vsub.f32 %v140, %v2053
    %2055 = vmatpush1.msra.mxu0 %v2054
    %v2056 = vand.u32 %v137, 4294901760
    %v2057 = vsub.f32 %v137, %v2056
    %2058 = vmatprep.subr.mxu0 %v2057
    %v2059 = vand.u32 %v136, 4294901760
    %v2060 = vsub.f32 %v136, %v2059
    %2061 = vmatpush1.msra.mxu0 %v2060
    %v2062 = vand.u32 %v133, 4294901760
    %v2063 = vsub.f32 %v133, %v2062
    %2064 = vmatprep.subr.mxu0 %v2063
    %v2065 = vand.u32 %v132, 4294901760
    %v2066 = vsub.f32 %v132, %v2065
    %2067 = vmatpush1.msra.mxu0 %v2066
    %v2068 = vand.u32 %v129, 4294901760
    %v2069 = vsub.f32 %v129, %v2068
    %2070 = vmatprep.subr.mxu0 %v2069
    %v2071 = vand.u32 %v128, 4294901760
    %v2072 = vsub.f32 %v128, %v2071
    %2073 = vmatpush1.msra.mxu0 %v2072
    %v2074 = vand.u32 %v125, 4294901760
    %v2075 = vsub.f32 %v125, %v2074
    %2076 = vmatprep.subr.mxu0 %v2075
    %v2077 = vand.u32 %v124, 4294901760
    %v2078 = vsub.f32 %v124, %v2077
    %2079 = vmatpush1.msra.mxu0 %v2078
    %v2080 = vand.u32 %v121, 4294901760
    %v2081 = vsub.f32 %v121, %v2080
    %2082 = vmatprep.subr.mxu0 %v2081
    %v2083 = vand.u32 %v120, 4294901760
    %v2084 = vsub.f32 %v120, %v2083
    %2085 = vmatpush1.msra.mxu0 %v2084
    %v2086 = vand.u32 %v117, 4294901760
    %v2087 = vsub.f32 %v117, %v2086
    %2088 = vmatprep.subr.mxu0 %v2087
    %v2089 = vand.u32 %v116, 4294901760
    %v2090 = vsub.f32 %v116, %v2089
    %2091 = vmatpush1.msra.mxu0 %v2090
    %v2092 = vand.u32 %v113, 4294901760
    %v2093 = vsub.f32 %v113, %v2092
    %2094 = vmatprep.subr.mxu0 %v2093
    %v2095 = vand.u32 %v112, 4294901760
    %v2096 = vsub.f32 %v112, %v2095
    %2097 = vmatpush1.msra.mxu0 %v2096
    %v2098 = vand.u32 %v109, 4294901760
    %v2099 = vsub.f32 %v109, %v2098
    %2100 = vmatprep.subr.mxu0 %v2099
    %v2101 = vand.u32 %v108, 4294901760
    %v2102 = vsub.f32 %v108, %v2101
    %2103 = vmatpush1.msra.mxu0 %v2102
    %v2104 = vand.u32 %v105, 4294901760
    %v2105 = vsub.f32 %v105, %v2104
    %2106 = vmatprep.subr.mxu0 %v2105
    %v2107 = vand.u32 %v104, 4294901760
    %v2108 = vsub.f32 %v104, %v2107
    %2109 = vmatpush1.msra.mxu0 %v2108
    %v2110 = vand.u32 %v101, 4294901760
    %v2111 = vsub.f32 %v101, %v2110
    %2112 = vmatprep.subr.mxu0 %v2111
    %v2113 = vand.u32 %v100, 4294901760
    %v2114 = vsub.f32 %v100, %v2113
    %2115 = vmatpush1.msra.mxu0 %v2114
    %v2116 = vand.u32 %v97, 4294901760
    %v2117 = vsub.f32 %v97, %v2116
    %2118 = vmatprep.subr.mxu0 %v2117
    %v2119 = vand.u32 %v96, 4294901760
    %v2120 = vsub.f32 %v96, %v2119
    %2121 = vmatpush1.msra.mxu0 %v2120
    %v2122 = vand.u32 %v93, 4294901760
    %v2123 = vsub.f32 %v93, %v2122
    %2124 = vmatprep.subr.mxu0 %v2123
    %v2125 = vand.u32 %v92, 4294901760
    %v2126 = vsub.f32 %v92, %v2125
    %2127 = vmatpush1.msra.mxu0 %v2126
    %v2128 = vand.u32 %v89, 4294901760
    %v2129 = vsub.f32 %v89, %v2128
    %2130 = vmatprep.subr.mxu0 %v2129
    %v2131 = vand.u32 %v88, 4294901760
    %v2132 = vsub.f32 %v88, %v2131
    %2133 = vmatpush1.msra.mxu0 %v2132
    %v2134 = vand.u32 %v85, 4294901760
    %v2135 = vsub.f32 %v85, %v2134
    %2136 = vmatprep.subr.mxu0 %v2135
    %v2137 = vand.u32 %v84, 4294901760
    %v2138 = vsub.f32 %v84, %v2137
    %2139 = vmatpush1.msra.mxu0 %v2138
    %v2140 = vand.u32 %v81, 4294901760
    %v2141 = vsub.f32 %v81, %v2140
    %2142 = vmatprep.subr.mxu0 %v2141
    %v2143 = vand.u32 %v80, 4294901760
    %v2144 = vsub.f32 %v80, %v2143
    %2145 = vmatpush1.msra.mxu0 %v2144
    %v2146 = vand.u32 %v205, 4294901760
    %v2147 = vsub.f32 %v205, %v2146
    %2148 = vmatprep.subr.mxu0 %v2147
    %v2149 = vand.u32 %v204, 4294901760
    %v2150 = vsub.f32 %v204, %v2149
    %2151 = vmatpush2.msra.mxu0 %v2150
    %v2152 = vand.u32 %v201, 4294901760
    %v2153 = vsub.f32 %v201, %v2152
    %2154 = vmatprep.subr.mxu0 %v2153
    %v2155 = vand.u32 %v200, 4294901760
    %v2156 = vsub.f32 %v200, %v2155
    %2157 = vmatpush2.msra.mxu0 %v2156
    %v2158 = vand.u32 %v197, 4294901760
    %v2159 = vsub.f32 %v197, %v2158
    %2160 = vmatprep.subr.mxu0 %v2159
    %v2161 = vand.u32 %v196, 4294901760
    %v2162 = vsub.f32 %v196, %v2161
    %2163 = vmatpush2.msra.mxu0 %v2162
    %v2164 = vand.u32 %v193, 4294901760
    %v2165 = vsub.f32 %v193, %v2164
    %2166 = vmatprep.subr.mxu0 %v2165
    %v2167 = vand.u32 %v192, 4294901760
    %v2168 = vsub.f32 %v192, %v2167
    %2169 = vmatpush2.msra.mxu0 %v2168
    %v2170 = vand.u32 %v189, 4294901760
    %v2171 = vsub.f32 %v189, %v2170
    %2172 = vmatprep.subr.mxu0 %v2171
    %v2173 = vand.u32 %v188, 4294901760
    %v2174 = vsub.f32 %v188, %v2173
    %2175 = vmatpush2.msra.mxu0 %v2174
    %v2176 = vand.u32 %v185, 4294901760
    %v2177 = vsub.f32 %v185, %v2176
    %2178 = vmatprep.subr.mxu0 %v2177
    %v2179 = vand.u32 %v184, 4294901760
    %v2180 = vsub.f32 %v184, %v2179
    %2181 = vmatpush2.msra.mxu0 %v2180
    %v2182 = vand.u32 %v181, 4294901760
    %v2183 = vsub.f32 %v181, %v2182
    %2184 = vmatprep.subr.mxu0 %v2183
    %v2185 = vand.u32 %v180, 4294901760
    %v2186 = vsub.f32 %v180, %v2185
    %2187 = vmatpush2.msra.mxu0 %v2186
    %v2188 = vand.u32 %v177, 4294901760
    %v2189 = vsub.f32 %v177, %v2188
    %2190 = vmatprep.subr.mxu0 %v2189
    %v2191 = vand.u32 %v176, 4294901760
    %v2192 = vsub.f32 %v176, %v2191
    %2193 = vmatpush2.msra.mxu0 %v2192
    %v2194 = vand.u32 %v173, 4294901760
    %v2195 = vsub.f32 %v173, %v2194
    %2196 = vmatprep.subr.mxu0 %v2195
    %v2197 = vand.u32 %v172, 4294901760
    %v2198 = vsub.f32 %v172, %v2197
    %2199 = vmatpush2.msra.mxu0 %v2198
    %v2200 = vand.u32 %v169, 4294901760
    %v2201 = vsub.f32 %v169, %v2200
    %2202 = vmatprep.subr.mxu0 %v2201
    %v2203 = vand.u32 %v168, 4294901760
    %v2204 = vsub.f32 %v168, %v2203
    %2205 = vmatpush2.msra.mxu0 %v2204
    %v2206 = vand.u32 %v165, 4294901760
    %v2207 = vsub.f32 %v165, %v2206
    %2208 = vmatprep.subr.mxu0 %v2207
    %v2209 = vand.u32 %v164, 4294901760
    %v2210 = vsub.f32 %v164, %v2209
    %2211 = vmatpush2.msra.mxu0 %v2210
    %v2212 = vand.u32 %v161, 4294901760
    %v2213 = vsub.f32 %v161, %v2212
    %2214 = vmatprep.subr.mxu0 %v2213
    %v2215 = vand.u32 %v160, 4294901760
    %v2216 = vsub.f32 %v160, %v2215
    %2217 = vmatpush2.msra.mxu0 %v2216
    %v2218 = vand.u32 %v157, 4294901760
    %v2219 = vsub.f32 %v157, %v2218
    %2220 = vmatprep.subr.mxu0 %v2219
    %v2221 = vand.u32 %v156, 4294901760
    %v2222 = vsub.f32 %v156, %v2221
    %2223 = vmatpush2.msra.mxu0 %v2222
    %v2224 = vand.u32 %v153, 4294901760
    %v2225 = vsub.f32 %v153, %v2224
    %2226 = vmatprep.subr.mxu0 %v2225
    %v2227 = vand.u32 %v152, 4294901760
    %v2228 = vsub.f32 %v152, %v2227
    %2229 = vmatpush2.msra.mxu0 %v2228
    %v2230 = vand.u32 %v149, 4294901760
    %v2231 = vsub.f32 %v149, %v2230
    %2232 = vmatprep.subr.mxu0 %v2231
    %v2233 = vand.u32 %v148, 4294901760
    %v2234 = vsub.f32 %v148, %v2233
    %2235 = vmatpush2.msra.mxu0 %v2234
    %v2236 = vand.u32 %v145, 4294901760
    %v2237 = vsub.f32 %v145, %v2236
    %2238 = vmatprep.subr.mxu0 %v2237
    %v2239 = vand.u32 %v144, 4294901760
    %v2240 = vsub.f32 %v144, %v2239
    %2241 = vmatpush2.msra.mxu0 %v2240
    %v2242 = vand.u32 %v77, 4294901760
    %v2243 = vsub.f32 %v77, %v2242
    %2244 = vmatprep.mubr.f32.mxu0 %v2243
    %v2245 = vand.u32 %v76, 4294901760
    %v2246 = vsub.f32 %v76, %v2245
    %2247 = vmatmul.mubr.f32.gmra.mxu0 %v2246
    %v2248 = vpop.f32.mrf.mxu0
    %v2249 = vadd.f32 %v2046, %v2248
    %v2250 = vpop.f32.mrf.mxu0
    %v2251 = vadd.f32 %v2048, %v2250
    %2252 = vdwg.mxu0
    %v2253 = vand.u32 %v141, 4294901760
    %2254 = vmatprep.subr.mxu0 %v2253
    %v2255 = vand.u32 %v140, 4294901760
    %2256 = vmatpush1.msra.mxu0 %v2255
    %v2257 = vand.u32 %v137, 4294901760
    %2258 = vmatprep.subr.mxu0 %v2257
    %v2259 = vand.u32 %v136, 4294901760
    %2260 = vmatpush1.msra.mxu0 %v2259
    %v2261 = vand.u32 %v133, 4294901760
    %2262 = vmatprep.subr.mxu0 %v2261
    %v2263 = vand.u32 %v132, 4294901760
    %2264 = vmatpush1.msra.mxu0 %v2263
    %v2265 = vand.u32 %v129, 4294901760
    %2266 = vmatprep.subr.mxu0 %v2265
    %v2267 = vand.u32 %v128, 4294901760
    %2268 = vmatpush1.msra.mxu0 %v2267
    %v2269 = vand.u32 %v125, 4294901760
    %2270 = vmatprep.subr.mxu0 %v2269
    %v2271 = vand.u32 %v124, 4294901760
    %2272 = vmatpush1.msra.mxu0 %v2271
    %v2273 = vand.u32 %v121, 4294901760
    %2274 = vmatprep.subr.mxu0 %v2273
    %v2275 = vand.u32 %v120, 4294901760
    %2276 = vmatpush1.msra.mxu0 %v2275
    %v2277 = vand.u32 %v117, 4294901760
    %2278 = vmatprep.subr.mxu0 %v2277
    %v2279 = vand.u32 %v116, 4294901760
    %2280 = vmatpush1.msra.mxu0 %v2279
    %v2281 = vand.u32 %v113, 4294901760
    %2282 = vmatprep.subr.mxu0 %v2281
    %v2283 = vand.u32 %v112, 4294901760
    %2284 = vmatpush1.msra.mxu0 %v2283
    %v2285 = vand.u32 %v109, 4294901760
    %2286 = vmatprep.subr.mxu0 %v2285
    %v2287 = vand.u32 %v108, 4294901760
    %2288 = vmatpush1.msra.mxu0 %v2287
    %v2289 = vand.u32 %v105, 4294901760
    %2290 = vmatprep.subr.mxu0 %v2289
    %v2291 = vand.u32 %v104, 4294901760
    %2292 = vmatpush1.msra.mxu0 %v2291
    %v2293 = vand.u32 %v101, 4294901760
    %2294 = vmatprep.subr.mxu0 %v2293
    %v2295 = vand.u32 %v100, 4294901760
    %2296 = vmatpush1.msra.mxu0 %v2295
    %v2297 = vand.u32 %v97, 4294901760
    %2298 = vmatprep.subr.mxu0 %v2297
    %v2299 = vand.u32 %v96, 4294901760
    %2300 = vmatpush1.msra.mxu0 %v2299
    %v2301 = vand.u32 %v93, 4294901760
    %2302 = vmatprep.subr.mxu0 %v2301
    %v2303 = vand.u32 %v92, 4294901760
    %2304 = vmatpush1.msra.mxu0 %v2303
    %v2305 = vand.u32 %v89, 4294901760
    %2306 = vmatprep.subr.mxu0 %v2305
    %v2307 = vand.u32 %v88, 4294901760
    %2308 = vmatpush1.msra.mxu0 %v2307
    %v2309 = vand.u32 %v85, 4294901760
    %2310 = vmatprep.subr.mxu0 %v2309
    %v2311 = vand.u32 %v84, 4294901760
    %2312 = vmatpush1.msra.mxu0 %v2311
    %v2313 = vand.u32 %v81, 4294901760
    %2314 = vmatprep.subr.mxu0 %v2313
    %v2315 = vand.u32 %v80, 4294901760
    %2316 = vmatpush1.msra.mxu0 %v2315
    %v2317 = vand.u32 %v205, 4294901760
    %2318 = vmatprep.subr.mxu0 %v2317
    %v2319 = vand.u32 %v204, 4294901760
    %2320 = vmatpush2.msra.mxu0 %v2319
    %v2321 = vand.u32 %v201, 4294901760
    %2322 = vmatprep.subr.mxu0 %v2321
    %v2323 = vand.u32 %v200, 4294901760
    %2324 = vmatpush2.msra.mxu0 %v2323
    %v2325 = vand.u32 %v197, 4294901760
    %2326 = vmatprep.subr.mxu0 %v2325
    %v2327 = vand.u32 %v196, 4294901760
    %2328 = vmatpush2.msra.mxu0 %v2327
    %v2329 = vand.u32 %v193, 4294901760
    %2330 = vmatprep.subr.mxu0 %v2329
    %v2331 = vand.u32 %v192, 4294901760
    %2332 = vmatpush2.msra.mxu0 %v2331
    %v2333 = vand.u32 %v189, 4294901760
    %2334 = vmatprep.subr.mxu0 %v2333
    %v2335 = vand.u32 %v188, 4294901760
    %2336 = vmatpush2.msra.mxu0 %v2335
    %v2337 = vand.u32 %v185, 4294901760
    %2338 = vmatprep.subr.mxu0 %v2337
    %v2339 = vand.u32 %v184, 4294901760
    %2340 = vmatpush2.msra.mxu0 %v2339
    %v2341 = vand.u32 %v181, 4294901760
    %2342 = vmatprep.subr.mxu0 %v2341
    %v2343 = vand.u32 %v180, 4294901760
    %2344 = vmatpush2.msra.mxu0 %v2343
    %v2345 = vand.u32 %v177, 4294901760
    %2346 = vmatprep.subr.mxu0 %v2345
    %v2347 = vand.u32 %v176, 4294901760
    %2348 = vmatpush2.msra.mxu0 %v2347
    %v2349 = vand.u32 %v173, 4294901760
    %2350 = vmatprep.subr.mxu0 %v2349
    %v2351 = vand.u32 %v172, 4294901760
    %2352 = vmatpush2.msra.mxu0 %v2351
    %v2353 = vand.u32 %v169, 4294901760
    %2354 = vmatprep.subr.mxu0 %v2353
    %v2355 = vand.u32 %v168, 4294901760
    %2356 = vmatpush2.msra.mxu0 %v2355
    %v2357 = vand.u32 %v165, 4294901760
    %2358 = vmatprep.subr.mxu0 %v2357
    %v2359 = vand.u32 %v164, 4294901760
    %2360 = vmatpush2.msra.mxu0 %v2359
    %v2361 = vand.u32 %v161, 4294901760
    %2362 = vmatprep.subr.mxu0 %v2361
    %v2363 = vand.u32 %v160, 4294901760
    %2364 = vmatpush2.msra.mxu0 %v2363
    %v2365 = vand.u32 %v157, 4294901760
    %2366 = vmatprep.subr.mxu0 %v2365
    %v2367 = vand.u32 %v156, 4294901760
    %2368 = vmatpush2.msra.mxu0 %v2367
    %v2369 = vand.u32 %v153, 4294901760
    %2370 = vmatprep.subr.mxu0 %v2369
    %v2371 = vand.u32 %v152, 4294901760
    %2372 = vmatpush2.msra.mxu0 %v2371
    %v2373 = vand.u32 %v149, 4294901760
    %2374 = vmatprep.subr.mxu0 %v2373
    %v2375 = vand.u32 %v148, 4294901760
    %2376 = vmatpush2.msra.mxu0 %v2375
    %v2377 = vand.u32 %v145, 4294901760
    %2378 = vmatprep.subr.mxu0 %v2377
    %v2379 = vand.u32 %v144, 4294901760
    %2380 = vmatpush2.msra.mxu0 %v2379
    %v2381 = vand.u32 %v77, 4294901760
    %v2382 = vsub.f32 %v77, %v2381
    %v2383 = vand.u32 %v2382, 4294901760
    %2384 = vmatprep.mubr.f32.mxu0 %v2383
    %v2385 = vand.u32 %v76, 4294901760
    %v2386 = vsub.f32 %v76, %v2385
    %v2387 = vand.u32 %v2386, 4294901760
    %2388 = vmatmul.mubr.f32.gmra.mxu0 %v2387
    %v2389 = vpop.f32.mrf.mxu0
    %v2390 = vadd.f32 %v2249, %v2389
    %v2391 = vpop.f32.mrf.mxu0
    %v2392 = vadd.f32 %v2251, %v2391
    %2393 = vdwg.mxu0
    %v2394 = vand.u32 %v141, 4294901760
    %v2395 = vsub.f32 %v141, %v2394
    %v2396 = vand.u32 %v2395, 4294901760
    %2397 = vmatprep.subr.mxu0 %v2396
    %v2398 = vand.u32 %v140, 4294901760
    %v2399 = vsub.f32 %v140, %v2398
    %v2400 = vand.u32 %v2399, 4294901760
    %2401 = vmatpush1.msra.mxu0 %v2400
    %v2402 = vand.u32 %v137, 4294901760
    %v2403 = vsub.f32 %v137, %v2402
    %v2404 = vand.u32 %v2403, 4294901760
    %2405 = vmatprep.subr.mxu0 %v2404
    %v2406 = vand.u32 %v136, 4294901760
    %v2407 = vsub.f32 %v136, %v2406
    %v2408 = vand.u32 %v2407, 4294901760
    %2409 = vmatpush1.msra.mxu0 %v2408
    %v2410 = vand.u32 %v133, 4294901760
    %v2411 = vsub.f32 %v133, %v2410
    %v2412 = vand.u32 %v2411, 4294901760
    %2413 = vmatprep.subr.mxu0 %v2412
    %v2414 = vand.u32 %v132, 4294901760
    %v2415 = vsub.f32 %v132, %v2414
    %v2416 = vand.u32 %v2415, 4294901760
    %2417 = vmatpush1.msra.mxu0 %v2416
    %v2418 = vand.u32 %v129, 4294901760
    %v2419 = vsub.f32 %v129, %v2418
    %v2420 = vand.u32 %v2419, 4294901760
    %2421 = vmatprep.subr.mxu0 %v2420
    %v2422 = vand.u32 %v128, 4294901760
    %v2423 = vsub.f32 %v128, %v2422
    %v2424 = vand.u32 %v2423, 4294901760
    %2425 = vmatpush1.msra.mxu0 %v2424
    %v2426 = vand.u32 %v125, 4294901760
    %v2427 = vsub.f32 %v125, %v2426
    %v2428 = vand.u32 %v2427, 4294901760
    %2429 = vmatprep.subr.mxu0 %v2428
    %v2430 = vand.u32 %v124, 4294901760
    %v2431 = vsub.f32 %v124, %v2430
    %v2432 = vand.u32 %v2431, 4294901760
    %2433 = vmatpush1.msra.mxu0 %v2432
    %v2434 = vand.u32 %v121, 4294901760
    %v2435 = vsub.f32 %v121, %v2434
    %v2436 = vand.u32 %v2435, 4294901760
    %2437 = vmatprep.subr.mxu0 %v2436
    %v2438 = vand.u32 %v120, 4294901760
    %v2439 = vsub.f32 %v120, %v2438
    %v2440 = vand.u32 %v2439, 4294901760
    %2441 = vmatpush1.msra.mxu0 %v2440
    %v2442 = vand.u32 %v117, 4294901760
    %v2443 = vsub.f32 %v117, %v2442
    %v2444 = vand.u32 %v2443, 4294901760
    %2445 = vmatprep.subr.mxu0 %v2444
    %v2446 = vand.u32 %v116, 4294901760
    %v2447 = vsub.f32 %v116, %v2446
    %v2448 = vand.u32 %v2447, 4294901760
    %2449 = vmatpush1.msra.mxu0 %v2448
    %v2450 = vand.u32 %v113, 4294901760
    %v2451 = vsub.f32 %v113, %v2450
    %v2452 = vand.u32 %v2451, 4294901760
    %2453 = vmatprep.subr.mxu0 %v2452
    %v2454 = vand.u32 %v112, 4294901760
    %v2455 = vsub.f32 %v112, %v2454
    %v2456 = vand.u32 %v2455, 4294901760
    %2457 = vmatpush1.msra.mxu0 %v2456
    %v2458 = vand.u32 %v109, 4294901760
    %v2459 = vsub.f32 %v109, %v2458
    %v2460 = vand.u32 %v2459, 4294901760
    %2461 = vmatprep.subr.mxu0 %v2460
    %v2462 = vand.u32 %v108, 4294901760
    %v2463 = vsub.f32 %v108, %v2462
    %v2464 = vand.u32 %v2463, 4294901760
    %2465 = vmatpush1.msra.mxu0 %v2464
    %v2466 = vand.u32 %v105, 4294901760
    %v2467 = vsub.f32 %v105, %v2466
    %v2468 = vand.u32 %v2467, 4294901760
    %2469 = vmatprep.subr.mxu0 %v2468
    %v2470 = vand.u32 %v104, 4294901760
    %v2471 = vsub.f32 %v104, %v2470
    %v2472 = vand.u32 %v2471, 4294901760
    %2473 = vmatpush1.msra.mxu0 %v2472
    %v2474 = vand.u32 %v101, 4294901760
    %v2475 = vsub.f32 %v101, %v2474
    %v2476 = vand.u32 %v2475, 4294901760
    %2477 = vmatprep.subr.mxu0 %v2476
    %v2478 = vand.u32 %v100, 4294901760
    %v2479 = vsub.f32 %v100, %v2478
    %v2480 = vand.u32 %v2479, 4294901760
    %2481 = vmatpush1.msra.mxu0 %v2480
    %v2482 = vand.u32 %v97, 4294901760
    %v2483 = vsub.f32 %v97, %v2482
    %v2484 = vand.u32 %v2483, 4294901760
    %2485 = vmatprep.subr.mxu0 %v2484
    %v2486 = vand.u32 %v96, 4294901760
    %v2487 = vsub.f32 %v96, %v2486
    %v2488 = vand.u32 %v2487, 4294901760
    %2489 = vmatpush1.msra.mxu0 %v2488
    %v2490 = vand.u32 %v93, 4294901760
    %v2491 = vsub.f32 %v93, %v2490
    %v2492 = vand.u32 %v2491, 4294901760
    %2493 = vmatprep.subr.mxu0 %v2492
    %v2494 = vand.u32 %v92, 4294901760
    %v2495 = vsub.f32 %v92, %v2494
    %v2496 = vand.u32 %v2495, 4294901760
    %2497 = vmatpush1.msra.mxu0 %v2496
    %v2498 = vand.u32 %v89, 4294901760
    %v2499 = vsub.f32 %v89, %v2498
    %v2500 = vand.u32 %v2499, 4294901760
    %2501 = vmatprep.subr.mxu0 %v2500
    %v2502 = vand.u32 %v88, 4294901760
    %v2503 = vsub.f32 %v88, %v2502
    %v2504 = vand.u32 %v2503, 4294901760
    %2505 = vmatpush1.msra.mxu0 %v2504
    %v2506 = vand.u32 %v85, 4294901760
    %v2507 = vsub.f32 %v85, %v2506
    %v2508 = vand.u32 %v2507, 4294901760
    %2509 = vmatprep.subr.mxu0 %v2508
    %v2510 = vand.u32 %v84, 4294901760
    %v2511 = vsub.f32 %v84, %v2510
    %v2512 = vand.u32 %v2511, 4294901760
    %2513 = vmatpush1.msra.mxu0 %v2512
    %v2514 = vand.u32 %v81, 4294901760
    %v2515 = vsub.f32 %v81, %v2514
    %v2516 = vand.u32 %v2515, 4294901760
    %2517 = vmatprep.subr.mxu0 %v2516
    %v2518 = vand.u32 %v80, 4294901760
    %v2519 = vsub.f32 %v80, %v2518
    %v2520 = vand.u32 %v2519, 4294901760
    %2521 = vmatpush1.msra.mxu0 %v2520
    %v2522 = vand.u32 %v205, 4294901760
    %v2523 = vsub.f32 %v205, %v2522
    %v2524 = vand.u32 %v2523, 4294901760
    %2525 = vmatprep.subr.mxu0 %v2524
    %v2526 = vand.u32 %v204, 4294901760
    %v2527 = vsub.f32 %v204, %v2526
    %v2528 = vand.u32 %v2527, 4294901760
    %2529 = vmatpush2.msra.mxu0 %v2528
    %v2530 = vand.u32 %v201, 4294901760
    %v2531 = vsub.f32 %v201, %v2530
    %v2532 = vand.u32 %v2531, 4294901760
    %2533 = vmatprep.subr.mxu0 %v2532
    %v2534 = vand.u32 %v200, 4294901760
    %v2535 = vsub.f32 %v200, %v2534
    %v2536 = vand.u32 %v2535, 4294901760
    %2537 = vmatpush2.msra.mxu0 %v2536
    %v2538 = vand.u32 %v197, 4294901760
    %v2539 = vsub.f32 %v197, %v2538
    %v2540 = vand.u32 %v2539, 4294901760
    %2541 = vmatprep.subr.mxu0 %v2540
    %v2542 = vand.u32 %v196, 4294901760
    %v2543 = vsub.f32 %v196, %v2542
    %v2544 = vand.u32 %v2543, 4294901760
    %2545 = vmatpush2.msra.mxu0 %v2544
    %v2546 = vand.u32 %v193, 4294901760
    %v2547 = vsub.f32 %v193, %v2546
    %v2548 = vand.u32 %v2547, 4294901760
    %2549 = vmatprep.subr.mxu0 %v2548
    %v2550 = vand.u32 %v192, 4294901760
    %v2551 = vsub.f32 %v192, %v2550
    %v2552 = vand.u32 %v2551, 4294901760
    %2553 = vmatpush2.msra.mxu0 %v2552
    %v2554 = vand.u32 %v189, 4294901760
    %v2555 = vsub.f32 %v189, %v2554
    %v2556 = vand.u32 %v2555, 4294901760
    %2557 = vmatprep.subr.mxu0 %v2556
    %v2558 = vand.u32 %v188, 4294901760
    %v2559 = vsub.f32 %v188, %v2558
    %v2560 = vand.u32 %v2559, 4294901760
    %2561 = vmatpush2.msra.mxu0 %v2560
    %v2562 = vand.u32 %v185, 4294901760
    %v2563 = vsub.f32 %v185, %v2562
    %v2564 = vand.u32 %v2563, 4294901760
    %2565 = vmatprep.subr.mxu0 %v2564
    %v2566 = vand.u32 %v184, 4294901760
    %v2567 = vsub.f32 %v184, %v2566
    %v2568 = vand.u32 %v2567, 4294901760
    %2569 = vmatpush2.msra.mxu0 %v2568
    %v2570 = vand.u32 %v181, 4294901760
    %v2571 = vsub.f32 %v181, %v2570
    %v2572 = vand.u32 %v2571, 4294901760
    %2573 = vmatprep.subr.mxu0 %v2572
    %v2574 = vand.u32 %v180, 4294901760
    %v2575 = vsub.f32 %v180, %v2574
    %v2576 = vand.u32 %v2575, 4294901760
    %2577 = vmatpush2.msra.mxu0 %v2576
    %v2578 = vand.u32 %v177, 4294901760
    %v2579 = vsub.f32 %v177, %v2578
    %v2580 = vand.u32 %v2579, 4294901760
    %2581 = vmatprep.subr.mxu0 %v2580
    %v2582 = vand.u32 %v176, 4294901760
    %v2583 = vsub.f32 %v176, %v2582
    %v2584 = vand.u32 %v2583, 4294901760
    %2585 = vmatpush2.msra.mxu0 %v2584
    %v2586 = vand.u32 %v173, 4294901760
    %v2587 = vsub.f32 %v173, %v2586
    %v2588 = vand.u32 %v2587, 4294901760
    %2589 = vmatprep.subr.mxu0 %v2588
    %v2590 = vand.u32 %v172, 4294901760
    %v2591 = vsub.f32 %v172, %v2590
    %v2592 = vand.u32 %v2591, 4294901760
    %2593 = vmatpush2.msra.mxu0 %v2592
    %v2594 = vand.u32 %v169, 4294901760
    %v2595 = vsub.f32 %v169, %v2594
    %v2596 = vand.u32 %v2595, 4294901760
    %2597 = vmatprep.subr.mxu0 %v2596
    %v2598 = vand.u32 %v168, 4294901760
    %v2599 = vsub.f32 %v168, %v2598
    %v2600 = vand.u32 %v2599, 4294901760
    %2601 = vmatpush2.msra.mxu0 %v2600
    %v2602 = vand.u32 %v165, 4294901760
    %v2603 = vsub.f32 %v165, %v2602
    %v2604 = vand.u32 %v2603, 4294901760
    %2605 = vmatprep.subr.mxu0 %v2604
    %v2606 = vand.u32 %v164, 4294901760
    %v2607 = vsub.f32 %v164, %v2606
    %v2608 = vand.u32 %v2607, 4294901760
    %2609 = vmatpush2.msra.mxu0 %v2608
    %v2610 = vand.u32 %v161, 4294901760
    %v2611 = vsub.f32 %v161, %v2610
    %v2612 = vand.u32 %v2611, 4294901760
    %2613 = vmatprep.subr.mxu0 %v2612
    %v2614 = vand.u32 %v160, 4294901760
    %v2615 = vsub.f32 %v160, %v2614
    %v2616 = vand.u32 %v2615, 4294901760
    %2617 = vmatpush2.msra.mxu0 %v2616
    %v2618 = vand.u32 %v157, 4294901760
    %v2619 = vsub.f32 %v157, %v2618
    %v2620 = vand.u32 %v2619, 4294901760
    %2621 = vmatprep.subr.mxu0 %v2620
    %v2622 = vand.u32 %v156, 4294901760
    %v2623 = vsub.f32 %v156, %v2622
    %v2624 = vand.u32 %v2623, 4294901760
    %2625 = vmatpush2.msra.mxu0 %v2624
    %v2626 = vand.u32 %v153, 4294901760
    %v2627 = vsub.f32 %v153, %v2626
    %v2628 = vand.u32 %v2627, 4294901760
    %2629 = vmatprep.subr.mxu0 %v2628
    %v2630 = vand.u32 %v152, 4294901760
    %v2631 = vsub.f32 %v152, %v2630
    %v2632 = vand.u32 %v2631, 4294901760
    %2633 = vmatpush2.msra.mxu0 %v2632
    %v2634 = vand.u32 %v149, 4294901760
    %v2635 = vsub.f32 %v149, %v2634
    %v2636 = vand.u32 %v2635, 4294901760
    %2637 = vmatprep.subr.mxu0 %v2636
    %v2638 = vand.u32 %v148, 4294901760
    %v2639 = vsub.f32 %v148, %v2638
    %v2640 = vand.u32 %v2639, 4294901760
    %2641 = vmatpush2.msra.mxu0 %v2640
    %v2642 = vand.u32 %v145, 4294901760
    %v2643 = vsub.f32 %v145, %v2642
    %v2644 = vand.u32 %v2643, 4294901760
    %2645 = vmatprep.subr.mxu0 %v2644
    %v2646 = vand.u32 %v144, 4294901760
    %v2647 = vsub.f32 %v144, %v2646
    %v2648 = vand.u32 %v2647, 4294901760
    %2649 = vmatpush2.msra.mxu0 %v2648
    %v2650 = vand.u32 %v77, 4294901760
    %2651 = vmatprep.mubr.f32.mxu0 %v2650
    %v2652 = vand.u32 %v76, 4294901760
    %2653 = vmatmul.mubr.f32.gmra.mxu0 %v2652
    %v2654 = vpop.f32.mrf.mxu0
    %v2655 = vadd.f32 %v2390, %v2654
    %v2656 = vpop.f32.mrf.mxu0
    %v2657 = vadd.f32 %v2392, %v2656
    %2658 = vdwg.mxu0
    %v2659 = vand.u32 %v141, 4294901760
    %2660 = vmatprep.subr.mxu0 %v2659
    %v2661 = vand.u32 %v140, 4294901760
    %2662 = vmatpush1.msra.mxu0 %v2661
    %v2663 = vand.u32 %v137, 4294901760
    %2664 = vmatprep.subr.mxu0 %v2663
    %v2665 = vand.u32 %v136, 4294901760
    %2666 = vmatpush1.msra.mxu0 %v2665
    %v2667 = vand.u32 %v133, 4294901760
    %2668 = vmatprep.subr.mxu0 %v2667
    %v2669 = vand.u32 %v132, 4294901760
    %2670 = vmatpush1.msra.mxu0 %v2669
    %v2671 = vand.u32 %v129, 4294901760
    %2672 = vmatprep.subr.mxu0 %v2671
    %v2673 = vand.u32 %v128, 4294901760
    %2674 = vmatpush1.msra.mxu0 %v2673
    %v2675 = vand.u32 %v125, 4294901760
    %2676 = vmatprep.subr.mxu0 %v2675
    %v2677 = vand.u32 %v124, 4294901760
    %2678 = vmatpush1.msra.mxu0 %v2677
    %v2679 = vand.u32 %v121, 4294901760
    %2680 = vmatprep.subr.mxu0 %v2679
    %v2681 = vand.u32 %v120, 4294901760
    %2682 = vmatpush1.msra.mxu0 %v2681
    %v2683 = vand.u32 %v117, 4294901760
    %2684 = vmatprep.subr.mxu0 %v2683
    %v2685 = vand.u32 %v116, 4294901760
    %2686 = vmatpush1.msra.mxu0 %v2685
    %v2687 = vand.u32 %v113, 4294901760
    %2688 = vmatprep.subr.mxu0 %v2687
    %v2689 = vand.u32 %v112, 4294901760
    %2690 = vmatpush1.msra.mxu0 %v2689
    %v2691 = vand.u32 %v109, 4294901760
    %2692 = vmatprep.subr.mxu0 %v2691
    %v2693 = vand.u32 %v108, 4294901760
    %2694 = vmatpush1.msra.mxu0 %v2693
    %v2695 = vand.u32 %v105, 4294901760
    %2696 = vmatprep.subr.mxu0 %v2695
    %v2697 = vand.u32 %v104, 4294901760
    %2698 = vmatpush1.msra.mxu0 %v2697
    %v2699 = vand.u32 %v101, 4294901760
    %2700 = vmatprep.subr.mxu0 %v2699
    %v2701 = vand.u32 %v100, 4294901760
    %2702 = vmatpush1.msra.mxu0 %v2701
    %v2703 = vand.u32 %v97, 4294901760
    %2704 = vmatprep.subr.mxu0 %v2703
    %v2705 = vand.u32 %v96, 4294901760
    %2706 = vmatpush1.msra.mxu0 %v2705
    %v2707 = vand.u32 %v93, 4294901760
    %2708 = vmatprep.subr.mxu0 %v2707
    %v2709 = vand.u32 %v92, 4294901760
    %2710 = vmatpush1.msra.mxu0 %v2709
    %v2711 = vand.u32 %v89, 4294901760
    %2712 = vmatprep.subr.mxu0 %v2711
    %v2713 = vand.u32 %v88, 4294901760
    %2714 = vmatpush1.msra.mxu0 %v2713
    %v2715 = vand.u32 %v85, 4294901760
    %2716 = vmatprep.subr.mxu0 %v2715
    %v2717 = vand.u32 %v84, 4294901760
    %2718 = vmatpush1.msra.mxu0 %v2717
    %v2719 = vand.u32 %v81, 4294901760
    %2720 = vmatprep.subr.mxu0 %v2719
    %v2721 = vand.u32 %v80, 4294901760
    %2722 = vmatpush1.msra.mxu0 %v2721
    %v2723 = vand.u32 %v205, 4294901760
    %2724 = vmatprep.subr.mxu0 %v2723
    %v2725 = vand.u32 %v204, 4294901760
    %2726 = vmatpush2.msra.mxu0 %v2725
    %v2727 = vand.u32 %v201, 4294901760
    %2728 = vmatprep.subr.mxu0 %v2727
    %v2729 = vand.u32 %v200, 4294901760
    %2730 = vmatpush2.msra.mxu0 %v2729
    %v2731 = vand.u32 %v197, 4294901760
    %2732 = vmatprep.subr.mxu0 %v2731
    %v2733 = vand.u32 %v196, 4294901760
    %2734 = vmatpush2.msra.mxu0 %v2733
    %v2735 = vand.u32 %v193, 4294901760
    %2736 = vmatprep.subr.mxu0 %v2735
    %v2737 = vand.u32 %v192, 4294901760
    %2738 = vmatpush2.msra.mxu0 %v2737
    %v2739 = vand.u32 %v189, 4294901760
    %2740 = vmatprep.subr.mxu0 %v2739
    %v2741 = vand.u32 %v188, 4294901760
    %2742 = vmatpush2.msra.mxu0 %v2741
    %v2743 = vand.u32 %v185, 4294901760
    %2744 = vmatprep.subr.mxu0 %v2743
    %v2745 = vand.u32 %v184, 4294901760
    %2746 = vmatpush2.msra.mxu0 %v2745
    %v2747 = vand.u32 %v181, 4294901760
    %2748 = vmatprep.subr.mxu0 %v2747
    %v2749 = vand.u32 %v180, 4294901760
    %2750 = vmatpush2.msra.mxu0 %v2749
    %v2751 = vand.u32 %v177, 4294901760
    %2752 = vmatprep.subr.mxu0 %v2751
    %v2753 = vand.u32 %v176, 4294901760
    %2754 = vmatpush2.msra.mxu0 %v2753
    %v2755 = vand.u32 %v173, 4294901760
    %2756 = vmatprep.subr.mxu0 %v2755
    %v2757 = vand.u32 %v172, 4294901760
    %2758 = vmatpush2.msra.mxu0 %v2757
    %v2759 = vand.u32 %v169, 4294901760
    %2760 = vmatprep.subr.mxu0 %v2759
    %v2761 = vand.u32 %v168, 4294901760
    %2762 = vmatpush2.msra.mxu0 %v2761
    %v2763 = vand.u32 %v165, 4294901760
    %2764 = vmatprep.subr.mxu0 %v2763
    %v2765 = vand.u32 %v164, 4294901760
    %2766 = vmatpush2.msra.mxu0 %v2765
    %v2767 = vand.u32 %v161, 4294901760
    %2768 = vmatprep.subr.mxu0 %v2767
    %v2769 = vand.u32 %v160, 4294901760
    %2770 = vmatpush2.msra.mxu0 %v2769
    %v2771 = vand.u32 %v157, 4294901760
    %2772 = vmatprep.subr.mxu0 %v2771
    %v2773 = vand.u32 %v156, 4294901760
    %2774 = vmatpush2.msra.mxu0 %v2773
    %v2775 = vand.u32 %v153, 4294901760
    %2776 = vmatprep.subr.mxu0 %v2775
    %v2777 = vand.u32 %v152, 4294901760
    %2778 = vmatpush2.msra.mxu0 %v2777
    %v2779 = vand.u32 %v149, 4294901760
    %2780 = vmatprep.subr.mxu0 %v2779
    %v2781 = vand.u32 %v148, 4294901760
    %2782 = vmatpush2.msra.mxu0 %v2781
    %v2783 = vand.u32 %v145, 4294901760
    %2784 = vmatprep.subr.mxu0 %v2783
    %v2785 = vand.u32 %v144, 4294901760
    %2786 = vmatpush2.msra.mxu0 %v2785
    %v2787 = vand.u32 %v77, 4294901760
    %2788 = vmatprep.mubr.f32.mxu0 %v2787
    %v2789 = vand.u32 %v76, 4294901760
    %2790 = vmatmul.mubr.f32.gmra.mxu0 %v2789
    %v2791 = vpop.f32.mrf.mxu0
    %v2792 = vadd.f32 %v2655, %v2791
    %v2793 = vpop.f32.mrf.mxu0
    %v2794 = vadd.f32 %v2657, %v2793
    %2795 = vdwg.mxu0
    %v2796 = vmax.f32 %v1508, 0.0
    %v2797 = vmax.f32 %v1510, 0.0
    %v2798 = vmax.f32 %v2792, 0.0
    %v2799 = vmax.f32 %v2794, 0.0
    %v2800 = vld [vmem:[#allocation8] sm:$0xff]
    %v2801 = vld [vmem:[#allocation8 + $0x8] sm:$0xff]
    %v2802 = vld [vmem:[#allocation8 + $0x10] sm:$0xff]
    %v2803 = vld [vmem:[#allocation8 + $0x18] sm:$0xff]
    %v2804 = vld [vmem:[#allocation8 + $0x20] sm:$0xff]
    %v2805 = vld [vmem:[#allocation8 + $0x28] sm:$0xff]
    %v2806 = vld [vmem:[#allocation8 + $0x30] sm:$0xff]
    %v2807 = vld [vmem:[#allocation8 + $0x38] sm:$0xff]
    %v2808 = vld [vmem:[#allocation8 + $0x40] sm:$0xff]
    %v2809 = vld [vmem:[#allocation8 + $0x48] sm:$0xff]
    %v2810 = vld [vmem:[#allocation8 + $0x50] sm:$0xff]
    %v2811 = vld [vmem:[#allocation8 + $0x58] sm:$0xff]
    %v2812 = vld [vmem:[#allocation8 + $0x60] sm:$0xff]
    %v2813 = vld [vmem:[#allocation8 + $0x68] sm:$0xff]
    %v2814 = vld [vmem:[#allocation8 + $0x70] sm:$0xff]
    %v2815 = vld [vmem:[#allocation8 + $0x78] sm:$0xff]
    %v2816 = vld [vmem:[#allocation8 + $0x80] sm:$0xff]
    %v2817 = vld [vmem:[#allocation8 + $0x88] sm:$0xff]
    %v2818 = vld [vmem:[#allocation8 + $0x90] sm:$0xff]
    %v2819 = vld [vmem:[#allocation8 + $0x98] sm:$0xff]
    %v2820 = vld [vmem:[#allocation8 + $0xa0] sm:$0xff]
    %v2821 = vld [vmem:[#allocation8 + $0xa8] sm:$0xff]
    %v2822 = vld [vmem:[#allocation8 + $0xb0] sm:$0xff]
    %v2823 = vld [vmem:[#allocation8 + $0xb8] sm:$0xff]
    %v2824 = vld [vmem:[#allocation8 + $0xc0] sm:$0xff]
    %v2825 = vld [vmem:[#allocation8 + $0xc8] sm:$0xff]
    %v2826 = vld [vmem:[#allocation8 + $0xd0] sm:$0xff]
    %v2827 = vld [vmem:[#allocation8 + $0xd8] sm:$0xff]
    %v2828 = vld [vmem:[#allocation8 + $0xe0] sm:$0xff]
    %v2829 = vld [vmem:[#allocation8 + $0xe8] sm:$0xff]
    %v2830 = vld [vmem:[#allocation8 + $0xf0] sm:$0xff]
    %v2831 = vld [vmem:[#allocation8 + $0xf8] sm:$0xff]
    %v2832 = vld [vmem:[#allocation8 + $0x100] sm:$0xff]
    %v2833 = vld [vmem:[#allocation8 + $0x108] sm:$0xff]
    %v2834 = vld [vmem:[#allocation8 + $0x110] sm:$0xff]
    %v2835 = vld [vmem:[#allocation8 + $0x118] sm:$0xff]
    %v2836 = vld [vmem:[#allocation8 + $0x120] sm:$0xff]
    %v2837 = vld [vmem:[#allocation8 + $0x128] sm:$0xff]
    %v2838 = vld [vmem:[#allocation8 + $0x130] sm:$0xff]
    %v2839 = vld [vmem:[#allocation8 + $0x138] sm:$0xff]
    %v2840 = vld [vmem:[#allocation8 + $0x140] sm:$0xff]
    %v2841 = vld [vmem:[#allocation8 + $0x148] sm:$0xff]
    %v2842 = vld [vmem:[#allocation8 + $0x150] sm:$0xff]
    %v2843 = vld [vmem:[#allocation8 + $0x158] sm:$0xff]
    %v2844 = vld [vmem:[#allocation8 + $0x160] sm:$0xff]
    %v2845 = vld [vmem:[#allocation8 + $0x168] sm:$0xff]
    %v2846 = vld [vmem:[#allocation8 + $0x170] sm:$0xff]
    %v2847 = vld [vmem:[#allocation8 + $0x178] sm:$0xff]
    %v2848 = vld [vmem:[#allocation8 + $0x180] sm:$0xff]
    %v2849 = vld [vmem:[#allocation8 + $0x188] sm:$0xff]
    %v2850 = vld [vmem:[#allocation8 + $0x190] sm:$0xff]
    %v2851 = vld [vmem:[#allocation8 + $0x198] sm:$0xff]
    %v2852 = vld [vmem:[#allocation8 + $0x1a0] sm:$0xff]
    %v2853 = vld [vmem:[#allocation8 + $0x1a8] sm:$0xff]
    %v2854 = vld [vmem:[#allocation8 + $0x1b0] sm:$0xff]
    %v2855 = vld [vmem:[#allocation8 + $0x1b8] sm:$0xff]
    %v2856 = vld [vmem:[#allocation8 + $0x1c0] sm:$0xff]
    %v2857 = vld [vmem:[#allocation8 + $0x1c8] sm:$0xff]
    %v2858 = vld [vmem:[#allocation8 + $0x1d0] sm:$0xff]
    %v2859 = vld [vmem:[#allocation8 + $0x1d8] sm:$0xff]
    %v2860 = vld [vmem:[#allocation8 + $0x1e0] sm:$0xff]
    %v2861 = vld [vmem:[#allocation8 + $0x1e8] sm:$0xff]
    %v2862 = vld [vmem:[#allocation8 + $0x1f0] sm:$0xff]
    %v2863 = vld [vmem:[#allocation8 + $0x1f8] sm:$0xff]
    %v2864 = vld [vmem:[%s4] sm:$0x1]
    %v2866 = vlaneseq
    %v2867 = vshrl.u32 %v2866, 7
    %v2868 = vsub.s32 0, %v2867
    %v2869 = vrot.slane %v2864, %v2868
    %2871 = vmatprep.subr.mxu0 0.0
    %v2872 = vand.u32 %v2815, 4294901760
    %2873 = vmatpush1.msra.mxu0 %v2872
    %2874 = vmatprep.subr.mxu0 0.0
    %v2875 = vand.u32 %v2814, 4294901760
    %2876 = vmatpush1.msra.mxu0 %v2875
    %2877 = vmatprep.subr.mxu0 0.0
    %v2878 = vand.u32 %v2813, 4294901760
    %2879 = vmatpush1.msra.mxu0 %v2878
    %2880 = vmatprep.subr.mxu0 0.0
    %v2881 = vand.u32 %v2812, 4294901760
    %2882 = vmatpush1.msra.mxu0 %v2881
    %2883 = vmatprep.subr.mxu0 0.0
    %v2884 = vand.u32 %v2811, 4294901760
    %2885 = vmatpush1.msra.mxu0 %v2884
    %2886 = vmatprep.subr.mxu0 0.0
    %v2887 = vand.u32 %v2810, 4294901760
    %2888 = vmatpush1.msra.mxu0 %v2887
    %2889 = vmatprep.subr.mxu0 0.0
    %v2890 = vand.u32 %v2809, 4294901760
    %2891 = vmatpush1.msra.mxu0 %v2890
    %2892 = vmatprep.subr.mxu0 0.0
    %v2893 = vand.u32 %v2808, 4294901760
    %2894 = vmatpush1.msra.mxu0 %v2893
    %2895 = vmatprep.subr.mxu0 0.0
    %v2896 = vand.u32 %v2807, 4294901760
    %2897 = vmatpush1.msra.mxu0 %v2896
    %2898 = vmatprep.subr.mxu0 0.0
    %v2899 = vand.u32 %v2806, 4294901760
    %2900 = vmatpush1.msra.mxu0 %v2899
    %2901 = vmatprep.subr.mxu0 0.0
    %v2902 = vand.u32 %v2805, 4294901760
    %2903 = vmatpush1.msra.mxu0 %v2902
    %2904 = vmatprep.subr.mxu0 0.0
    %v2905 = vand.u32 %v2804, 4294901760
    %2906 = vmatpush1.msra.mxu0 %v2905
    %2907 = vmatprep.subr.mxu0 0.0
    %v2908 = vand.u32 %v2803, 4294901760
    %2909 = vmatpush1.msra.mxu0 %v2908
    %2910 = vmatprep.subr.mxu0 0.0
    %v2911 = vand.u32 %v2802, 4294901760
    %2912 = vmatpush1.msra.mxu0 %v2911
    %2913 = vmatprep.subr.mxu0 0.0
    %v2914 = vand.u32 %v2801, 4294901760
    %2915 = vmatpush1.msra.mxu0 %v2914
    %2916 = vmatprep.subr.mxu0 0.0
    %v2917 = vand.u32 %v2800, 4294901760
    %2918 = vmatpush1.msra.mxu0 %v2917
    %2919 = vmatprep.subr.mxu0 0.0
    %v2920 = vand.u32 %v2831, 4294901760
    %2921 = vmatpush2.msra.mxu0 %v2920
    %2922 = vmatprep.subr.mxu0 0.0
    %v2923 = vand.u32 %v2830, 4294901760
    %2924 = vmatpush2.msra.mxu0 %v2923
    %2925 = vmatprep.subr.mxu0 0.0
    %v2926 = vand.u32 %v2829, 4294901760
    %2927 = vmatpush2.msra.mxu0 %v2926
    %2928 = vmatprep.subr.mxu0 0.0
    %v2929 = vand.u32 %v2828, 4294901760
    %2930 = vmatpush2.msra.mxu0 %v2929
    %2931 = vmatprep.subr.mxu0 0.0
    %v2932 = vand.u32 %v2827, 4294901760
    %2933 = vmatpush2.msra.mxu0 %v2932
    %2934 = vmatprep.subr.mxu0 0.0
    %v2935 = vand.u32 %v2826, 4294901760
    %2936 = vmatpush2.msra.mxu0 %v2935
    %2937 = vmatprep.subr.mxu0 0.0
    %v2938 = vand.u32 %v2825, 4294901760
    %2939 = vmatpush2.msra.mxu0 %v2938
    %2940 = vmatprep.subr.mxu0 0.0
    %v2941 = vand.u32 %v2824, 4294901760
    %2942 = vmatpush2.msra.mxu0 %v2941
    %2943 = vmatprep.subr.mxu0 0.0
    %v2944 = vand.u32 %v2823, 4294901760
    %2945 = vmatpush2.msra.mxu0 %v2944
    %2946 = vmatprep.subr.mxu0 0.0
    %v2947 = vand.u32 %v2822, 4294901760
    %2948 = vmatpush2.msra.mxu0 %v2947
    %2949 = vmatprep.subr.mxu0 0.0
    %v2950 = vand.u32 %v2821, 4294901760
    %2951 = vmatpush2.msra.mxu0 %v2950
    %2952 = vmatprep.subr.mxu0 0.0
    %v2953 = vand.u32 %v2820, 4294901760
    %2954 = vmatpush2.msra.mxu0 %v2953
    %2955 = vmatprep.subr.mxu0 0.0
    %v2956 = vand.u32 %v2819, 4294901760
    %2957 = vmatpush2.msra.mxu0 %v2956
    %2958 = vmatprep.subr.mxu0 0.0
    %v2959 = vand.u32 %v2818, 4294901760
    %2960 = vmatpush2.msra.mxu0 %v2959
    %2961 = vmatprep.subr.mxu0 0.0
    %v2962 = vand.u32 %v2817, 4294901760
    %2963 = vmatpush2.msra.mxu0 %v2962
    %2964 = vmatprep.subr.mxu0 0.0
    %v2965 = vand.u32 %v2816, 4294901760
    %2966 = vmatpush2.msra.mxu0 %v2965
    %v2967 = vand.u32 %v2797, 4294901760
    %v2968 = vsub.f32 %v2797, %v2967
    %v2969 = vand.u32 %v2968, 4294901760
    %v2970 = vsub.f32 %v2968, %v2969
    %v2971 = vand.u32 %v2970, 4294901760
    %2972 = vmatprep.mubr.f32.mxu0 %v2971
    %v2973 = vand.u32 %v2796, 4294901760
    %v2974 = vsub.f32 %v2796, %v2973
    %v2975 = vand.u32 %v2974, 4294901760
    %v2976 = vsub.f32 %v2974, %v2975
    %v2977 = vand.u32 %v2976, 4294901760
    %2978 = vmatmul.mubr.f32.gmra.mxu0 %v2977
    %v2979 = vpop.f32.mrf.mxu0
    %v2980 = vadd.f32 %v2869, %v2979
    %v2981 = vpop.f32.mrf.mxu0
    %2982 = vdwg.mxu0
    %2983 = vmatprep.subr.mxu0 0.0
    %v2984 = vand.u32 %v2815, 4294901760
    %v2985 = vsub.f32 %v2815, %v2984
    %v2986 = vand.u32 %v2985, 4294901760
    %v2987 = vsub.f32 %v2985, %v2986
    %v2988 = vand.u32 %v2987, 4294901760
    %2989 = vmatpush1.msra.mxu0 %v2988
    %2990 = vmatprep.subr.mxu0 0.0
    %v2991 = vand.u32 %v2814, 4294901760
    %v2992 = vsub.f32 %v2814, %v2991
    %v2993 = vand.u32 %v2992, 4294901760
    %v2994 = vsub.f32 %v2992, %v2993
    %v2995 = vand.u32 %v2994, 4294901760
    %2996 = vmatpush1.msra.mxu0 %v2995
    %2997 = vmatprep.subr.mxu0 0.0
    %v2998 = vand.u32 %v2813, 4294901760
    %v2999 = vsub.f32 %v2813, %v2998
    %v3000 = vand.u32 %v2999, 4294901760
    %v3001 = vsub.f32 %v2999, %v3000
    %v3002 = vand.u32 %v3001, 4294901760
    %3003 = vmatpush1.msra.mxu0 %v3002
    %3004 = vmatprep.subr.mxu0 0.0
    %v3005 = vand.u32 %v2812, 4294901760
    %v3006 = vsub.f32 %v2812, %v3005
    %v3007 = vand.u32 %v3006, 4294901760
    %v3008 = vsub.f32 %v3006, %v3007
    %v3009 = vand.u32 %v3008, 4294901760
    %3010 = vmatpush1.msra.mxu0 %v3009
    %3011 = vmatprep.subr.mxu0 0.0
    %v3012 = vand.u32 %v2811, 4294901760
    %v3013 = vsub.f32 %v2811, %v3012
    %v3014 = vand.u32 %v3013, 4294901760
    %v3015 = vsub.f32 %v3013, %v3014
    %v3016 = vand.u32 %v3015, 4294901760
    %3017 = vmatpush1.msra.mxu0 %v3016
    %3018 = vmatprep.subr.mxu0 0.0
    %v3019 = vand.u32 %v2810, 4294901760
    %v3020 = vsub.f32 %v2810, %v3019
    %v3021 = vand.u32 %v3020, 4294901760
    %v3022 = vsub.f32 %v3020, %v3021
    %v3023 = vand.u32 %v3022, 4294901760
    %3024 = vmatpush1.msra.mxu0 %v3023
    %3025 = vmatprep.subr.mxu0 0.0
    %v3026 = vand.u32 %v2809, 4294901760
    %v3027 = vsub.f32 %v2809, %v3026
    %v3028 = vand.u32 %v3027, 4294901760
    %v3029 = vsub.f32 %v3027, %v3028
    %v3030 = vand.u32 %v3029, 4294901760
    %3031 = vmatpush1.msra.mxu0 %v3030
    %3032 = vmatprep.subr.mxu0 0.0
    %v3033 = vand.u32 %v2808, 4294901760
    %v3034 = vsub.f32 %v2808, %v3033
    %v3035 = vand.u32 %v3034, 4294901760
    %v3036 = vsub.f32 %v3034, %v3035
    %v3037 = vand.u32 %v3036, 4294901760
    %3038 = vmatpush1.msra.mxu0 %v3037
    %3039 = vmatprep.subr.mxu0 0.0
    %v3040 = vand.u32 %v2807, 4294901760
    %v3041 = vsub.f32 %v2807, %v3040
    %v3042 = vand.u32 %v3041, 4294901760
    %v3043 = vsub.f32 %v3041, %v3042
    %v3044 = vand.u32 %v3043, 4294901760
    %3045 = vmatpush1.msra.mxu0 %v3044
    %3046 = vmatprep.subr.mxu0 0.0
    %v3047 = vand.u32 %v2806, 4294901760
    %v3048 = vsub.f32 %v2806, %v3047
    %v3049 = vand.u32 %v3048, 4294901760
    %v3050 = vsub.f32 %v3048, %v3049
    %v3051 = vand.u32 %v3050, 4294901760
    %3052 = vmatpush1.msra.mxu0 %v3051
    %3053 = vmatprep.subr.mxu0 0.0
    %v3054 = vand.u32 %v2805, 4294901760
    %v3055 = vsub.f32 %v2805, %v3054
    %v3056 = vand.u32 %v3055, 4294901760
    %v3057 = vsub.f32 %v3055, %v3056
    %v3058 = vand.u32 %v3057, 4294901760
    %3059 = vmatpush1.msra.mxu0 %v3058
    %3060 = vmatprep.subr.mxu0 0.0
    %v3061 = vand.u32 %v2804, 4294901760
    %v3062 = vsub.f32 %v2804, %v3061
    %v3063 = vand.u32 %v3062, 4294901760
    %v3064 = vsub.f32 %v3062, %v3063
    %v3065 = vand.u32 %v3064, 4294901760
    %3066 = vmatpush1.msra.mxu0 %v3065
    %3067 = vmatprep.subr.mxu0 0.0
    %v3068 = vand.u32 %v2803, 4294901760
    %v3069 = vsub.f32 %v2803, %v3068
    %v3070 = vand.u32 %v3069, 4294901760
    %v3071 = vsub.f32 %v3069, %v3070
    %v3072 = vand.u32 %v3071, 4294901760
    %3073 = vmatpush1.msra.mxu0 %v3072
    %3074 = vmatprep.subr.mxu0 0.0
    %v3075 = vand.u32 %v2802, 4294901760
    %v3076 = vsub.f32 %v2802, %v3075
    %v3077 = vand.u32 %v3076, 4294901760
    %v3078 = vsub.f32 %v3076, %v3077
    %v3079 = vand.u32 %v3078, 4294901760
    %3080 = vmatpush1.msra.mxu0 %v3079
    %3081 = vmatprep.subr.mxu0 0.0
    %v3082 = vand.u32 %v2801, 4294901760
    %v3083 = vsub.f32 %v2801, %v3082
    %v3084 = vand.u32 %v3083, 4294901760
    %v3085 = vsub.f32 %v3083, %v3084
    %v3086 = vand.u32 %v3085, 4294901760
    %3087 = vmatpush1.msra.mxu0 %v3086
    %3088 = vmatprep.subr.mxu0 0.0
    %v3089 = vand.u32 %v2800, 4294901760
    %v3090 = vsub.f32 %v2800, %v3089
    %v3091 = vand.u32 %v3090, 4294901760
    %v3092 = vsub.f32 %v3090, %v3091
    %v3093 = vand.u32 %v3092, 4294901760
    %3094 = vmatpush1.msra.mxu0 %v3093
    %3095 = vmatprep.subr.mxu0 0.0
    %v3096 = vand.u32 %v2831, 4294901760
    %v3097 = vsub.f32 %v2831, %v3096
    %v3098 = vand.u32 %v3097, 4294901760
    %v3099 = vsub.f32 %v3097, %v3098
    %v3100 = vand.u32 %v3099, 4294901760
    %3101 = vmatpush2.msra.mxu0 %v3100
    %3102 = vmatprep.subr.mxu0 0.0
    %v3103 = vand.u32 %v2830, 4294901760
    %v3104 = vsub.f32 %v2830, %v3103
    %v3105 = vand.u32 %v3104, 4294901760
    %v3106 = vsub.f32 %v3104, %v3105
    %v3107 = vand.u32 %v3106, 4294901760
    %3108 = vmatpush2.msra.mxu0 %v3107
    %3109 = vmatprep.subr.mxu0 0.0
    %v3110 = vand.u32 %v2829, 4294901760
    %v3111 = vsub.f32 %v2829, %v3110
    %v3112 = vand.u32 %v3111, 4294901760
    %v3113 = vsub.f32 %v3111, %v3112
    %v3114 = vand.u32 %v3113, 4294901760
    %3115 = vmatpush2.msra.mxu0 %v3114
    %3116 = vmatprep.subr.mxu0 0.0
    %v3117 = vand.u32 %v2828, 4294901760
    %v3118 = vsub.f32 %v2828, %v3117
    %v3119 = vand.u32 %v3118, 4294901760
    %v3120 = vsub.f32 %v3118, %v3119
    %v3121 = vand.u32 %v3120, 4294901760
    %3122 = vmatpush2.msra.mxu0 %v3121
    %3123 = vmatprep.subr.mxu0 0.0
    %v3124 = vand.u32 %v2827, 4294901760
    %v3125 = vsub.f32 %v2827, %v3124
    %v3126 = vand.u32 %v3125, 4294901760
    %v3127 = vsub.f32 %v3125, %v3126
    %v3128 = vand.u32 %v3127, 4294901760
    %3129 = vmatpush2.msra.mxu0 %v3128
    %3130 = vmatprep.subr.mxu0 0.0
    %v3131 = vand.u32 %v2826, 4294901760
    %v3132 = vsub.f32 %v2826, %v3131
    %v3133 = vand.u32 %v3132, 4294901760
    %v3134 = vsub.f32 %v3132, %v3133
    %v3135 = vand.u32 %v3134, 4294901760
    %3136 = vmatpush2.msra.mxu0 %v3135
    %3137 = vmatprep.subr.mxu0 0.0
    %v3138 = vand.u32 %v2825, 4294901760
    %v3139 = vsub.f32 %v2825, %v3138
    %v3140 = vand.u32 %v3139, 4294901760
    %v3141 = vsub.f32 %v3139, %v3140
    %v3142 = vand.u32 %v3141, 4294901760
    %3143 = vmatpush2.msra.mxu0 %v3142
    %3144 = vmatprep.subr.mxu0 0.0
    %v3145 = vand.u32 %v2824, 4294901760
    %v3146 = vsub.f32 %v2824, %v3145
    %v3147 = vand.u32 %v3146, 4294901760
    %v3148 = vsub.f32 %v3146, %v3147
    %v3149 = vand.u32 %v3148, 4294901760
    %3150 = vmatpush2.msra.mxu0 %v3149
    %3151 = vmatprep.subr.mxu0 0.0
    %v3152 = vand.u32 %v2823, 4294901760
    %v3153 = vsub.f32 %v2823, %v3152
    %v3154 = vand.u32 %v3153, 4294901760
    %v3155 = vsub.f32 %v3153, %v3154
    %v3156 = vand.u32 %v3155, 4294901760
    %3157 = vmatpush2.msra.mxu0 %v3156
    %3158 = vmatprep.subr.mxu0 0.0
    %v3159 = vand.u32 %v2822, 4294901760
    %v3160 = vsub.f32 %v2822, %v3159
    %v3161 = vand.u32 %v3160, 4294901760
    %v3162 = vsub.f32 %v3160, %v3161
    %v3163 = vand.u32 %v3162, 4294901760
    %3164 = vmatpush2.msra.mxu0 %v3163
    %3165 = vmatprep.subr.mxu0 0.0
    %v3166 = vand.u32 %v2821, 4294901760
    %v3167 = vsub.f32 %v2821, %v3166
    %v3168 = vand.u32 %v3167, 4294901760
    %v3169 = vsub.f32 %v3167, %v3168
    %v3170 = vand.u32 %v3169, 4294901760
    %3171 = vmatpush2.msra.mxu0 %v3170
    %3172 = vmatprep.subr.mxu0 0.0
    %v3173 = vand.u32 %v2820, 4294901760
    %v3174 = vsub.f32 %v2820, %v3173
    %v3175 = vand.u32 %v3174, 4294901760
    %v3176 = vsub.f32 %v3174, %v3175
    %v3177 = vand.u32 %v3176, 4294901760
    %3178 = vmatpush2.msra.mxu0 %v3177
    %3179 = vmatprep.subr.mxu0 0.0
    %v3180 = vand.u32 %v2819, 4294901760
    %v3181 = vsub.f32 %v2819, %v3180
    %v3182 = vand.u32 %v3181, 4294901760
    %v3183 = vsub.f32 %v3181, %v3182
    %v3184 = vand.u32 %v3183, 4294901760
    %3185 = vmatpush2.msra.mxu0 %v3184
    %3186 = vmatprep.subr.mxu0 0.0
    %v3187 = vand.u32 %v2818, 4294901760
    %v3188 = vsub.f32 %v2818, %v3187
    %v3189 = vand.u32 %v3188, 4294901760
    %v3190 = vsub.f32 %v3188, %v3189
    %v3191 = vand.u32 %v3190, 4294901760
    %3192 = vmatpush2.msra.mxu0 %v3191
    %3193 = vmatprep.subr.mxu0 0.0
    %v3194 = vand.u32 %v2817, 4294901760
    %v3195 = vsub.f32 %v2817, %v3194
    %v3196 = vand.u32 %v3195, 4294901760
    %v3197 = vsub.f32 %v3195, %v3196
    %v3198 = vand.u32 %v3197, 4294901760
    %3199 = vmatpush2.msra.mxu0 %v3198
    %3200 = vmatprep.subr.mxu0 0.0
    %v3201 = vand.u32 %v2816, 4294901760
    %v3202 = vsub.f32 %v2816, %v3201
    %v3203 = vand.u32 %v3202, 4294901760
    %v3204 = vsub.f32 %v3202, %v3203
    %v3205 = vand.u32 %v3204, 4294901760
    %3206 = vmatpush2.msra.mxu0 %v3205
    %v3207 = vand.u32 %v2797, 4294901760
    %3208 = vmatprep.mubr.f32.mxu0 %v3207
    %v3209 = vand.u32 %v2796, 4294901760
    %3210 = vmatmul.mubr.f32.gmra.mxu0 %v3209
    %v3211 = vpop.f32.mrf.mxu0
    %v3212 = vadd.f32 %v2980, %v3211
    %v3213 = vpop.f32.mrf.mxu0
    %3214 = vdwg.mxu0
    %3215 = vmatprep.subr.mxu0 0.0
    %v3216 = vand.u32 %v2815, 4294901760
    %v3217 = vsub.f32 %v2815, %v3216
    %3218 = vmatpush1.msra.mxu0 %v3217
    %3219 = vmatprep.subr.mxu0 0.0
    %v3220 = vand.u32 %v2814, 4294901760
    %v3221 = vsub.f32 %v2814, %v3220
    %3222 = vmatpush1.msra.mxu0 %v3221
    %3223 = vmatprep.subr.mxu0 0.0
    %v3224 = vand.u32 %v2813, 4294901760
    %v3225 = vsub.f32 %v2813, %v3224
    %3226 = vmatpush1.msra.mxu0 %v3225
    %3227 = vmatprep.subr.mxu0 0.0
    %v3228 = vand.u32 %v2812, 4294901760
    %v3229 = vsub.f32 %v2812, %v3228
    %3230 = vmatpush1.msra.mxu0 %v3229
    %3231 = vmatprep.subr.mxu0 0.0
    %v3232 = vand.u32 %v2811, 4294901760
    %v3233 = vsub.f32 %v2811, %v3232
    %3234 = vmatpush1.msra.mxu0 %v3233
    %3235 = vmatprep.subr.mxu0 0.0
    %v3236 = vand.u32 %v2810, 4294901760
    %v3237 = vsub.f32 %v2810, %v3236
    %3238 = vmatpush1.msra.mxu0 %v3237
    %3239 = vmatprep.subr.mxu0 0.0
    %v3240 = vand.u32 %v2809, 4294901760
    %v3241 = vsub.f32 %v2809, %v3240
    %3242 = vmatpush1.msra.mxu0 %v3241
    %3243 = vmatprep.subr.mxu0 0.0
    %v3244 = vand.u32 %v2808, 4294901760
    %v3245 = vsub.f32 %v2808, %v3244
    %3246 = vmatpush1.msra.mxu0 %v3245
    %3247 = vmatprep.subr.mxu0 0.0
    %v3248 = vand.u32 %v2807, 4294901760
    %v3249 = vsub.f32 %v2807, %v3248
    %3250 = vmatpush1.msra.mxu0 %v3249
    %3251 = vmatprep.subr.mxu0 0.0
    %v3252 = vand.u32 %v2806, 4294901760
    %v3253 = vsub.f32 %v2806, %v3252
    %3254 = vmatpush1.msra.mxu0 %v3253
    %3255 = vmatprep.subr.mxu0 0.0
    %v3256 = vand.u32 %v2805, 4294901760
    %v3257 = vsub.f32 %v2805, %v3256
    %3258 = vmatpush1.msra.mxu0 %v3257
    %3259 = vmatprep.subr.mxu0 0.0
    %v3260 = vand.u32 %v2804, 4294901760
    %v3261 = vsub.f32 %v2804, %v3260
    %3262 = vmatpush1.msra.mxu0 %v3261
    %3263 = vmatprep.subr.mxu0 0.0
    %v3264 = vand.u32 %v2803, 4294901760
    %v3265 = vsub.f32 %v2803, %v3264
    %3266 = vmatpush1.msra.mxu0 %v3265
    %3267 = vmatprep.subr.mxu0 0.0
    %v3268 = vand.u32 %v2802, 4294901760
    %v3269 = vsub.f32 %v2802, %v3268
    %3270 = vmatpush1.msra.mxu0 %v3269
    %3271 = vmatprep.subr.mxu0 0.0
    %v3272 = vand.u32 %v2801, 4294901760
    %v3273 = vsub.f32 %v2801, %v3272
    %3274 = vmatpush1.msra.mxu0 %v3273
    %3275 = vmatprep.subr.mxu0 0.0
    %v3276 = vand.u32 %v2800, 4294901760
    %v3277 = vsub.f32 %v2800, %v3276
    %3278 = vmatpush1.msra.mxu0 %v3277
    %3279 = vmatprep.subr.mxu0 0.0
    %v3280 = vand.u32 %v2831, 4294901760
    %v3281 = vsub.f32 %v2831, %v3280
    %3282 = vmatpush2.msra.mxu0 %v3281
    %3283 = vmatprep.subr.mxu0 0.0
    %v3284 = vand.u32 %v2830, 4294901760
    %v3285 = vsub.f32 %v2830, %v3284
    %3286 = vmatpush2.msra.mxu0 %v3285
    %3287 = vmatprep.subr.mxu0 0.0
    %v3288 = vand.u32 %v2829, 4294901760
    %v3289 = vsub.f32 %v2829, %v3288
    %3290 = vmatpush2.msra.mxu0 %v3289
    %3291 = vmatprep.subr.mxu0 0.0
    %v3292 = vand.u32 %v2828, 4294901760
    %v3293 = vsub.f32 %v2828, %v3292
    %3294 = vmatpush2.msra.mxu0 %v3293
    %3295 = vmatprep.subr.mxu0 0.0
    %v3296 = vand.u32 %v2827, 4294901760
    %v3297 = vsub.f32 %v2827, %v3296
    %3298 = vmatpush2.msra.mxu0 %v3297
    %3299 = vmatprep.subr.mxu0 0.0
    %v3300 = vand.u32 %v2826, 4294901760
    %v3301 = vsub.f32 %v2826, %v3300
    %3302 = vmatpush2.msra.mxu0 %v3301
    %3303 = vmatprep.subr.mxu0 0.0
    %v3304 = vand.u32 %v2825, 4294901760
    %v3305 = vsub.f32 %v2825, %v3304
    %3306 = vmatpush2.msra.mxu0 %v3305
    %3307 = vmatprep.subr.mxu0 0.0
    %v3308 = vand.u32 %v2824, 4294901760
    %v3309 = vsub.f32 %v2824, %v3308
    %3310 = vmatpush2.msra.mxu0 %v3309
    %3311 = vmatprep.subr.mxu0 0.0
    %v3312 = vand.u32 %v2823, 4294901760
    %v3313 = vsub.f32 %v2823, %v3312
    %3314 = vmatpush2.msra.mxu0 %v3313
    %3315 = vmatprep.subr.mxu0 0.0
    %v3316 = vand.u32 %v2822, 4294901760
    %v3317 = vsub.f32 %v2822, %v3316
    %3318 = vmatpush2.msra.mxu0 %v3317
    %3319 = vmatprep.subr.mxu0 0.0
    %v3320 = vand.u32 %v2821, 4294901760
    %v3321 = vsub.f32 %v2821, %v3320
    %3322 = vmatpush2.msra.mxu0 %v3321
    %3323 = vmatprep.subr.mxu0 0.0
    %v3324 = vand.u32 %v2820, 4294901760
    %v3325 = vsub.f32 %v2820, %v3324
    %3326 = vmatpush2.msra.mxu0 %v3325
    %3327 = vmatprep.subr.mxu0 0.0
    %v3328 = vand.u32 %v2819, 4294901760
    %v3329 = vsub.f32 %v2819, %v3328
    %3330 = vmatpush2.msra.mxu0 %v3329
    %3331 = vmatprep.subr.mxu0 0.0
    %v3332 = vand.u32 %v2818, 4294901760
    %v3333 = vsub.f32 %v2818, %v3332
    %3334 = vmatpush2.msra.mxu0 %v3333
    %3335 = vmatprep.subr.mxu0 0.0
    %v3336 = vand.u32 %v2817, 4294901760
    %v3337 = vsub.f32 %v2817, %v3336
    %3338 = vmatpush2.msra.mxu0 %v3337
    %3339 = vmatprep.subr.mxu0 0.0
    %v3340 = vand.u32 %v2816, 4294901760
    %v3341 = vsub.f32 %v2816, %v3340
    %3342 = vmatpush2.msra.mxu0 %v3341
    %v3343 = vand.u32 %v2797, 4294901760
    %v3344 = vsub.f32 %v2797, %v3343
    %3345 = vmatprep.mubr.f32.mxu0 %v3344
    %v3346 = vand.u32 %v2796, 4294901760
    %v3347 = vsub.f32 %v2796, %v3346
    %3348 = vmatmul.mubr.f32.gmra.mxu0 %v3347
    %v3349 = vpop.f32.mrf.mxu0
    %v3350 = vadd.f32 %v3212, %v3349
    %v3351 = vpop.f32.mrf.mxu0
    %3352 = vdwg.mxu0
    %3353 = vmatprep.subr.mxu0 0.0
    %v3354 = vand.u32 %v2815, 4294901760
    %3355 = vmatpush1.msra.mxu0 %v3354
    %3356 = vmatprep.subr.mxu0 0.0
    %v3357 = vand.u32 %v2814, 4294901760
    %3358 = vmatpush1.msra.mxu0 %v3357
    %3359 = vmatprep.subr.mxu0 0.0
    %v3360 = vand.u32 %v2813, 4294901760
    %3361 = vmatpush1.msra.mxu0 %v3360
    %3362 = vmatprep.subr.mxu0 0.0
    %v3363 = vand.u32 %v2812, 4294901760
    %3364 = vmatpush1.msra.mxu0 %v3363
    %3365 = vmatprep.subr.mxu0 0.0
    %v3366 = vand.u32 %v2811, 4294901760
    %3367 = vmatpush1.msra.mxu0 %v3366
    %3368 = vmatprep.subr.mxu0 0.0
    %v3369 = vand.u32 %v2810, 4294901760
    %3370 = vmatpush1.msra.mxu0 %v3369
    %3371 = vmatprep.subr.mxu0 0.0
    %v3372 = vand.u32 %v2809, 4294901760
    %3373 = vmatpush1.msra.mxu0 %v3372
    %3374 = vmatprep.subr.mxu0 0.0
    %v3375 = vand.u32 %v2808, 4294901760
    %3376 = vmatpush1.msra.mxu0 %v3375
    %3377 = vmatprep.subr.mxu0 0.0
    %v3378 = vand.u32 %v2807, 4294901760
    %3379 = vmatpush1.msra.mxu0 %v3378
    %3380 = vmatprep.subr.mxu0 0.0
    %v3381 = vand.u32 %v2806, 4294901760
    %3382 = vmatpush1.msra.mxu0 %v3381
    %3383 = vmatprep.subr.mxu0 0.0
    %v3384 = vand.u32 %v2805, 4294901760
    %3385 = vmatpush1.msra.mxu0 %v3384
    %3386 = vmatprep.subr.mxu0 0.0
    %v3387 = vand.u32 %v2804, 4294901760
    %3388 = vmatpush1.msra.mxu0 %v3387
    %3389 = vmatprep.subr.mxu0 0.0
    %v3390 = vand.u32 %v2803, 4294901760
    %3391 = vmatpush1.msra.mxu0 %v3390
    %3392 = vmatprep.subr.mxu0 0.0
    %v3393 = vand.u32 %v2802, 4294901760
    %3394 = vmatpush1.msra.mxu0 %v3393
    %3395 = vmatprep.subr.mxu0 0.0
    %v3396 = vand.u32 %v2801, 4294901760
    %3397 = vmatpush1.msra.mxu0 %v3396
    %3398 = vmatprep.subr.mxu0 0.0
    %v3399 = vand.u32 %v2800, 4294901760
    %3400 = vmatpush1.msra.mxu0 %v3399
    %3401 = vmatprep.subr.mxu0 0.0
    %v3402 = vand.u32 %v2831, 4294901760
    %3403 = vmatpush2.msra.mxu0 %v3402
    %3404 = vmatprep.subr.mxu0 0.0
    %v3405 = vand.u32 %v2830, 4294901760
    %3406 = vmatpush2.msra.mxu0 %v3405
    %3407 = vmatprep.subr.mxu0 0.0
    %v3408 = vand.u32 %v2829, 4294901760
    %3409 = vmatpush2.msra.mxu0 %v3408
    %3410 = vmatprep.subr.mxu0 0.0
    %v3411 = vand.u32 %v2828, 4294901760
    %3412 = vmatpush2.msra.mxu0 %v3411
    %3413 = vmatprep.subr.mxu0 0.0
    %v3414 = vand.u32 %v2827, 4294901760
    %3415 = vmatpush2.msra.mxu0 %v3414
    %3416 = vmatprep.subr.mxu0 0.0
    %v3417 = vand.u32 %v2826, 4294901760
    %3418 = vmatpush2.msra.mxu0 %v3417
    %3419 = vmatprep.subr.mxu0 0.0
    %v3420 = vand.u32 %v2825, 4294901760
    %3421 = vmatpush2.msra.mxu0 %v3420
    %3422 = vmatprep.subr.mxu0 0.0
    %v3423 = vand.u32 %v2824, 4294901760
    %3424 = vmatpush2.msra.mxu0 %v3423
    %3425 = vmatprep.subr.mxu0 0.0
    %v3426 = vand.u32 %v2823, 4294901760
    %3427 = vmatpush2.msra.mxu0 %v3426
    %3428 = vmatprep.subr.mxu0 0.0
    %v3429 = vand.u32 %v2822, 4294901760
    %3430 = vmatpush2.msra.mxu0 %v3429
    %3431 = vmatprep.subr.mxu0 0.0
    %v3432 = vand.u32 %v2821, 4294901760
    %3433 = vmatpush2.msra.mxu0 %v3432
    %3434 = vmatprep.subr.mxu0 0.0
    %v3435 = vand.u32 %v2820, 4294901760
    %3436 = vmatpush2.msra.mxu0 %v3435
    %3437 = vmatprep.subr.mxu0 0.0
    %v3438 = vand.u32 %v2819, 4294901760
    %3439 = vmatpush2.msra.mxu0 %v3438
    %3440 = vmatprep.subr.mxu0 0.0
    %v3441 = vand.u32 %v2818, 4294901760
    %3442 = vmatpush2.msra.mxu0 %v3441
    %3443 = vmatprep.subr.mxu0 0.0
    %v3444 = vand.u32 %v2817, 4294901760
    %3445 = vmatpush2.msra.mxu0 %v3444
    %3446 = vmatprep.subr.mxu0 0.0
    %v3447 = vand.u32 %v2816, 4294901760
    %3448 = vmatpush2.msra.mxu0 %v3447
    %v3449 = vand.u32 %v2797, 4294901760
    %v3450 = vsub.f32 %v2797, %v3449
    %v3451 = vand.u32 %v3450, 4294901760
    %3452 = vmatprep.mubr.f32.mxu0 %v3451
    %v3453 = vand.u32 %v2796, 4294901760
    %v3454 = vsub.f32 %v2796, %v3453
    %v3455 = vand.u32 %v3454, 4294901760
    %3456 = vmatmul.mubr.f32.gmra.mxu0 %v3455
    %v3457 = vpop.f32.mrf.mxu0
    %v3458 = vadd.f32 %v3350, %v3457
    %v3459 = vpop.f32.mrf.mxu0
    %3460 = vdwg.mxu0
    %3461 = vmatprep.subr.mxu0 0.0
    %v3462 = vand.u32 %v2815, 4294901760
    %v3463 = vsub.f32 %v2815, %v3462
    %v3464 = vand.u32 %v3463, 4294901760
    %3465 = vmatpush1.msra.mxu0 %v3464
    %3466 = vmatprep.subr.mxu0 0.0
    %v3467 = vand.u32 %v2814, 4294901760
    %v3468 = vsub.f32 %v2814, %v3467
    %v3469 = vand.u32 %v3468, 4294901760
    %3470 = vmatpush1.msra.mxu0 %v3469
    %3471 = vmatprep.subr.mxu0 0.0
    %v3472 = vand.u32 %v2813, 4294901760
    %v3473 = vsub.f32 %v2813, %v3472
    %v3474 = vand.u32 %v3473, 4294901760
    %3475 = vmatpush1.msra.mxu0 %v3474
    %3476 = vmatprep.subr.mxu0 0.0
    %v3477 = vand.u32 %v2812, 4294901760
    %v3478 = vsub.f32 %v2812, %v3477
    %v3479 = vand.u32 %v3478, 4294901760
    %3480 = vmatpush1.msra.mxu0 %v3479
    %3481 = vmatprep.subr.mxu0 0.0
    %v3482 = vand.u32 %v2811, 4294901760
    %v3483 = vsub.f32 %v2811, %v3482
    %v3484 = vand.u32 %v3483, 4294901760
    %3485 = vmatpush1.msra.mxu0 %v3484
    %3486 = vmatprep.subr.mxu0 0.0
    %v3487 = vand.u32 %v2810, 4294901760
    %v3488 = vsub.f32 %v2810, %v3487
    %v3489 = vand.u32 %v3488, 4294901760
    %3490 = vmatpush1.msra.mxu0 %v3489
    %3491 = vmatprep.subr.mxu0 0.0
    %v3492 = vand.u32 %v2809, 4294901760
    %v3493 = vsub.f32 %v2809, %v3492
    %v3494 = vand.u32 %v3493, 4294901760
    %3495 = vmatpush1.msra.mxu0 %v3494
    %3496 = vmatprep.subr.mxu0 0.0
    %v3497 = vand.u32 %v2808, 4294901760
    %v3498 = vsub.f32 %v2808, %v3497
    %v3499 = vand.u32 %v3498, 4294901760
    %3500 = vmatpush1.msra.mxu0 %v3499
    %3501 = vmatprep.subr.mxu0 0.0
    %v3502 = vand.u32 %v2807, 4294901760
    %v3503 = vsub.f32 %v2807, %v3502
    %v3504 = vand.u32 %v3503, 4294901760
    %3505 = vmatpush1.msra.mxu0 %v3504
    %3506 = vmatprep.subr.mxu0 0.0
    %v3507 = vand.u32 %v2806, 4294901760
    %v3508 = vsub.f32 %v2806, %v3507
    %v3509 = vand.u32 %v3508, 4294901760
    %3510 = vmatpush1.msra.mxu0 %v3509
    %3511 = vmatprep.subr.mxu0 0.0
    %v3512 = vand.u32 %v2805, 4294901760
    %v3513 = vsub.f32 %v2805, %v3512
    %v3514 = vand.u32 %v3513, 4294901760
    %3515 = vmatpush1.msra.mxu0 %v3514
    %3516 = vmatprep.subr.mxu0 0.0
    %v3517 = vand.u32 %v2804, 4294901760
    %v3518 = vsub.f32 %v2804, %v3517
    %v3519 = vand.u32 %v3518, 4294901760
    %3520 = vmatpush1.msra.mxu0 %v3519
    %3521 = vmatprep.subr.mxu0 0.0
    %v3522 = vand.u32 %v2803, 4294901760
    %v3523 = vsub.f32 %v2803, %v3522
    %v3524 = vand.u32 %v3523, 4294901760
    %3525 = vmatpush1.msra.mxu0 %v3524
    %3526 = vmatprep.subr.mxu0 0.0
    %v3527 = vand.u32 %v2802, 4294901760
    %v3528 = vsub.f32 %v2802, %v3527
    %v3529 = vand.u32 %v3528, 4294901760
    %3530 = vmatpush1.msra.mxu0 %v3529
    %3531 = vmatprep.subr.mxu0 0.0
    %v3532 = vand.u32 %v2801, 4294901760
    %v3533 = vsub.f32 %v2801, %v3532
    %v3534 = vand.u32 %v3533, 4294901760
    %3535 = vmatpush1.msra.mxu0 %v3534
    %3536 = vmatprep.subr.mxu0 0.0
    %v3537 = vand.u32 %v2800, 4294901760
    %v3538 = vsub.f32 %v2800, %v3537
    %v3539 = vand.u32 %v3538, 4294901760
    %3540 = vmatpush1.msra.mxu0 %v3539
    %3541 = vmatprep.subr.mxu0 0.0
    %v3542 = vand.u32 %v2831, 4294901760
    %v3543 = vsub.f32 %v2831, %v3542
    %v3544 = vand.u32 %v3543, 4294901760
    %3545 = vmatpush2.msra.mxu0 %v3544
    %3546 = vmatprep.subr.mxu0 0.0
    %v3547 = vand.u32 %v2830, 4294901760
    %v3548 = vsub.f32 %v2830, %v3547
    %v3549 = vand.u32 %v3548, 4294901760
    %3550 = vmatpush2.msra.mxu0 %v3549
    %3551 = vmatprep.subr.mxu0 0.0
    %v3552 = vand.u32 %v2829, 4294901760
    %v3553 = vsub.f32 %v2829, %v3552
    %v3554 = vand.u32 %v3553, 4294901760
    %3555 = vmatpush2.msra.mxu0 %v3554
    %3556 = vmatprep.subr.mxu0 0.0
    %v3557 = vand.u32 %v2828, 4294901760
    %v3558 = vsub.f32 %v2828, %v3557
    %v3559 = vand.u32 %v3558, 4294901760
    %3560 = vmatpush2.msra.mxu0 %v3559
    %3561 = vmatprep.subr.mxu0 0.0
    %v3562 = vand.u32 %v2827, 4294901760
    %v3563 = vsub.f32 %v2827, %v3562
    %v3564 = vand.u32 %v3563, 4294901760
    %3565 = vmatpush2.msra.mxu0 %v3564
    %3566 = vmatprep.subr.mxu0 0.0
    %v3567 = vand.u32 %v2826, 4294901760
    %v3568 = vsub.f32 %v2826, %v3567
    %v3569 = vand.u32 %v3568, 4294901760
    %3570 = vmatpush2.msra.mxu0 %v3569
    %3571 = vmatprep.subr.mxu0 0.0
    %v3572 = vand.u32 %v2825, 4294901760
    %v3573 = vsub.f32 %v2825, %v3572
    %v3574 = vand.u32 %v3573, 4294901760
    %3575 = vmatpush2.msra.mxu0 %v3574
    %3576 = vmatprep.subr.mxu0 0.0
    %v3577 = vand.u32 %v2824, 4294901760
    %v3578 = vsub.f32 %v2824, %v3577
    %v3579 = vand.u32 %v3578, 4294901760
    %3580 = vmatpush2.msra.mxu0 %v3579
    %3581 = vmatprep.subr.mxu0 0.0
    %v3582 = vand.u32 %v2823, 4294901760
    %v3583 = vsub.f32 %v2823, %v3582
    %v3584 = vand.u32 %v3583, 4294901760
    %3585 = vmatpush2.msra.mxu0 %v3584
    %3586 = vmatprep.subr.mxu0 0.0
    %v3587 = vand.u32 %v2822, 4294901760
    %v3588 = vsub.f32 %v2822, %v3587
    %v3589 = vand.u32 %v3588, 4294901760
    %3590 = vmatpush2.msra.mxu0 %v3589
    %3591 = vmatprep.subr.mxu0 0.0
    %v3592 = vand.u32 %v2821, 4294901760
    %v3593 = vsub.f32 %v2821, %v3592
    %v3594 = vand.u32 %v3593, 4294901760
    %3595 = vmatpush2.msra.mxu0 %v3594
    %3596 = vmatprep.subr.mxu0 0.0
    %v3597 = vand.u32 %v2820, 4294901760
    %v3598 = vsub.f32 %v2820, %v3597
    %v3599 = vand.u32 %v3598, 4294901760
    %3600 = vmatpush2.msra.mxu0 %v3599
    %3601 = vmatprep.subr.mxu0 0.0
    %v3602 = vand.u32 %v2819, 4294901760
    %v3603 = vsub.f32 %v2819, %v3602
    %v3604 = vand.u32 %v3603, 4294901760
    %3605 = vmatpush2.msra.mxu0 %v3604
    %3606 = vmatprep.subr.mxu0 0.0
    %v3607 = vand.u32 %v2818, 4294901760
    %v3608 = vsub.f32 %v2818, %v3607
    %v3609 = vand.u32 %v3608, 4294901760
    %3610 = vmatpush2.msra.mxu0 %v3609
    %3611 = vmatprep.subr.mxu0 0.0
    %v3612 = vand.u32 %v2817, 4294901760
    %v3613 = vsub.f32 %v2817, %v3612
    %v3614 = vand.u32 %v3613, 4294901760
    %3615 = vmatpush2.msra.mxu0 %v3614
    %3616 = vmatprep.subr.mxu0 0.0
    %v3617 = vand.u32 %v2816, 4294901760
    %v3618 = vsub.f32 %v2816, %v3617
    %v3619 = vand.u32 %v3618, 4294901760
    %3620 = vmatpush2.msra.mxu0 %v3619
    %v3621 = vand.u32 %v2797, 4294901760
    %3622 = vmatprep.mubr.f32.mxu0 %v3621
    %v3623 = vand.u32 %v2796, 4294901760
    %3624 = vmatmul.mubr.f32.gmra.mxu0 %v3623
    %v3625 = vpop.f32.mrf.mxu0
    %v3626 = vadd.f32 %v3458, %v3625
    %v3627 = vpop.f32.mrf.mxu0
    %3628 = vdwg.mxu0
    %3629 = vmatprep.subr.mxu0 0.0
    %v3630 = vand.u32 %v2815, 4294901760
    %3631 = vmatpush1.msra.mxu0 %v3630
    %3632 = vmatprep.subr.mxu0 0.0
    %v3633 = vand.u32 %v2814, 4294901760
    %3634 = vmatpush1.msra.mxu0 %v3633
    %3635 = vmatprep.subr.mxu0 0.0
    %v3636 = vand.u32 %v2813, 4294901760
    %3637 = vmatpush1.msra.mxu0 %v3636
    %3638 = vmatprep.subr.mxu0 0.0
    %v3639 = vand.u32 %v2812, 4294901760
    %3640 = vmatpush1.msra.mxu0 %v3639
    %3641 = vmatprep.subr.mxu0 0.0
    %v3642 = vand.u32 %v2811, 4294901760
    %3643 = vmatpush1.msra.mxu0 %v3642
    %3644 = vmatprep.subr.mxu0 0.0
    %v3645 = vand.u32 %v2810, 4294901760
    %3646 = vmatpush1.msra.mxu0 %v3645
    %3647 = vmatprep.subr.mxu0 0.0
    %v3648 = vand.u32 %v2809, 4294901760
    %3649 = vmatpush1.msra.mxu0 %v3648
    %3650 = vmatprep.subr.mxu0 0.0
    %v3651 = vand.u32 %v2808, 4294901760
    %3652 = vmatpush1.msra.mxu0 %v3651
    %3653 = vmatprep.subr.mxu0 0.0
    %v3654 = vand.u32 %v2807, 4294901760
    %3655 = vmatpush1.msra.mxu0 %v3654
    %3656 = vmatprep.subr.mxu0 0.0
    %v3657 = vand.u32 %v2806, 4294901760
    %3658 = vmatpush1.msra.mxu0 %v3657
    %3659 = vmatprep.subr.mxu0 0.0
    %v3660 = vand.u32 %v2805, 4294901760
    %3661 = vmatpush1.msra.mxu0 %v3660
    %3662 = vmatprep.subr.mxu0 0.0
    %v3663 = vand.u32 %v2804, 4294901760
    %3664 = vmatpush1.msra.mxu0 %v3663
    %3665 = vmatprep.subr.mxu0 0.0
    %v3666 = vand.u32 %v2803, 4294901760
    %3667 = vmatpush1.msra.mxu0 %v3666
    %3668 = vmatprep.subr.mxu0 0.0
    %v3669 = vand.u32 %v2802, 4294901760
    %3670 = vmatpush1.msra.mxu0 %v3669
    %3671 = vmatprep.subr.mxu0 0.0
    %v3672 = vand.u32 %v2801, 4294901760
    %3673 = vmatpush1.msra.mxu0 %v3672
    %3674 = vmatprep.subr.mxu0 0.0
    %v3675 = vand.u32 %v2800, 4294901760
    %3676 = vmatpush1.msra.mxu0 %v3675
    %3677 = vmatprep.subr.mxu0 0.0
    %v3678 = vand.u32 %v2831, 4294901760
    %3679 = vmatpush2.msra.mxu0 %v3678
    %3680 = vmatprep.subr.mxu0 0.0
    %v3681 = vand.u32 %v2830, 4294901760
    %3682 = vmatpush2.msra.mxu0 %v3681
    %3683 = vmatprep.subr.mxu0 0.0
    %v3684 = vand.u32 %v2829, 4294901760
    %3685 = vmatpush2.msra.mxu0 %v3684
    %3686 = vmatprep.subr.mxu0 0.0
    %v3687 = vand.u32 %v2828, 4294901760
    %3688 = vmatpush2.msra.mxu0 %v3687
    %3689 = vmatprep.subr.mxu0 0.0
    %v3690 = vand.u32 %v2827, 4294901760
    %3691 = vmatpush2.msra.mxu0 %v3690
    %3692 = vmatprep.subr.mxu0 0.0
    %v3693 = vand.u32 %v2826, 4294901760
    %3694 = vmatpush2.msra.mxu0 %v3693
    %3695 = vmatprep.subr.mxu0 0.0
    %v3696 = vand.u32 %v2825, 4294901760
    %3697 = vmatpush2.msra.mxu0 %v3696
    %3698 = vmatprep.subr.mxu0 0.0
    %v3699 = vand.u32 %v2824, 4294901760
    %3700 = vmatpush2.msra.mxu0 %v3699
    %3701 = vmatprep.subr.mxu0 0.0
    %v3702 = vand.u32 %v2823, 4294901760
    %3703 = vmatpush2.msra.mxu0 %v3702
    %3704 = vmatprep.subr.mxu0 0.0
    %v3705 = vand.u32 %v2822, 4294901760
    %3706 = vmatpush2.msra.mxu0 %v3705
    %3707 = vmatprep.subr.mxu0 0.0
    %v3708 = vand.u32 %v2821, 4294901760
    %3709 = vmatpush2.msra.mxu0 %v3708
    %3710 = vmatprep.subr.mxu0 0.0
    %v3711 = vand.u32 %v2820, 4294901760
    %3712 = vmatpush2.msra.mxu0 %v3711
    %3713 = vmatprep.subr.mxu0 0.0
    %v3714 = vand.u32 %v2819, 4294901760
    %3715 = vmatpush2.msra.mxu0 %v3714
    %3716 = vmatprep.subr.mxu0 0.0
    %v3717 = vand.u32 %v2818, 4294901760
    %3718 = vmatpush2.msra.mxu0 %v3717
    %3719 = vmatprep.subr.mxu0 0.0
    %v3720 = vand.u32 %v2817, 4294901760
    %3721 = vmatpush2.msra.mxu0 %v3720
    %3722 = vmatprep.subr.mxu0 0.0
    %v3723 = vand.u32 %v2816, 4294901760
    %3724 = vmatpush2.msra.mxu0 %v3723
    %v3725 = vand.u32 %v2797, 4294901760
    %3726 = vmatprep.mubr.f32.mxu0 %v3725
    %v3727 = vand.u32 %v2796, 4294901760
    %3728 = vmatmul.mubr.f32.gmra.mxu0 %v3727
    %v3729 = vpop.f32.mrf.mxu0
    %v3730 = vadd.f32 %v3626, %v3729
    %v3731 = vpop.f32.mrf.mxu0
    %3732 = vdwg.mxu0
    %3733 = vmatprep.subr.mxu0 0.0
    %v3734 = vand.u32 %v2847, 4294901760
    %3735 = vmatpush1.msra.mxu0 %v3734
    %3736 = vmatprep.subr.mxu0 0.0
    %v3737 = vand.u32 %v2846, 4294901760
    %3738 = vmatpush1.msra.mxu0 %v3737
    %3739 = vmatprep.subr.mxu0 0.0
    %v3740 = vand.u32 %v2845, 4294901760
    %3741 = vmatpush1.msra.mxu0 %v3740
    %3742 = vmatprep.subr.mxu0 0.0
    %v3743 = vand.u32 %v2844, 4294901760
    %3744 = vmatpush1.msra.mxu0 %v3743
    %3745 = vmatprep.subr.mxu0 0.0
    %v3746 = vand.u32 %v2843, 4294901760
    %3747 = vmatpush1.msra.mxu0 %v3746
    %3748 = vmatprep.subr.mxu0 0.0
    %v3749 = vand.u32 %v2842, 4294901760
    %3750 = vmatpush1.msra.mxu0 %v3749
    %3751 = vmatprep.subr.mxu0 0.0
    %v3752 = vand.u32 %v2841, 4294901760
    %3753 = vmatpush1.msra.mxu0 %v3752
    %3754 = vmatprep.subr.mxu0 0.0
    %v3755 = vand.u32 %v2840, 4294901760
    %3756 = vmatpush1.msra.mxu0 %v3755
    %3757 = vmatprep.subr.mxu0 0.0
    %v3758 = vand.u32 %v2839, 4294901760
    %3759 = vmatpush1.msra.mxu0 %v3758
    %3760 = vmatprep.subr.mxu0 0.0
    %v3761 = vand.u32 %v2838, 4294901760
    %3762 = vmatpush1.msra.mxu0 %v3761
    %3763 = vmatprep.subr.mxu0 0.0
    %v3764 = vand.u32 %v2837, 4294901760
    %3765 = vmatpush1.msra.mxu0 %v3764
    %3766 = vmatprep.subr.mxu0 0.0
    %v3767 = vand.u32 %v2836, 4294901760
    %3768 = vmatpush1.msra.mxu0 %v3767
    %3769 = vmatprep.subr.mxu0 0.0
    %v3770 = vand.u32 %v2835, 4294901760
    %3771 = vmatpush1.msra.mxu0 %v3770
    %3772 = vmatprep.subr.mxu0 0.0
    %v3773 = vand.u32 %v2834, 4294901760
    %3774 = vmatpush1.msra.mxu0 %v3773
    %3775 = vmatprep.subr.mxu0 0.0
    %v3776 = vand.u32 %v2833, 4294901760
    %3777 = vmatpush1.msra.mxu0 %v3776
    %3778 = vmatprep.subr.mxu0 0.0
    %v3779 = vand.u32 %v2832, 4294901760
    %3780 = vmatpush1.msra.mxu0 %v3779
    %3781 = vmatprep.subr.mxu0 0.0
    %v3782 = vand.u32 %v2863, 4294901760
    %3783 = vmatpush2.msra.mxu0 %v3782
    %3784 = vmatprep.subr.mxu0 0.0
    %v3785 = vand.u32 %v2862, 4294901760
    %3786 = vmatpush2.msra.mxu0 %v3785
    %3787 = vmatprep.subr.mxu0 0.0
    %v3788 = vand.u32 %v2861, 4294901760
    %3789 = vmatpush2.msra.mxu0 %v3788
    %3790 = vmatprep.subr.mxu0 0.0
    %v3791 = vand.u32 %v2860, 4294901760
    %3792 = vmatpush2.msra.mxu0 %v3791
    %3793 = vmatprep.subr.mxu0 0.0
    %v3794 = vand.u32 %v2859, 4294901760
    %3795 = vmatpush2.msra.mxu0 %v3794
    %3796 = vmatprep.subr.mxu0 0.0
    %v3797 = vand.u32 %v2858, 4294901760
    %3798 = vmatpush2.msra.mxu0 %v3797
    %3799 = vmatprep.subr.mxu0 0.0
    %v3800 = vand.u32 %v2857, 4294901760
    %3801 = vmatpush2.msra.mxu0 %v3800
    %3802 = vmatprep.subr.mxu0 0.0
    %v3803 = vand.u32 %v2856, 4294901760
    %3804 = vmatpush2.msra.mxu0 %v3803
    %3805 = vmatprep.subr.mxu0 0.0
    %v3806 = vand.u32 %v2855, 4294901760
    %3807 = vmatpush2.msra.mxu0 %v3806
    %3808 = vmatprep.subr.mxu0 0.0
    %v3809 = vand.u32 %v2854, 4294901760
    %3810 = vmatpush2.msra.mxu0 %v3809
    %3811 = vmatprep.subr.mxu0 0.0
    %v3812 = vand.u32 %v2853, 4294901760
    %3813 = vmatpush2.msra.mxu0 %v3812
    %3814 = vmatprep.subr.mxu0 0.0
    %v3815 = vand.u32 %v2852, 4294901760
    %3816 = vmatpush2.msra.mxu0 %v3815
    %3817 = vmatprep.subr.mxu0 0.0
    %v3818 = vand.u32 %v2851, 4294901760
    %3819 = vmatpush2.msra.mxu0 %v3818
    %3820 = vmatprep.subr.mxu0 0.0
    %v3821 = vand.u32 %v2850, 4294901760
    %3822 = vmatpush2.msra.mxu0 %v3821
    %3823 = vmatprep.subr.mxu0 0.0
    %v3824 = vand.u32 %v2849, 4294901760
    %3825 = vmatpush2.msra.mxu0 %v3824
    %3826 = vmatprep.subr.mxu0 0.0
    %v3827 = vand.u32 %v2848, 4294901760
    %3828 = vmatpush2.msra.mxu0 %v3827
    %v3829 = vand.u32 %v2799, 4294901760
    %v3830 = vsub.f32 %v2799, %v3829
    %v3831 = vand.u32 %v3830, 4294901760
    %v3832 = vsub.f32 %v3830, %v3831
    %v3833 = vand.u32 %v3832, 4294901760
    %3834 = vmatprep.mubr.f32.mxu0 %v3833
    %v3835 = vand.u32 %v2798, 4294901760
    %v3836 = vsub.f32 %v2798, %v3835
    %v3837 = vand.u32 %v3836, 4294901760
    %v3838 = vsub.f32 %v3836, %v3837
    %v3839 = vand.u32 %v3838, 4294901760
    %3840 = vmatmul.mubr.f32.gmra.mxu0 %v3839
    %v3841 = vpop.f32.mrf.mxu0
    %v3842 = vadd.f32 %v3730, %v3841
    %v3843 = vpop.f32.mrf.mxu0
    %3844 = vdwg.mxu0
    %3845 = vmatprep.subr.mxu0 0.0
    %v3846 = vand.u32 %v2847, 4294901760
    %v3847 = vsub.f32 %v2847, %v3846
    %v3848 = vand.u32 %v3847, 4294901760
    %v3849 = vsub.f32 %v3847, %v3848
    %v3850 = vand.u32 %v3849, 4294901760
    %3851 = vmatpush1.msra.mxu0 %v3850
    %3852 = vmatprep.subr.mxu0 0.0
    %v3853 = vand.u32 %v2846, 4294901760
    %v3854 = vsub.f32 %v2846, %v3853
    %v3855 = vand.u32 %v3854, 4294901760
    %v3856 = vsub.f32 %v3854, %v3855
    %v3857 = vand.u32 %v3856, 4294901760
    %3858 = vmatpush1.msra.mxu0 %v3857
    %3859 = vmatprep.subr.mxu0 0.0
    %v3860 = vand.u32 %v2845, 4294901760
    %v3861 = vsub.f32 %v2845, %v3860
    %v3862 = vand.u32 %v3861, 4294901760
    %v3863 = vsub.f32 %v3861, %v3862
    %v3864 = vand.u32 %v3863, 4294901760
    %3865 = vmatpush1.msra.mxu0 %v3864
    %3866 = vmatprep.subr.mxu0 0.0
    %v3867 = vand.u32 %v2844, 4294901760
    %v3868 = vsub.f32 %v2844, %v3867
    %v3869 = vand.u32 %v3868, 4294901760
    %v3870 = vsub.f32 %v3868, %v3869
    %v3871 = vand.u32 %v3870, 4294901760
    %3872 = vmatpush1.msra.mxu0 %v3871
    %3873 = vmatprep.subr.mxu0 0.0
    %v3874 = vand.u32 %v2843, 4294901760
    %v3875 = vsub.f32 %v2843, %v3874
    %v3876 = vand.u32 %v3875, 4294901760
    %v3877 = vsub.f32 %v3875, %v3876
    %v3878 = vand.u32 %v3877, 4294901760
    %3879 = vmatpush1.msra.mxu0 %v3878
    %3880 = vmatprep.subr.mxu0 0.0
    %v3881 = vand.u32 %v2842, 4294901760
    %v3882 = vsub.f32 %v2842, %v3881
    %v3883 = vand.u32 %v3882, 4294901760
    %v3884 = vsub.f32 %v3882, %v3883
    %v3885 = vand.u32 %v3884, 4294901760
    %3886 = vmatpush1.msra.mxu0 %v3885
    %3887 = vmatprep.subr.mxu0 0.0
    %v3888 = vand.u32 %v2841, 4294901760
    %v3889 = vsub.f32 %v2841, %v3888
    %v3890 = vand.u32 %v3889, 4294901760
    %v3891 = vsub.f32 %v3889, %v3890
    %v3892 = vand.u32 %v3891, 4294901760
    %3893 = vmatpush1.msra.mxu0 %v3892
    %3894 = vmatprep.subr.mxu0 0.0
    %v3895 = vand.u32 %v2840, 4294901760
    %v3896 = vsub.f32 %v2840, %v3895
    %v3897 = vand.u32 %v3896, 4294901760
    %v3898 = vsub.f32 %v3896, %v3897
    %v3899 = vand.u32 %v3898, 4294901760
    %3900 = vmatpush1.msra.mxu0 %v3899
    %3901 = vmatprep.subr.mxu0 0.0
    %v3902 = vand.u32 %v2839, 4294901760
    %v3903 = vsub.f32 %v2839, %v3902
    %v3904 = vand.u32 %v3903, 4294901760
    %v3905 = vsub.f32 %v3903, %v3904
    %v3906 = vand.u32 %v3905, 4294901760
    %3907 = vmatpush1.msra.mxu0 %v3906
    %3908 = vmatprep.subr.mxu0 0.0
    %v3909 = vand.u32 %v2838, 4294901760
    %v3910 = vsub.f32 %v2838, %v3909
    %v3911 = vand.u32 %v3910, 4294901760
    %v3912 = vsub.f32 %v3910, %v3911
    %v3913 = vand.u32 %v3912, 4294901760
    %3914 = vmatpush1.msra.mxu0 %v3913
    %3915 = vmatprep.subr.mxu0 0.0
    %v3916 = vand.u32 %v2837, 4294901760
    %v3917 = vsub.f32 %v2837, %v3916
    %v3918 = vand.u32 %v3917, 4294901760
    %v3919 = vsub.f32 %v3917, %v3918
    %v3920 = vand.u32 %v3919, 4294901760
    %3921 = vmatpush1.msra.mxu0 %v3920
    %3922 = vmatprep.subr.mxu0 0.0
    %v3923 = vand.u32 %v2836, 4294901760
    %v3924 = vsub.f32 %v2836, %v3923
    %v3925 = vand.u32 %v3924, 4294901760
    %v3926 = vsub.f32 %v3924, %v3925
    %v3927 = vand.u32 %v3926, 4294901760
    %3928 = vmatpush1.msra.mxu0 %v3927
    %3929 = vmatprep.subr.mxu0 0.0
    %v3930 = vand.u32 %v2835, 4294901760
    %v3931 = vsub.f32 %v2835, %v3930
    %v3932 = vand.u32 %v3931, 4294901760
    %v3933 = vsub.f32 %v3931, %v3932
    %v3934 = vand.u32 %v3933, 4294901760
    %3935 = vmatpush1.msra.mxu0 %v3934
    %3936 = vmatprep.subr.mxu0 0.0
    %v3937 = vand.u32 %v2834, 4294901760
    %v3938 = vsub.f32 %v2834, %v3937
    %v3939 = vand.u32 %v3938, 4294901760
    %v3940 = vsub.f32 %v3938, %v3939
    %v3941 = vand.u32 %v3940, 4294901760
    %3942 = vmatpush1.msra.mxu0 %v3941
    %3943 = vmatprep.subr.mxu0 0.0
    %v3944 = vand.u32 %v2833, 4294901760
    %v3945 = vsub.f32 %v2833, %v3944
    %v3946 = vand.u32 %v3945, 4294901760
    %v3947 = vsub.f32 %v3945, %v3946
    %v3948 = vand.u32 %v3947, 4294901760
    %3949 = vmatpush1.msra.mxu0 %v3948
    %3950 = vmatprep.subr.mxu0 0.0
    %v3951 = vand.u32 %v2832, 4294901760
    %v3952 = vsub.f32 %v2832, %v3951
    %v3953 = vand.u32 %v3952, 4294901760
    %v3954 = vsub.f32 %v3952, %v3953
    %v3955 = vand.u32 %v3954, 4294901760
    %3956 = vmatpush1.msra.mxu0 %v3955
    %3957 = vmatprep.subr.mxu0 0.0
    %v3958 = vand.u32 %v2863, 4294901760
    %v3959 = vsub.f32 %v2863, %v3958
    %v3960 = vand.u32 %v3959, 4294901760
    %v3961 = vsub.f32 %v3959, %v3960
    %v3962 = vand.u32 %v3961, 4294901760
    %3963 = vmatpush2.msra.mxu0 %v3962
    %3964 = vmatprep.subr.mxu0 0.0
    %v3965 = vand.u32 %v2862, 4294901760
    %v3966 = vsub.f32 %v2862, %v3965
    %v3967 = vand.u32 %v3966, 4294901760
    %v3968 = vsub.f32 %v3966, %v3967
    %v3969 = vand.u32 %v3968, 4294901760
    %3970 = vmatpush2.msra.mxu0 %v3969
    %3971 = vmatprep.subr.mxu0 0.0
    %v3972 = vand.u32 %v2861, 4294901760
    %v3973 = vsub.f32 %v2861, %v3972
    %v3974 = vand.u32 %v3973, 4294901760
    %v3975 = vsub.f32 %v3973, %v3974
    %v3976 = vand.u32 %v3975, 4294901760
    %3977 = vmatpush2.msra.mxu0 %v3976
    %3978 = vmatprep.subr.mxu0 0.0
    %v3979 = vand.u32 %v2860, 4294901760
    %v3980 = vsub.f32 %v2860, %v3979
    %v3981 = vand.u32 %v3980, 4294901760
    %v3982 = vsub.f32 %v3980, %v3981
    %v3983 = vand.u32 %v3982, 4294901760
    %3984 = vmatpush2.msra.mxu0 %v3983
    %3985 = vmatprep.subr.mxu0 0.0
    %v3986 = vand.u32 %v2859, 4294901760
    %v3987 = vsub.f32 %v2859, %v3986
    %v3988 = vand.u32 %v3987, 4294901760
    %v3989 = vsub.f32 %v3987, %v3988
    %v3990 = vand.u32 %v3989, 4294901760
    %3991 = vmatpush2.msra.mxu0 %v3990
    %3992 = vmatprep.subr.mxu0 0.0
    %v3993 = vand.u32 %v2858, 4294901760
    %v3994 = vsub.f32 %v2858, %v3993
    %v3995 = vand.u32 %v3994, 4294901760
    %v3996 = vsub.f32 %v3994, %v3995
    %v3997 = vand.u32 %v3996, 4294901760
    %3998 = vmatpush2.msra.mxu0 %v3997
    %3999 = vmatprep.subr.mxu0 0.0
    %v4000 = vand.u32 %v2857, 4294901760
    %v4001 = vsub.f32 %v2857, %v4000
    %v4002 = vand.u32 %v4001, 4294901760
    %v4003 = vsub.f32 %v4001, %v4002
    %v4004 = vand.u32 %v4003, 4294901760
    %4005 = vmatpush2.msra.mxu0 %v4004
    %4006 = vmatprep.subr.mxu0 0.0
    %v4007 = vand.u32 %v2856, 4294901760
    %v4008 = vsub.f32 %v2856, %v4007
    %v4009 = vand.u32 %v4008, 4294901760
    %v4010 = vsub.f32 %v4008, %v4009
    %v4011 = vand.u32 %v4010, 4294901760
    %4012 = vmatpush2.msra.mxu0 %v4011
    %4013 = vmatprep.subr.mxu0 0.0
    %v4014 = vand.u32 %v2855, 4294901760
    %v4015 = vsub.f32 %v2855, %v4014
    %v4016 = vand.u32 %v4015, 4294901760
    %v4017 = vsub.f32 %v4015, %v4016
    %v4018 = vand.u32 %v4017, 4294901760
    %4019 = vmatpush2.msra.mxu0 %v4018
    %4020 = vmatprep.subr.mxu0 0.0
    %v4021 = vand.u32 %v2854, 4294901760
    %v4022 = vsub.f32 %v2854, %v4021
    %v4023 = vand.u32 %v4022, 4294901760
    %v4024 = vsub.f32 %v4022, %v4023
    %v4025 = vand.u32 %v4024, 4294901760
    %4026 = vmatpush2.msra.mxu0 %v4025
    %4027 = vmatprep.subr.mxu0 0.0
    %v4028 = vand.u32 %v2853, 4294901760
    %v4029 = vsub.f32 %v2853, %v4028
    %v4030 = vand.u32 %v4029, 4294901760
    %v4031 = vsub.f32 %v4029, %v4030
    %v4032 = vand.u32 %v4031, 4294901760
    %4033 = vmatpush2.msra.mxu0 %v4032
    %4034 = vmatprep.subr.mxu0 0.0
    %v4035 = vand.u32 %v2852, 4294901760
    %v4036 = vsub.f32 %v2852, %v4035
    %v4037 = vand.u32 %v4036, 4294901760
    %v4038 = vsub.f32 %v4036, %v4037
    %v4039 = vand.u32 %v4038, 4294901760
    %4040 = vmatpush2.msra.mxu0 %v4039
    %4041 = vmatprep.subr.mxu0 0.0
    %v4042 = vand.u32 %v2851, 4294901760
    %v4043 = vsub.f32 %v2851, %v4042
    %v4044 = vand.u32 %v4043, 4294901760
    %v4045 = vsub.f32 %v4043, %v4044
    %v4046 = vand.u32 %v4045, 4294901760
    %4047 = vmatpush2.msra.mxu0 %v4046
    %4048 = vmatprep.subr.mxu0 0.0
    %v4049 = vand.u32 %v2850, 4294901760
    %v4050 = vsub.f32 %v2850, %v4049
    %v4051 = vand.u32 %v4050, 4294901760
    %v4052 = vsub.f32 %v4050, %v4051
    %v4053 = vand.u32 %v4052, 4294901760
    %4054 = vmatpush2.msra.mxu0 %v4053
    %4055 = vmatprep.subr.mxu0 0.0
    %v4056 = vand.u32 %v2849, 4294901760
    %v4057 = vsub.f32 %v2849, %v4056
    %v4058 = vand.u32 %v4057, 4294901760
    %v4059 = vsub.f32 %v4057, %v4058
    %v4060 = vand.u32 %v4059, 4294901760
    %4061 = vmatpush2.msra.mxu0 %v4060
    %4062 = vmatprep.subr.mxu0 0.0
    %v4063 = vand.u32 %v2848, 4294901760
    %v4064 = vsub.f32 %v2848, %v4063
    %v4065 = vand.u32 %v4064, 4294901760
    %v4066 = vsub.f32 %v4064, %v4065
    %v4067 = vand.u32 %v4066, 4294901760
    %4068 = vmatpush2.msra.mxu0 %v4067
    %v4069 = vand.u32 %v2799, 4294901760
    %4070 = vmatprep.mubr.f32.mxu0 %v4069
    %v4071 = vand.u32 %v2798, 4294901760
    %4072 = vmatmul.mubr.f32.gmra.mxu0 %v4071
    %v4073 = vpop.f32.mrf.mxu0
    %v4074 = vadd.f32 %v3842, %v4073
    %v4075 = vpop.f32.mrf.mxu0
    %4076 = vdwg.mxu0
    %4077 = vmatprep.subr.mxu0 0.0
    %v4078 = vand.u32 %v2847, 4294901760
    %v4079 = vsub.f32 %v2847, %v4078
    %4080 = vmatpush1.msra.mxu0 %v4079
    %4081 = vmatprep.subr.mxu0 0.0
    %v4082 = vand.u32 %v2846, 4294901760
    %v4083 = vsub.f32 %v2846, %v4082
    %4084 = vmatpush1.msra.mxu0 %v4083
    %4085 = vmatprep.subr.mxu0 0.0
    %v4086 = vand.u32 %v2845, 4294901760
    %v4087 = vsub.f32 %v2845, %v4086
    %4088 = vmatpush1.msra.mxu0 %v4087
    %4089 = vmatprep.subr.mxu0 0.0
    %v4090 = vand.u32 %v2844, 4294901760
    %v4091 = vsub.f32 %v2844, %v4090
    %4092 = vmatpush1.msra.mxu0 %v4091
    %4093 = vmatprep.subr.mxu0 0.0
    %v4094 = vand.u32 %v2843, 4294901760
    %v4095 = vsub.f32 %v2843, %v4094
    %4096 = vmatpush1.msra.mxu0 %v4095
    %4097 = vmatprep.subr.mxu0 0.0
    %v4098 = vand.u32 %v2842, 4294901760
    %v4099 = vsub.f32 %v2842, %v4098
    %4100 = vmatpush1.msra.mxu0 %v4099
    %4101 = vmatprep.subr.mxu0 0.0
    %v4102 = vand.u32 %v2841, 4294901760
    %v4103 = vsub.f32 %v2841, %v4102
    %4104 = vmatpush1.msra.mxu0 %v4103
    %4105 = vmatprep.subr.mxu0 0.0
    %v4106 = vand.u32 %v2840, 4294901760
    %v4107 = vsub.f32 %v2840, %v4106
    %4108 = vmatpush1.msra.mxu0 %v4107
    %4109 = vmatprep.subr.mxu0 0.0
    %v4110 = vand.u32 %v2839, 4294901760
    %v4111 = vsub.f32 %v2839, %v4110
    %4112 = vmatpush1.msra.mxu0 %v4111
    %4113 = vmatprep.subr.mxu0 0.0
    %v4114 = vand.u32 %v2838, 4294901760
    %v4115 = vsub.f32 %v2838, %v4114
    %4116 = vmatpush1.msra.mxu0 %v4115
    %4117 = vmatprep.subr.mxu0 0.0
    %v4118 = vand.u32 %v2837, 4294901760
    %v4119 = vsub.f32 %v2837, %v4118
    %4120 = vmatpush1.msra.mxu0 %v4119
    %4121 = vmatprep.subr.mxu0 0.0
    %v4122 = vand.u32 %v2836, 4294901760
    %v4123 = vsub.f32 %v2836, %v4122
    %4124 = vmatpush1.msra.mxu0 %v4123
    %4125 = vmatprep.subr.mxu0 0.0
    %v4126 = vand.u32 %v2835, 4294901760
    %v4127 = vsub.f32 %v2835, %v4126
    %4128 = vmatpush1.msra.mxu0 %v4127
    %4129 = vmatprep.subr.mxu0 0.0
    %v4130 = vand.u32 %v2834, 4294901760
    %v4131 = vsub.f32 %v2834, %v4130
    %4132 = vmatpush1.msra.mxu0 %v4131
    %4133 = vmatprep.subr.mxu0 0.0
    %v4134 = vand.u32 %v2833, 4294901760
    %v4135 = vsub.f32 %v2833, %v4134
    %4136 = vmatpush1.msra.mxu0 %v4135
    %4137 = vmatprep.subr.mxu0 0.0
    %v4138 = vand.u32 %v2832, 4294901760
    %v4139 = vsub.f32 %v2832, %v4138
    %4140 = vmatpush1.msra.mxu0 %v4139
    %4141 = vmatprep.subr.mxu0 0.0
    %v4142 = vand.u32 %v2863, 4294901760
    %v4143 = vsub.f32 %v2863, %v4142
    %4144 = vmatpush2.msra.mxu0 %v4143
    %4145 = vmatprep.subr.mxu0 0.0
    %v4146 = vand.u32 %v2862, 4294901760
    %v4147 = vsub.f32 %v2862, %v4146
    %4148 = vmatpush2.msra.mxu0 %v4147
    %4149 = vmatprep.subr.mxu0 0.0
    %v4150 = vand.u32 %v2861, 4294901760
    %v4151 = vsub.f32 %v2861, %v4150
    %4152 = vmatpush2.msra.mxu0 %v4151
    %4153 = vmatprep.subr.mxu0 0.0
    %v4154 = vand.u32 %v2860, 4294901760
    %v4155 = vsub.f32 %v2860, %v4154
    %4156 = vmatpush2.msra.mxu0 %v4155
    %4157 = vmatprep.subr.mxu0 0.0
    %v4158 = vand.u32 %v2859, 4294901760
    %v4159 = vsub.f32 %v2859, %v4158
    %4160 = vmatpush2.msra.mxu0 %v4159
    %4161 = vmatprep.subr.mxu0 0.0
    %v4162 = vand.u32 %v2858, 4294901760
    %v4163 = vsub.f32 %v2858, %v4162
    %4164 = vmatpush2.msra.mxu0 %v4163
    %4165 = vmatprep.subr.mxu0 0.0
    %v4166 = vand.u32 %v2857, 4294901760
    %v4167 = vsub.f32 %v2857, %v4166
    %4168 = vmatpush2.msra.mxu0 %v4167
    %4169 = vmatprep.subr.mxu0 0.0
    %v4170 = vand.u32 %v2856, 4294901760
    %v4171 = vsub.f32 %v2856, %v4170
    %4172 = vmatpush2.msra.mxu0 %v4171
    %4173 = vmatprep.subr.mxu0 0.0
    %v4174 = vand.u32 %v2855, 4294901760
    %v4175 = vsub.f32 %v2855, %v4174
    %4176 = vmatpush2.msra.mxu0 %v4175
    %4177 = vmatprep.subr.mxu0 0.0
    %v4178 = vand.u32 %v2854, 4294901760
    %v4179 = vsub.f32 %v2854, %v4178
    %4180 = vmatpush2.msra.mxu0 %v4179
    %4181 = vmatprep.subr.mxu0 0.0
    %v4182 = vand.u32 %v2853, 4294901760
    %v4183 = vsub.f32 %v2853, %v4182
    %4184 = vmatpush2.msra.mxu0 %v4183
    %4185 = vmatprep.subr.mxu0 0.0
    %v4186 = vand.u32 %v2852, 4294901760
    %v4187 = vsub.f32 %v2852, %v4186
    %4188 = vmatpush2.msra.mxu0 %v4187
    %4189 = vmatprep.subr.mxu0 0.0
    %v4190 = vand.u32 %v2851, 4294901760
    %v4191 = vsub.f32 %v2851, %v4190
    %4192 = vmatpush2.msra.mxu0 %v4191
    %4193 = vmatprep.subr.mxu0 0.0
    %v4194 = vand.u32 %v2850, 4294901760
    %v4195 = vsub.f32 %v2850, %v4194
    %4196 = vmatpush2.msra.mxu0 %v4195
    %4197 = vmatprep.subr.mxu0 0.0
    %v4198 = vand.u32 %v2849, 4294901760
    %v4199 = vsub.f32 %v2849, %v4198
    %4200 = vmatpush2.msra.mxu0 %v4199
    %4201 = vmatprep.subr.mxu0 0.0
    %v4202 = vand.u32 %v2848, 4294901760
    %v4203 = vsub.f32 %v2848, %v4202
    %4204 = vmatpush2.msra.mxu0 %v4203
    %v4205 = vand.u32 %v2799, 4294901760
    %v4206 = vsub.f32 %v2799, %v4205
    %4207 = vmatprep.mubr.f32.mxu0 %v4206
    %v4208 = vand.u32 %v2798, 4294901760
    %v4209 = vsub.f32 %v2798, %v4208
    %4210 = vmatmul.mubr.f32.gmra.mxu0 %v4209
    %v4211 = vpop.f32.mrf.mxu0
    %v4212 = vadd.f32 %v4074, %v4211
    %v4213 = vpop.f32.mrf.mxu0
    %4214 = vdwg.mxu0
    %4215 = vmatprep.subr.mxu0 0.0
    %v4216 = vand.u32 %v2847, 4294901760
    %4217 = vmatpush1.msra.mxu0 %v4216
    %4218 = vmatprep.subr.mxu0 0.0
    %v4219 = vand.u32 %v2846, 4294901760
    %4220 = vmatpush1.msra.mxu0 %v4219
    %4221 = vmatprep.subr.mxu0 0.0
    %v4222 = vand.u32 %v2845, 4294901760
    %4223 = vmatpush1.msra.mxu0 %v4222
    %4224 = vmatprep.subr.mxu0 0.0
    %v4225 = vand.u32 %v2844, 4294901760
    %4226 = vmatpush1.msra.mxu0 %v4225
    %4227 = vmatprep.subr.mxu0 0.0
    %v4228 = vand.u32 %v2843, 4294901760
    %4229 = vmatpush1.msra.mxu0 %v4228
    %4230 = vmatprep.subr.mxu0 0.0
    %v4231 = vand.u32 %v2842, 4294901760
    %4232 = vmatpush1.msra.mxu0 %v4231
    %4233 = vmatprep.subr.mxu0 0.0
    %v4234 = vand.u32 %v2841, 4294901760
    %4235 = vmatpush1.msra.mxu0 %v4234
    %4236 = vmatprep.subr.mxu0 0.0
    %v4237 = vand.u32 %v2840, 4294901760
    %4238 = vmatpush1.msra.mxu0 %v4237
    %4239 = vmatprep.subr.mxu0 0.0
    %v4240 = vand.u32 %v2839, 4294901760
    %4241 = vmatpush1.msra.mxu0 %v4240
    %4242 = vmatprep.subr.mxu0 0.0
    %v4243 = vand.u32 %v2838, 4294901760
    %4244 = vmatpush1.msra.mxu0 %v4243
    %4245 = vmatprep.subr.mxu0 0.0
    %v4246 = vand.u32 %v2837, 4294901760
    %4247 = vmatpush1.msra.mxu0 %v4246
    %4248 = vmatprep.subr.mxu0 0.0
    %v4249 = vand.u32 %v2836, 4294901760
    %4250 = vmatpush1.msra.mxu0 %v4249
    %4251 = vmatprep.subr.mxu0 0.0
    %v4252 = vand.u32 %v2835, 4294901760
    %4253 = vmatpush1.msra.mxu0 %v4252
    %4254 = vmatprep.subr.mxu0 0.0
    %v4255 = vand.u32 %v2834, 4294901760
    %4256 = vmatpush1.msra.mxu0 %v4255
    %4257 = vmatprep.subr.mxu0 0.0
    %v4258 = vand.u32 %v2833, 4294901760
    %4259 = vmatpush1.msra.mxu0 %v4258
    %4260 = vmatprep.subr.mxu0 0.0
    %v4261 = vand.u32 %v2832, 4294901760
    %4262 = vmatpush1.msra.mxu0 %v4261
    %4263 = vmatprep.subr.mxu0 0.0
    %v4264 = vand.u32 %v2863, 4294901760
    %4265 = vmatpush2.msra.mxu0 %v4264
    %4266 = vmatprep.subr.mxu0 0.0
    %v4267 = vand.u32 %v2862, 4294901760
    %4268 = vmatpush2.msra.mxu0 %v4267
    %4269 = vmatprep.subr.mxu0 0.0
    %v4270 = vand.u32 %v2861, 4294901760
    %4271 = vmatpush2.msra.mxu0 %v4270
    %4272 = vmatprep.subr.mxu0 0.0
    %v4273 = vand.u32 %v2860, 4294901760
    %4274 = vmatpush2.msra.mxu0 %v4273
    %4275 = vmatprep.subr.mxu0 0.0
    %v4276 = vand.u32 %v2859, 4294901760
    %4277 = vmatpush2.msra.mxu0 %v4276
    %4278 = vmatprep.subr.mxu0 0.0
    %v4279 = vand.u32 %v2858, 4294901760
    %4280 = vmatpush2.msra.mxu0 %v4279
    %4281 = vmatprep.subr.mxu0 0.0
    %v4282 = vand.u32 %v2857, 4294901760
    %4283 = vmatpush2.msra.mxu0 %v4282
    %4284 = vmatprep.subr.mxu0 0.0
    %v4285 = vand.u32 %v2856, 4294901760
    %4286 = vmatpush2.msra.mxu0 %v4285
    %4287 = vmatprep.subr.mxu0 0.0
    %v4288 = vand.u32 %v2855, 4294901760
    %4289 = vmatpush2.msra.mxu0 %v4288
    %4290 = vmatprep.subr.mxu0 0.0
    %v4291 = vand.u32 %v2854, 4294901760
    %4292 = vmatpush2.msra.mxu0 %v4291
    %4293 = vmatprep.subr.mxu0 0.0
    %v4294 = vand.u32 %v2853, 4294901760
    %4295 = vmatpush2.msra.mxu0 %v4294
    %4296 = vmatprep.subr.mxu0 0.0
    %v4297 = vand.u32 %v2852, 4294901760
    %4298 = vmatpush2.msra.mxu0 %v4297
    %4299 = vmatprep.subr.mxu0 0.0
    %v4300 = vand.u32 %v2851, 4294901760
    %4301 = vmatpush2.msra.mxu0 %v4300
    %4302 = vmatprep.subr.mxu0 0.0
    %v4303 = vand.u32 %v2850, 4294901760
    %4304 = vmatpush2.msra.mxu0 %v4303
    %4305 = vmatprep.subr.mxu0 0.0
    %v4306 = vand.u32 %v2849, 4294901760
    %4307 = vmatpush2.msra.mxu0 %v4306
    %4308 = vmatprep.subr.mxu0 0.0
    %v4309 = vand.u32 %v2848, 4294901760
    %4310 = vmatpush2.msra.mxu0 %v4309
    %v4311 = vand.u32 %v2799, 4294901760
    %v4312 = vsub.f32 %v2799, %v4311
    %v4313 = vand.u32 %v4312, 4294901760
    %4314 = vmatprep.mubr.f32.mxu0 %v4313
    %v4315 = vand.u32 %v2798, 4294901760
    %v4316 = vsub.f32 %v2798, %v4315
    %v4317 = vand.u32 %v4316, 4294901760
    %4318 = vmatmul.mubr.f32.gmra.mxu0 %v4317
    %v4319 = vpop.f32.mrf.mxu0
    %v4320 = vadd.f32 %v4212, %v4319
    %v4321 = vpop.f32.mrf.mxu0
    %4322 = vdwg.mxu0
    %4323 = vmatprep.subr.mxu0 0.0
    %v4324 = vand.u32 %v2847, 4294901760
    %v4325 = vsub.f32 %v2847, %v4324
    %v4326 = vand.u32 %v4325, 4294901760
    %4327 = vmatpush1.msra.mxu0 %v4326
    %4328 = vmatprep.subr.mxu0 0.0
    %v4329 = vand.u32 %v2846, 4294901760
    %v4330 = vsub.f32 %v2846, %v4329
    %v4331 = vand.u32 %v4330, 4294901760
    %4332 = vmatpush1.msra.mxu0 %v4331
    %4333 = vmatprep.subr.mxu0 0.0
    %v4334 = vand.u32 %v2845, 4294901760
    %v4335 = vsub.f32 %v2845, %v4334
    %v4336 = vand.u32 %v4335, 4294901760
    %4337 = vmatpush1.msra.mxu0 %v4336
    %4338 = vmatprep.subr.mxu0 0.0
    %v4339 = vand.u32 %v2844, 4294901760
    %v4340 = vsub.f32 %v2844, %v4339
    %v4341 = vand.u32 %v4340, 4294901760
    %4342 = vmatpush1.msra.mxu0 %v4341
    %4343 = vmatprep.subr.mxu0 0.0
    %v4344 = vand.u32 %v2843, 4294901760
    %v4345 = vsub.f32 %v2843, %v4344
    %v4346 = vand.u32 %v4345, 4294901760
    %4347 = vmatpush1.msra.mxu0 %v4346
    %4348 = vmatprep.subr.mxu0 0.0
    %v4349 = vand.u32 %v2842, 4294901760
    %v4350 = vsub.f32 %v2842, %v4349
    %v4351 = vand.u32 %v4350, 4294901760
    %4352 = vmatpush1.msra.mxu0 %v4351
    %4353 = vmatprep.subr.mxu0 0.0
    %v4354 = vand.u32 %v2841, 4294901760
    %v4355 = vsub.f32 %v2841, %v4354
    %v4356 = vand.u32 %v4355, 4294901760
    %4357 = vmatpush1.msra.mxu0 %v4356
    %4358 = vmatprep.subr.mxu0 0.0
    %v4359 = vand.u32 %v2840, 4294901760
    %v4360 = vsub.f32 %v2840, %v4359
    %v4361 = vand.u32 %v4360, 4294901760
    %4362 = vmatpush1.msra.mxu0 %v4361
    %4363 = vmatprep.subr.mxu0 0.0
    %v4364 = vand.u32 %v2839, 4294901760
    %v4365 = vsub.f32 %v2839, %v4364
    %v4366 = vand.u32 %v4365, 4294901760
    %4367 = vmatpush1.msra.mxu0 %v4366
    %4368 = vmatprep.subr.mxu0 0.0
    %v4369 = vand.u32 %v2838, 4294901760
    %v4370 = vsub.f32 %v2838, %v4369
    %v4371 = vand.u32 %v4370, 4294901760
    %4372 = vmatpush1.msra.mxu0 %v4371
    %4373 = vmatprep.subr.mxu0 0.0
    %v4374 = vand.u32 %v2837, 4294901760
    %v4375 = vsub.f32 %v2837, %v4374
    %v4376 = vand.u32 %v4375, 4294901760
    %4377 = vmatpush1.msra.mxu0 %v4376
    %4378 = vmatprep.subr.mxu0 0.0
    %v4379 = vand.u32 %v2836, 4294901760
    %v4380 = vsub.f32 %v2836, %v4379
    %v4381 = vand.u32 %v4380, 4294901760
    %4382 = vmatpush1.msra.mxu0 %v4381
    %4383 = vmatprep.subr.mxu0 0.0
    %v4384 = vand.u32 %v2835, 4294901760
    %v4385 = vsub.f32 %v2835, %v4384
    %v4386 = vand.u32 %v4385, 4294901760
    %4387 = vmatpush1.msra.mxu0 %v4386
    %4388 = vmatprep.subr.mxu0 0.0
    %v4389 = vand.u32 %v2834, 4294901760
    %v4390 = vsub.f32 %v2834, %v4389
    %v4391 = vand.u32 %v4390, 4294901760
    %4392 = vmatpush1.msra.mxu0 %v4391
    %4393 = vmatprep.subr.mxu0 0.0
    %v4394 = vand.u32 %v2833, 4294901760
    %v4395 = vsub.f32 %v2833, %v4394
    %v4396 = vand.u32 %v4395, 4294901760
    %4397 = vmatpush1.msra.mxu0 %v4396
    %4398 = vmatprep.subr.mxu0 0.0
    %v4399 = vand.u32 %v2832, 4294901760
    %v4400 = vsub.f32 %v2832, %v4399
    %v4401 = vand.u32 %v4400, 4294901760
    %4402 = vmatpush1.msra.mxu0 %v4401
    %4403 = vmatprep.subr.mxu0 0.0
    %v4404 = vand.u32 %v2863, 4294901760
    %v4405 = vsub.f32 %v2863, %v4404
    %v4406 = vand.u32 %v4405, 4294901760
    %4407 = vmatpush2.msra.mxu0 %v4406
    %4408 = vmatprep.subr.mxu0 0.0
    %v4409 = vand.u32 %v2862, 4294901760
    %v4410 = vsub.f32 %v2862, %v4409
    %v4411 = vand.u32 %v4410, 4294901760
    %4412 = vmatpush2.msra.mxu0 %v4411
    %4413 = vmatprep.subr.mxu0 0.0
    %v4414 = vand.u32 %v2861, 4294901760
    %v4415 = vsub.f32 %v2861, %v4414
    %v4416 = vand.u32 %v4415, 4294901760
    %4417 = vmatpush2.msra.mxu0 %v4416
    %4418 = vmatprep.subr.mxu0 0.0
    %v4419 = vand.u32 %v2860, 4294901760
    %v4420 = vsub.f32 %v2860, %v4419
    %v4421 = vand.u32 %v4420, 4294901760
    %4422 = vmatpush2.msra.mxu0 %v4421
    %4423 = vmatprep.subr.mxu0 0.0
    %v4424 = vand.u32 %v2859, 4294901760
    %v4425 = vsub.f32 %v2859, %v4424
    %v4426 = vand.u32 %v4425, 4294901760
    %4427 = vmatpush2.msra.mxu0 %v4426
    %4428 = vmatprep.subr.mxu0 0.0
    %v4429 = vand.u32 %v2858, 4294901760
    %v4430 = vsub.f32 %v2858, %v4429
    %v4431 = vand.u32 %v4430, 4294901760
    %4432 = vmatpush2.msra.mxu0 %v4431
    %4433 = vmatprep.subr.mxu0 0.0
    %v4434 = vand.u32 %v2857, 4294901760
    %v4435 = vsub.f32 %v2857, %v4434
    %v4436 = vand.u32 %v4435, 4294901760
    %4437 = vmatpush2.msra.mxu0 %v4436
    %4438 = vmatprep.subr.mxu0 0.0
    %v4439 = vand.u32 %v2856, 4294901760
    %v4440 = vsub.f32 %v2856, %v4439
    %v4441 = vand.u32 %v4440, 4294901760
    %4442 = vmatpush2.msra.mxu0 %v4441
    %4443 = vmatprep.subr.mxu0 0.0
    %v4444 = vand.u32 %v2855, 4294901760
    %v4445 = vsub.f32 %v2855, %v4444
    %v4446 = vand.u32 %v4445, 4294901760
    %4447 = vmatpush2.msra.mxu0 %v4446
    %4448 = vmatprep.subr.mxu0 0.0
    %v4449 = vand.u32 %v2854, 4294901760
    %v4450 = vsub.f32 %v2854, %v4449
    %v4451 = vand.u32 %v4450, 4294901760
    %4452 = vmatpush2.msra.mxu0 %v4451
    %4453 = vmatprep.subr.mxu0 0.0
    %v4454 = vand.u32 %v2853, 4294901760
    %v4455 = vsub.f32 %v2853, %v4454
    %v4456 = vand.u32 %v4455, 4294901760
    %4457 = vmatpush2.msra.mxu0 %v4456
    %4458 = vmatprep.subr.mxu0 0.0
    %v4459 = vand.u32 %v2852, 4294901760
    %v4460 = vsub.f32 %v2852, %v4459
    %v4461 = vand.u32 %v4460, 4294901760
    %4462 = vmatpush2.msra.mxu0 %v4461
    %4463 = vmatprep.subr.mxu0 0.0
    %v4464 = vand.u32 %v2851, 4294901760
    %v4465 = vsub.f32 %v2851, %v4464
    %v4466 = vand.u32 %v4465, 4294901760
    %4467 = vmatpush2.msra.mxu0 %v4466
    %4468 = vmatprep.subr.mxu0 0.0
    %v4469 = vand.u32 %v2850, 4294901760
    %v4470 = vsub.f32 %v2850, %v4469
    %v4471 = vand.u32 %v4470, 4294901760
    %4472 = vmatpush2.msra.mxu0 %v4471
    %4473 = vmatprep.subr.mxu0 0.0
    %v4474 = vand.u32 %v2849, 4294901760
    %v4475 = vsub.f32 %v2849, %v4474
    %v4476 = vand.u32 %v4475, 4294901760
    %4477 = vmatpush2.msra.mxu0 %v4476
    %4478 = vmatprep.subr.mxu0 0.0
    %v4479 = vand.u32 %v2848, 4294901760
    %v4480 = vsub.f32 %v2848, %v4479
    %v4481 = vand.u32 %v4480, 4294901760
    %4482 = vmatpush2.msra.mxu0 %v4481
    %v4483 = vand.u32 %v2799, 4294901760
    %4484 = vmatprep.mubr.f32.mxu0 %v4483
    %v4485 = vand.u32 %v2798, 4294901760
    %4486 = vmatmul.mubr.f32.gmra.mxu0 %v4485
    %v4487 = vpop.f32.mrf.mxu0
    %v4488 = vadd.f32 %v4320, %v4487
    %v4489 = vpop.f32.mrf.mxu0
    %4490 = vdwg.mxu0
    %4491 = vmatprep.subr.mxu0 0.0
    %v4492 = vand.u32 %v2847, 4294901760
    %4493 = vmatpush1.msra.mxu0 %v4492
    %4494 = vmatprep.subr.mxu0 0.0
    %v4495 = vand.u32 %v2846, 4294901760
    %4496 = vmatpush1.msra.mxu0 %v4495
    %4497 = vmatprep.subr.mxu0 0.0
    %v4498 = vand.u32 %v2845, 4294901760
    %4499 = vmatpush1.msra.mxu0 %v4498
    %4500 = vmatprep.subr.mxu0 0.0
    %v4501 = vand.u32 %v2844, 4294901760
    %4502 = vmatpush1.msra.mxu0 %v4501
    %4503 = vmatprep.subr.mxu0 0.0
    %v4504 = vand.u32 %v2843, 4294901760
    %4505 = vmatpush1.msra.mxu0 %v4504
    %4506 = vmatprep.subr.mxu0 0.0
    %v4507 = vand.u32 %v2842, 4294901760
    %4508 = vmatpush1.msra.mxu0 %v4507
    %4509 = vmatprep.subr.mxu0 0.0
    %v4510 = vand.u32 %v2841, 4294901760
    %4511 = vmatpush1.msra.mxu0 %v4510
    %4512 = vmatprep.subr.mxu0 0.0
    %v4513 = vand.u32 %v2840, 4294901760
    %4514 = vmatpush1.msra.mxu0 %v4513
    %4515 = vmatprep.subr.mxu0 0.0
    %v4516 = vand.u32 %v2839, 4294901760
    %4517 = vmatpush1.msra.mxu0 %v4516
    %4518 = vmatprep.subr.mxu0 0.0
    %v4519 = vand.u32 %v2838, 4294901760
    %4520 = vmatpush1.msra.mxu0 %v4519
    %4521 = vmatprep.subr.mxu0 0.0
    %v4522 = vand.u32 %v2837, 4294901760
    %4523 = vmatpush1.msra.mxu0 %v4522
    %4524 = vmatprep.subr.mxu0 0.0
    %v4525 = vand.u32 %v2836, 4294901760
    %4526 = vmatpush1.msra.mxu0 %v4525
    %4527 = vmatprep.subr.mxu0 0.0
    %v4528 = vand.u32 %v2835, 4294901760
    %4529 = vmatpush1.msra.mxu0 %v4528
    %4530 = vmatprep.subr.mxu0 0.0
    %v4531 = vand.u32 %v2834, 4294901760
    %4532 = vmatpush1.msra.mxu0 %v4531
    %4533 = vmatprep.subr.mxu0 0.0
    %v4534 = vand.u32 %v2833, 4294901760
    %4535 = vmatpush1.msra.mxu0 %v4534
    %4536 = vmatprep.subr.mxu0 0.0
    %v4537 = vand.u32 %v2832, 4294901760
    %4538 = vmatpush1.msra.mxu0 %v4537
    %4539 = vmatprep.subr.mxu0 0.0
    %v4540 = vand.u32 %v2863, 4294901760
    %4541 = vmatpush2.msra.mxu0 %v4540
    %4542 = vmatprep.subr.mxu0 0.0
    %v4543 = vand.u32 %v2862, 4294901760
    %4544 = vmatpush2.msra.mxu0 %v4543
    %4545 = vmatprep.subr.mxu0 0.0
    %v4546 = vand.u32 %v2861, 4294901760
    %4547 = vmatpush2.msra.mxu0 %v4546
    %4548 = vmatprep.subr.mxu0 0.0
    %v4549 = vand.u32 %v2860, 4294901760
    %4550 = vmatpush2.msra.mxu0 %v4549
    %4551 = vmatprep.subr.mxu0 0.0
    %v4552 = vand.u32 %v2859, 4294901760
    %4553 = vmatpush2.msra.mxu0 %v4552
    %4554 = vmatprep.subr.mxu0 0.0
    %v4555 = vand.u32 %v2858, 4294901760
    %4556 = vmatpush2.msra.mxu0 %v4555
    %4557 = vmatprep.subr.mxu0 0.0
    %v4558 = vand.u32 %v2857, 4294901760
    %4559 = vmatpush2.msra.mxu0 %v4558
    %4560 = vmatprep.subr.mxu0 0.0
    %v4561 = vand.u32 %v2856, 4294901760
    %4562 = vmatpush2.msra.mxu0 %v4561
    %4563 = vmatprep.subr.mxu0 0.0
    %v4564 = vand.u32 %v2855, 4294901760
    %4565 = vmatpush2.msra.mxu0 %v4564
    %4566 = vmatprep.subr.mxu0 0.0
    %v4567 = vand.u32 %v2854, 4294901760
    %4568 = vmatpush2.msra.mxu0 %v4567
    %4569 = vmatprep.subr.mxu0 0.0
    %v4570 = vand.u32 %v2853, 4294901760
    %4571 = vmatpush2.msra.mxu0 %v4570
    %4572 = vmatprep.subr.mxu0 0.0
    %v4573 = vand.u32 %v2852, 4294901760
    %4574 = vmatpush2.msra.mxu0 %v4573
    %4575 = vmatprep.subr.mxu0 0.0
    %v4576 = vand.u32 %v2851, 4294901760
    %4577 = vmatpush2.msra.mxu0 %v4576
    %4578 = vmatprep.subr.mxu0 0.0
    %v4579 = vand.u32 %v2850, 4294901760
    %4580 = vmatpush2.msra.mxu0 %v4579
    %4581 = vmatprep.subr.mxu0 0.0
    %v4582 = vand.u32 %v2849, 4294901760
    %4583 = vmatpush2.msra.mxu0 %v4582
    %4584 = vmatprep.subr.mxu0 0.0
    %v4585 = vand.u32 %v2848, 4294901760
    %4586 = vmatpush2.msra.mxu0 %v4585
    %v4587 = vand.u32 %v2799, 4294901760
    %4588 = vmatprep.mubr.f32.mxu0 %v4587
    %v4589 = vand.u32 %v2798, 4294901760
    %4590 = vmatmul.mubr.f32.gmra.mxu0 %v4589
    %v4591 = vpop.f32.mrf.mxu0
    %v4592 = vadd.f32 %v4488, %v4591
    %v4593 = vpop.f32.mrf.mxu0
    %4594 = vdwg.mxu0
    %v4595 = vxor.u32 %v4592, 2147483648
    %v4596 = vmul.f32 %v4595, 1.442695
    %v4597 = vpow.pop %v4596
    %v4598 = vadd.f32 %v4597, 1.0
    %v4599 = vrcp.pop %v4598
    %v4600 = vmul.f32 1.0, %v4599
    %4601 = vst [vmem:[#allocation10] sm:$0xff] %v4600
    // Predicated region
    $region38: #{tpu_custom_call.1} parent=1 // pred_check
      _
    $region39: #{tpu_custom_call.1} parent=1 // pred_check_branch
      %4603 = sbr.rel (0) target = $region41
    $region40: #{tpu_custom_call.1} parent=1 // pred_region
      %s4605 = ssub.s32 128, 128
      %4606 = vsyncadd [#allocation4], %s4605
      %s4608 = sshll.u32 [#allocation10], 4
      %s4609 = int_to_ptr.vmem [resolvable:$true] %s4608
      %4611 = dma.vmem_to_hbm [thread:$0]  %s4609, 128, %s5, [#allocation4]
    $region41: #{tpu_custom_call.1} parent=1 // pred_fallthru
      _
    // Predicated region
    $region42: #{tpu_custom_call.1} parent=1 // pred_check
      _
    $region43: #{tpu_custom_call.1} parent=1 // pred_check_branch
      %4613 = sbr.rel (0) target = $region45
    $region44: #{tpu_custom_call.1} parent=1 // pred_region
      %4614 = dma.done [#allocation4], 128
    $region45: #{tpu_custom_call.1} parent=1 // pred_fallthru
      _
    %4615 = vsyncpa [#allocation3], 1
    %4616 = vsyncpa [#allocation6], 1
    %4617 = vsyncpa [#allocation9], 1
    %4618 = vsyncpa [#allocation4], 1

</llo_original>
